<compile_context>
chip_gen: v7x
topology: tpu7x:2x2x1
jax: 0.10.0
libtpu: 0.0.40
codegen_flags: <defaults>
</compile_context>

<pallas_src>
import math

import numpy as np
import jax
import jax.numpy as jnp
from jax import lax
from jax.experimental import pallas as pl
from jax.experimental.pallas import tpu as pltpu

_SQRT1_2 = 0.7071067811865476
_LN_EPS = 1e-5


def _gelu(x):
    # exact erf formulation (PyTorch F.gelu default)
    return 0.5 * x * (1.0 + lax.erf(x * jnp.asarray(_SQRT1_2, x.dtype)))


def _layernorm(x, w, b):
    m = jnp.mean(x, axis=-1, keepdims=True)
    v = jnp.mean(jnp.square(x - m), axis=-1, keepdims=True)
    shape = (1,) * (x.ndim - 1) + (-1,)
    return (x - m) * lax.rsqrt(v + _LN_EPS) * w.reshape(shape) + b.reshape(shape)


def _mdot(a, b):
    # MXU matmul with bf16 operands and f32 accumulation (used by kernels AND the reference,
    # so the parity check stays tight).  Elementwise math stays f32 (v5e-safe).
    return jnp.dot(a.astype(jnp.bfloat16), b.astype(jnp.bfloat16),
                   preferred_element_type=jnp.float32)


# ---------------------------------------------------------------------------
# per-generation VMEM limit / tile sizing
# ---------------------------------------------------------------------------
_VMEM_LIMIT_CACHE = [None]


def _vmem_limit():
    if _VMEM_LIMIT_CACHE[0] is None:
        try:
            cap = pltpu.get_tpu_info().vmem_capacity_bytes
        except Exception:
            cap = 0
        # 128 MiB parts (v5e/v6e): open the scoped limit up; 64 MiB parts (v7x): stay tight.
        _VMEM_LIMIT_CACHE[0] = (96 << 20) if cap >= (128 << 20) else (32 << 20)
    return _VMEM_LIMIT_CACHE[0]


def _cparams():
    return pltpu.CompilerParams(dimension_semantics=("parallel",),
                                vmem_limit_bytes=_vmem_limit())


def _full_spec(a):
    nd = a.ndim
    return pl.BlockSpec(a.shape, lambda i: (0,) * nd)


def _pick_batch_tile(n, row_bytes, budget=None):
    """Largest divisor of the batch extent whose per-block footprint fits the budget, while
    keeping >= 2 grid steps when possible (so the parallel axis can use both v7x cores)."""
    budget = (_vmem_limit() // 4) if budget is None else budget
    divs = [t for t in range(1, n + 1) if n % t == 0]
    fit = [t for t in divs if t * row_bytes <= budget] or [1]
    multi = [t for t in fit if n // t >= 2]
    return (multi or fit)[-1]


def _pick_gru_batch_tile(n, row_bytes, budget=None):
    """Batch is the sublane dim of the time-major GRU blocks, so the tile must be the full
    extent or a multiple of 8 that divides it; prefer >= 2 grid steps, then size."""
    budget = (_vmem_limit() // 4) if budget is None else budget
    legal = sorted({n} | {t for t in range(8, n, 8) if n % t == 0})
    fit = [t for t in legal if t * row_bytes <= budget] or [legal[0]]
    multi = [t for t in fit if n // t >= 2]
    return (multi or fit)[-1]


# ---------------------------------------------------------------------------
# dense kernel: y[b, t, :] = x[b, t, :] @ W + bias
# Used for the stride-2 front Conv1d (on an im2col'd input) and for the Linear layer.
# ---------------------------------------------------------------------------
def _dense_kernel(x_ref, w_ref, b_ref, o_ref):
    tb, t, din = x_ref.shape
    dout = w_ref.shape[1]
    y = _mdot(x_ref[...].reshape(tb * t, din), w_ref[...]) + b_ref[...]
    o_ref[...] = y.reshape(tb, t, dout).astype(o_ref.dtype)


def dense(x, w, b):
    B, T, Din = x.shape
    Dout = w.shape[1]
    tb = _pick_batch_tile(B, 4 * T * (Din + Dout) * 2)
    return pl.pallas_call(
        _dense_kernel,
        out_shape=jax.ShapeDtypeStruct((B, T, Dout), x.dtype),
        grid=(B // tb,),
        in_specs=[pl.BlockSpec((tb, T, Din), lambda i: (i, 0, 0)),
                  _full_spec(w), _full_spec(b)],
        out_specs=pl.BlockSpec((tb, T, Dout), lambda i: (i, 0, 0)),
        compiler_params=_cparams(),
    )(x, w, b)


# ---------------------------------------------------------------------------
# Fused ResidualCNN block: LN -> GELU -> conv1(k3,s1,p1) -> LN -> GELU -> conv2 -> + x
# in ONE pallas_call, with an in-kernel time halo (zero-padded VMEM scratch).
# Each conv is a single (tb*T, 3C) x (3C, C) MXU matmul on a lane-concatenated patch.
# ---------------------------------------------------------------------------
def _rescnn_kernel(x_ref, ln1_w, ln1_b, w1_ref, b1_ref, ln2_w, ln2_b, w2_ref, b2_ref,
                   o_ref, pad_scr):
    tb, t, c = x_ref.shape
    cout = w1_ref.shape[-1]
    pad_scr[...] = jnp.zeros_like(pad_scr)   # halo rows 0 and t+1 stay zero

    def conv3(a, w_r, b_r):
        # stage into the padded scratch, read the 3 shifted windows, lane-concat to a
        # (tb*t, 3c) patch and run ONE K=3c matmul with the pre-stacked (3c, cout) weight.
        pad_scr[:, 1:t + 1, :] = a
        patch = jnp.concatenate([pad_scr[:, k:k + t, :] for k in range(3)], axis=-1)
        y = _mdot(patch.reshape(tb * t, 3 * c), w_r[...]) + b_r[...]
        return y.reshape(tb, t, cout)

    x = x_ref[...]
    a = _gelu(_layernorm(x, ln1_w[...], ln1_b[...]))
    h = conv3(a, w1_ref, b1_ref)
    a = _gelu(_layernorm(h, ln2_w[...], ln2_b[...]))
    o_ref[...] = (conv3(a, w2_ref, b2_ref) + x).astype(o_ref.dtype)


def residual_cnn(x, p):
    B, T, C = x.shape
    tb = _pick_batch_tile(B, 4 * T * C * 12)
    return pl.pallas_call(
        _rescnn_kernel,
        out_shape=jax.ShapeDtypeStruct((B, T, C), x.dtype),
        grid=(B // tb,),
        in_specs=[pl.BlockSpec((tb, T, C), lambda i: (i, 0, 0)),
                  _full_spec(p["ln1_w"]), _full_spec(p["ln1_b"]),
                  _full_spec(p["w1"]), _full_spec(p["b1"]),
                  _full_spec(p["ln2_w"]), _full_spec(p["ln2_b"]),
                  _full_spec(p["w2"]), _full_spec(p["b2"])],
        out_specs=pl.BlockSpec((tb, T, C), lambda i: (i, 0, 0)),
        scratch_shapes=[pltpu.VMEM((tb, T + 2, C), jnp.float32)],
        compiler_params=_cparams(),
    )(x, p["ln1_w"], p["ln1_b"], p["w1"], p["b1"],
      p["ln2_w"], p["ln2_b"], p["w2"], p["b2"])


# ---------------------------------------------------------------------------
# BidirectionalGRU: LayerNorm -> GELU -> bidirectional GRU -> Dropout(identity).
# Time-major blocks (seq, batch_tile, feat); out[..., :H] = forward, out[..., H:] = backward.
# ---------------------------------------------------------------------------
def _bigru_kernel(x_ref, ln_w_ref, ln_b_ref, wih_ref, bih_ref, whh_ref, bhh_ref,
                  out_ref, xgf_scr, xgb_scr):
    s, nb, d = x_ref.shape
    H = whh_ref.shape[0] // 2
    H3 = 3 * H

    # prologue: LN + GELU, then ONE fused (d, 6H) input projection for both directions,
    # split into per-direction scratches so each serial step loads only its own 3H slice.
    g = _gelu(_layernorm(x_ref[...], ln_w_ref[...], ln_b_ref[...]))
    xg = (_mdot(g.reshape(s * nb, d), wih_ref[...]) + bih_ref[...]).reshape(s, nb, 2 * H3)
    # TODO(synk): store these scratches in bf16 on v6e/v7x to halve per-step load bytes.
    xgf_scr[...] = xg[:, :, :H3]
    xgb_scr[...] = xg[:, :, H3:]

    whh = whh_ref[...].astype(jnp.bfloat16)   # (2H, 6H) block-diagonal [fwd | bwd]
    bhh = bhh_ref[...]                        # (1, 6H)  = [bhh_fwd | bhh_bwd]

    def body(i, carry):
        hf, hb = carry
        j = s - 1 - i
        xg_f = xgf_scr[pl.ds(i, 1), :, :].reshape(nb, H3)
        xg_b = xgb_scr[pl.ds(j, 1), :, :].reshape(nb, H3)

        # ONE block-diagonal recurrent matmul for both directions: halves the MXU push/pop
        # count on the serial critical path (extra zero FLOPs are free at this size).
        hcat = jnp.concatenate([hf, hb], axis=-1).astype(jnp.bfloat16)   # (nb, 2H)
        hp = jnp.dot(hcat, whh, preferred_element_type=jnp.float32) + bhh

        def gates(xg_t, hp_t, h_prev):
            # PyTorch gate order (r, z, n); n = tanh(x_n + r * (W_hn h + b_hn))
            # TODO(synk): lane-pad H to 128 so these gate slices are lane-aligned.
            r = jax.nn.sigmoid(xg_t[:, 0:H] + hp_t[:, 0:H])
            z = jax.nn.sigmoid(xg_t[:, H:2 * H] + hp_t[:, H:2 * H])
            n = jnp.tanh(xg_t[:, 2 * H:H3] + r * hp_t[:, 2 * H:H3])
            return (1.0 - z) * n + z * h_prev

        hf = gates(xg_f, hp[:, :H3], hf)
        hb = gates(xg_b, hp[:, H3:], hb)
        out_ref[pl.ds(i, 1), :, 0:H] = hf.reshape(1, nb, H).astype(out_ref.dtype)
        out_ref[pl.ds(j, 1), :, H:2 * H] = hb.reshape(1, nb, H).astype(out_ref.dtype)
        return hf, hb

    h0 = jnp.zeros((nb, H), jnp.float32)
    # fully unrolled so the LLO scheduler can interleave the fwd/bwd chains across steps.
    lax.fori_loop(0, s, body, (h0, h0), unroll=True)


def _bigru_call(x, p):
    # x: (seq, batch, feat), batch already a multiple of 8 (or the full toy extent)
    S, N, D = x.shape
    H = p["whh"].shape[0] // 2
    nb = _pick_gru_batch_tile(N, 4 * S * (D + 8 * H) * 2)
    return pl.pallas_call(
        _bigru_kernel,
        out_shape=jax.ShapeDtypeStruct((S, N, 2 * H), x.dtype),
        grid=(N // nb,),
        in_specs=[pl.BlockSpec((S, nb, D), lambda i: (0, i, 0)),
                  _full_spec(p["ln_w"]), _full_spec(p["ln_b"]),
                  _full_spec(p["wih"]), _full_spec(p["bih"]),
                  _full_spec(p["whh"]), _full_spec(p["bhh"])],
        out_specs=pl.BlockSpec((S, nb, 2 * H), lambda i: (0, i, 0)),
        scratch_shapes=[pltpu.VMEM((S, nb, 3 * H), jnp.float32),
                        pltpu.VMEM((S, nb, 3 * H), jnp.float32)],
        compiler_params=_cparams(),
    )(x, p["ln_w"], p["ln_b"], p["wih"], p["bih"], p["whh"], p["bhh"])


def _bigru_time_major(x, p):
    # Pad the batch axis to a multiple of 8 so the time-major blocks are sublane-aligned;
    # padded rows are discarded.
    # TODO(synk): two-phase T-chunked recurrence for long sequences (v7x VMEM budget).
    S, N, D = x.shape
    n_pad = (-N) % 8
    if n_pad:
        x = jnp.pad(x, ((0, 0), (0, n_pad), (0, 0)))
    out = _bigru_call(x, p)
    return out[:, :N, :] if n_pad else out


def bidirectional_gru(x, p, batch_first):
    # The kernel is time-major: (seq, batch, feat).  Layer 0 (batch_first=True) needs a
    # transpose in/out.  Layers i>0 are built with batch_first=False in the original model
    # while still receiving (batch, time, feat) tensors, i.e. nn.GRU runs its recurrence
    # over axis 0 -- exactly the kernel's native layout, so they pass through unchanged
    # (faithfully replicating the PyTorch module's behaviour).
    if batch_first:
        y = jnp.transpose(x, (1, 0, 2))
        y = _bigru_time_major(y, p)
        return jnp.transpose(y, (1, 0, 2))
    return _bigru_time_major(x, p)


# ---------------------------------------------------------------------------
# ConvListener forward
# ---------------------------------------------------------------------------
def _im2col_k3(x, stride):
    # (B, T, C) -> (B, T_out, 3*C) patches of a k=3, pad=1 Conv1d, feature order k-major.
    # TODO(synk): move this strided front conv in-kernel to avoid the HBM im2col copy.
    B, T, C = x.shape
    t_out = (T - 1) // stride + 1
    xp = jnp.pad(x, ((0, 0), (1, 1), (0, 0)))
    cols = [lax.slice(xp, (0, k, 0), (B, k + stride * (t_out - 1) + 1, C), (1, stride, 1))
            for k in range(3)]
    return jnp.concatenate(cols, axis=-1)


def conv_listener_forward(x, params):
    # PyTorch goes channels-first for the convs and back; we stay channels-last throughout,
    # so those transposes (and the .view) become no-ops.
    h = dense(_im2col_k3(x, stride=2), params["cnn_w"], params["cnn_b"])  # Conv1d(77,64,3,s2)
    for p in params["rescnn"]:
        h = residual_cnn(h, p)
    h = dense(h, params["fc_w"], params["fc_b"])                          # Linear(64, rnn_dim)
    for i, p in enumerate(params["birnn"]):
        h = bidirectional_gru(h, p, batch_first=(i == 0))
    return h


# ---------------------------------------------------------------------------
# parameters (PyTorch-style init, stored in kernel-friendly transposed/fused layouts)
# ---------------------------------------------------------------------------
def init_params(key, *, in_features, rnn_dim, n_cnn_layers, n_rnn_layers):
    keys = iter(jax.random.split(key, 256))

    def unif(shape, bound):
        return jax.random.uniform(next(keys), shape, jnp.float32, -bound, bound)

    def jitter(shape, base):
        return base + 0.1 * jax.random.normal(next(keys), shape, jnp.float32)

    p = {}
    bc0 = 1.0 / math.sqrt(in_features * 3)
    p["cnn_w"] = unif((3 * in_features, 64), bc0)     # front Conv1d weight, im2col layout
    p["cnn_b"] = unif((1, 64), bc0)

    bc = 1.0 / math.sqrt(64 * 3)
    p["rescnn"] = [{
        "ln1_w": jitter((1, 64), 1.0), "ln1_b": jitter((1, 64), 0.0),
        "w1": unif((3 * 64, 64), bc), "b1": unif((1, 64), bc),   # stacked (3C, C) weight
        "ln2_w": jitter((1, 64), 1.0), "ln2_b": jitter((1, 64), 0.0),
        "w2": unif((3 * 64, 64), bc), "b2": unif((1, 64), bc),
    } for _ in range(n_cnn_layers)]

    bl = 1.0 / math.sqrt(64)
    p["fc_w"] = unif((64, rnn_dim), bl)
    p["fc_b"] = unif((1, rnn_dim), bl)

    bg = 1.0 / math.sqrt(rnn_dim)
    gru = []
    for i in range(n_rnn_layers):
        d = rnn_dim if i == 0 else 2 * rnn_dim
        whh_f = unif((rnn_dim, 3 * rnn_dim), bg)
        whh_b = unif((rnn_dim, 3 * rnn_dim), bg)
        # block-diagonal recurrent weight (2H, 6H): [whh_f  0 ; 0  whh_b]
        whh = jnp.concatenate(
            [jnp.concatenate([whh_f, jnp.zeros_like(whh_f)], axis=1),
             jnp.concatenate([jnp.zeros_like(whh_b), whh_b], axis=1)], axis=0)
        gru.append({
            "ln_w": jitter((1, d), 1.0), "ln_b": jitter((1, d), 0.0),
            # fused, pre-transposed W_ih for both directions: (D, 6H) = [fwd 3H | bwd 3H]
            "wih": unif((d, 6 * rnn_dim), bg), "bih": unif((1, 6 * rnn_dim), bg),
            "whh": whh, "bhh": unif((1, 6 * rnn_dim), bg),
        })
    p["birnn"] = gru
    return p


# ---------------------------------------------------------------------------
# pure-JAX (non-Pallas) reference of the same math, for a sanity check
# (uses the same bf16-operand / f32-accumulate dots so the parity check stays tight)
# ---------------------------------------------------------------------------
def reference_forward(x, params):
    def dense_ref(h, w, b):
        B, T, Din = h.shape
        return (_mdot(h.reshape(B * T, Din), w) + b).reshape(B, T, -1)

    def conv3_s1(h, w, bias):
        B, T, C = h.shape
        hp = jnp.pad(h, ((0, 0), (1, 1), (0, 0)))
        patch = jnp.concatenate([hp[:, k:k + T, :] for k in range(3)], axis=-1)
        return dense_ref(patch, w, bias)

    h = dense_ref(_im2col_k3(x, stride=2), params["cnn_w"], params["cnn_b"])
    for p in params["rescnn"]:
        r = h
        h = conv3_s1(_gelu(_layernorm(h, p["ln1_w"], p["ln1_b"])), p["w1"], p["b1"])
        h = conv3_s1(_gelu(_layernorm(h, p["ln2_w"], p["ln2_b"])), p["w2"], p["b2"])
        h = h + r
    h = dense_ref(h, params["fc_w"], params["fc_b"])

    def bigru(y, p):   # y: (batch, seq, feat), recurrence over seq
        N, S, _ = y.shape
        H = p["whh"].shape[0] // 2
        g = _gelu(_layernorm(y, p["ln_w"], p["ln_b"]))

        def run(wih, bih, whh, bhh, reverse):
            seq = g[:, ::-1, :] if reverse else g
            hcur = jnp.zeros((N, H), jnp.float32)
            outs = []
            for s in range(S):
                xg = _mdot(seq[:, s, :], wih) + bih
                hp = _mdot(hcur, whh) + bhh
                r = jax.nn.sigmoid(xg[:, :H] + hp[:, :H])
                z = jax.nn.sigmoid(xg[:, H:2 * H] + hp[:, H:2 * H])
                n = jnp.tanh(xg[:, 2 * H:] + r * hp[:, 2 * H:])
                hcur = (1.0 - z) * n + z * hcur
                outs.append(hcur)
            o = jnp.stack(outs, axis=1)
            return o[:, ::-1, :] if reverse else o

        of = run(p["wih"][:, :3 * H], p["bih"][:, :3 * H],
                 p["whh"][:H, :3 * H], p["bhh"][:, :3 * H], False)
        ob = run(p["wih"][:, 3 * H:], p["bih"][:, 3 * H:],
                 p["whh"][H:, 3 * H:], p["bhh"][:, 3 * H:], True)
        return jnp.concatenate([of, ob], axis=-1)

    for i, p in enumerate(params["birnn"]):
        if i == 0:
            h = bigru(h, p)
        else:
            h = jnp.transpose(bigru(jnp.transpose(h, (1, 0, 2)), p), (1, 0, 2))
    return h


if __name__ == "__main__":
    B, T_in, in_features = 2, 16, 77          # ConvListener default in_features = 77
    rnn_dim, n_cnn_layers, n_rnn_layers = 32, 1, 2

    key = jax.random.PRNGKey(0)
    kx, kp = jax.random.split(key)
    x = jax.random.normal(kx, (B, T_in, in_features), jnp.float32)
    params = init_params(kp, in_features=in_features, rnn_dim=rnn_dim,
                         n_cnn_layers=n_cnn_layers, n_rnn_layers=n_rnn_layers)

    out = jax.block_until_ready(jax.jit(conv_listener_forward)(x, params))
    t_out = (T_in - 1) // 2 + 1
    assert out.shape == (B, t_out, 2 * rnn_dim), out.shape

    ref = jax.block_until_ready(reference_forward(x, params))
    # tolerance loosened slightly (5e-3 -> 1e-2) because MXU operands are now bf16
    np.testing.assert_allclose(np.asarray(out), np.asarray(ref), rtol=1e-2, atol=1e-2)
    print("KERNEL_OK")
</pallas_src>

<mosaic_0001>
module attributes {stable_mosaic.version = 11 : i64} {
  func.func @_dense_kernel(%arg0: i32, %arg1: memref<1x8x231xf32, #tpu.memory_space<vmem>>, %arg2: memref<231x64xf32, #tpu.memory_space<vmem>>, %arg3: memref<1x64xf32, #tpu.memory_space<vmem>>, %arg4: memref<1x8x64xf32, #tpu.memory_space<vmem>>) attributes {dimension_semantics = [#tpu.dimension_semantics<parallel>], iteration_bounds = array<i64: 2>, scalar_prefetch = 0 : i64, scratch_operands = 0 : i64, tpu.core_type = #tpu.core_type<tc>, window_params = [{transform_indices = @transform_0, window_bounds = array<i64: 1, 8, 231>}, {pipeline_mode = #tpu.pipeline_mode<synchronous>, transform_indices = @transform_1, window_bounds = array<i64: 231, 64>}, {pipeline_mode = #tpu.pipeline_mode<synchronous>, transform_indices = @transform_2, window_bounds = array<i64: 1, 64>}, {transform_indices = @transform_3, window_bounds = array<i64: 1, 8, 64>}]} {
    %c0 = arith.constant 0 : index
    %c0_0 = arith.constant 0 : index
    %c0_1 = arith.constant 0 : index
    %0 = vector.load %arg1[%c0, %c0_0, %c0_1] : memref<1x8x231xf32, #tpu.memory_space<vmem>>, vector<1x8x231xf32>
    %1 = vector.shape_cast %0 : vector<1x8x231xf32> to vector<8x231xf32>
    %c0_2 = arith.constant 0 : index
    %c0_3 = arith.constant 0 : index
    %2 = vector.load %arg2[%c0_2, %c0_3] : memref<231x64xf32, #tpu.memory_space<vmem>>, vector<231x64xf32>
    %3 = arith.truncf %1 : vector<8x231xf32> to vector<8x231xbf16>
    %4 = arith.truncf %2 : vector<231x64xf32> to vector<231x64xbf16>
    %cst = arith.constant dense<0.000000e+00> : vector<8x64xf32>
    %5 = tpu.matmul %3, %4, %cst {dimension_numbers = #tpu.dot_dimension_numbers<[1], [0], [0], [1], [0, 0, 1, 1], [], []>} : vector<8x231xbf16>, vector<231x64xbf16>, vector<8x64xf32> -> vector<8x64xf32>
    %c0_4 = arith.constant 0 : index
    %c0_5 = arith.constant 0 : index
    %6 = vector.load %arg3[%c0_4, %c0_5] : memref<1x64xf32, #tpu.memory_space<vmem>>, vector<1x64xf32>
    %7 = vector.broadcast %6 : vector<1x64xf32> to vector<8x64xf32>
    %8 = arith.addf %5, %7 : vector<8x64xf32>
    %9 = vector.shape_cast %8 : vector<8x64xf32> to vector<1x8x64xf32>
    %c0_6 = arith.constant 0 : index
    %c0_7 = arith.constant 0 : index
    %c0_8 = arith.constant 0 : index
    %10 = vector.load %arg4[%c0_6, %c0_7, %c0_8] : memref<1x8x64xf32, #tpu.memory_space<vmem>>, vector<1x8x64xf32>
    tpu.vector_store %arg4[%c0_6, %c0_7, %c0_8], %9 {strides = array<i32>} : memref<1x8x64xf32, #tpu.memory_space<vmem>>, vector<1x8x64xf32>,
    return
  }
  func.func @transform_0(%arg0: i32) -> (i32, i32, i32) {
    %c0_i32 = arith.constant 0 : i32
    %c0_i32_0 = arith.constant 0 : i32
    %c0_i32_1 = arith.constant 0 : i32
    return %arg0, %c0_i32, %c0_i32_0 : i32, i32, i32
  }
  func.func @transform_1(%arg0: i32) -> (i32, i32) {
    %c0_i32 = arith.constant 0 : i32
    %c0_i32_0 = arith.constant 0 : i32
    %c0_i32_1 = arith.constant 0 : i32
    return %c0_i32, %c0_i32_0 : i32, i32
  }
  func.func @transform_2(%arg0: i32) -> (i32, i32) {
    %c0_i32 = arith.constant 0 : i32
    %c0_i32_0 = arith.constant 0 : i32
    %c0_i32_1 = arith.constant 0 : i32
    return %c0_i32, %c0_i32_0 : i32, i32
  }
  func.func @transform_3(%arg0: i32) -> (i32, i32, i32) {
    %c0_i32 = arith.constant 0 : i32
    %c0_i32_0 = arith.constant 0 : i32
    %c0_i32_1 = arith.constant 0 : i32
    return %arg0, %c0_i32, %c0_i32_0 : i32, i32, i32
  }
}

module attributes {stable_mosaic.version = 11 : i64} {
  func.func @_rescnn_kernel(%arg0: i32, %arg1: memref<1x8x64xf32, #tpu.memory_space<vmem>>, %arg2: memref<1x64xf32, #tpu.memory_space<vmem>>, %arg3: memref<1x64xf32, #tpu.memory_space<vmem>>, %arg4: memref<192x64xf32, #tpu.memory_space<vmem>>, %arg5: memref<1x64xf32, #tpu.memory_space<vmem>>, %arg6: memref<1x64xf32, #tpu.memory_space<vmem>>, %arg7: memref<1x64xf32, #tpu.memory_space<vmem>>, %arg8: memref<192x64xf32, #tpu.memory_space<vmem>>, %arg9: memref<1x64xf32, #tpu.memory_space<vmem>>, %arg10: memref<1x8x64xf32, #tpu.memory_space<vmem>>, %arg11: memref<1x10x64xf32, #tpu.memory_space<vmem>>) attributes {dimension_semantics = [#tpu.dimension_semantics<parallel>], iteration_bounds = array<i64: 2>, scalar_prefetch = 0 : i64, scratch_operands = 1 : i64, tpu.core_type = #tpu.core_type<tc>, window_params = [{transform_indices = @transform_0, window_bounds = array<i64: 1, 8, 64>}, {pipeline_mode = #tpu.pipeline_mode<synchronous>, transform_indices = @transform_1, window_bounds = array<i64: 1, 64>}, {pipeline_mode = #tpu.pipeline_mode<synchronous>, transform_indices = @transform_2, window_bounds = array<i64: 1, 64>}, {pipeline_mode = #tpu.pipeline_mode<synchronous>, transform_indices = @transform_3, window_bounds = array<i64: 192, 64>}, {pipeline_mode = #tpu.pipeline_mode<synchronous>, transform_indices = @transform_4, window_bounds = array<i64: 1, 64>}, {pipeline_mode = #tpu.pipeline_mode<synchronous>, transform_indices = @transform_5, window_bounds = array<i64: 1, 64>}, {pipeline_mode = #tpu.pipeline_mode<synchronous>, transform_indices = @transform_6, window_bounds = array<i64: 1, 64>}, {pipeline_mode = #tpu.pipeline_mode<synchronous>, transform_indices = @transform_7, window_bounds = array<i64: 192, 64>}, {pipeline_mode = #tpu.pipeline_mode<synchronous>, transform_indices = @transform_8, window_bounds = array<i64: 1, 64>}, {transform_indices = @transform_9, window_bounds = array<i64: 1, 8, 64>}]} {
    %cst = arith.constant 0.000000e+00 : f32
    %0 = vector.broadcast %cst : f32 to vector<1x10x64xf32>
    %c0 = arith.constant 0 : index
    %c0_0 = arith.constant 0 : index
    %c0_1 = arith.constant 0 : index
    %1 = vector.load %arg11[%c0, %c0_0, %c0_1] : memref<1x10x64xf32, #tpu.memory_space<vmem>>, vector<1x10x64xf32>
    tpu.vector_store %arg11[%c0, %c0_0, %c0_1], %0 {strides = array<i32>} : memref<1x10x64xf32, #tpu.memory_space<vmem>>, vector<1x10x64xf32>,
    %c0_2 = arith.constant 0 : index
    %c0_3 = arith.constant 0 : index
    %c0_4 = arith.constant 0 : index
    %2 = vector.load %arg1[%c0_2, %c0_3, %c0_4] : memref<1x8x64xf32, #tpu.memory_space<vmem>>, vector<1x8x64xf32>
    %c0_5 = arith.constant 0 : index
    %c0_6 = arith.constant 0 : index
    %3 = vector.load %arg2[%c0_5, %c0_6] : memref<1x64xf32, #tpu.memory_space<vmem>>, vector<1x64xf32>
    %c0_7 = arith.constant 0 : index
    %c0_8 = arith.constant 0 : index
    %4 = vector.load %arg3[%c0_7, %c0_8] : memref<1x64xf32, #tpu.memory_space<vmem>>, vector<1x64xf32>
    %cst_9 = arith.constant dense<0.000000e+00> : vector<1x8xf32>
    %5 = vector.multi_reduction <add>, %2, %cst_9 [2] : vector<1x8x64xf32> to vector<1x8xf32>
    %6 = vector.shape_cast %5 : vector<1x8xf32> to vector<1x8x1xf32>
    %cst_10 = arith.constant 6.400000e+01 : f32
    %7 = vector.broadcast %cst_10 : f32 to vector<1x8x1xf32>
    %8 = arith.divf %6, %7 : vector<1x8x1xf32>
    %9 = vector.broadcast %8 : vector<1x8x1xf32> to vector<1x8x64xf32>
    %10 = arith.subf %2, %9 : vector<1x8x64xf32>
    %11 = arith.mulf %10, %10 : vector<1x8x64xf32>
    %cst_11 = arith.constant dense<0.000000e+00> : vector<1x8xf32>
    %12 = vector.multi_reduction <add>, %11, %cst_11 [2] : vector<1x8x64xf32> to vector<1x8xf32>
    %13 = vector.shape_cast %12 : vector<1x8xf32> to vector<1x8x1xf32>
    %cst_12 = arith.constant 6.400000e+01 : f32
    %14 = vector.broadcast %cst_12 : f32 to vector<1x8x1xf32>
    %15 = arith.divf %13, %14 : vector<1x8x1xf32>
    %16 = vector.broadcast %8 : vector<1x8x1xf32> to vector<1x8x64xf32>
    %17 = arith.subf %2, %16 : vector<1x8x64xf32>
    %cst_13 = arith.constant 9.99999974E-6 : f32
    %18 = vector.broadcast %cst_13 : f32 to vector<1x8x1xf32>
    %19 = arith.addf %15, %18 : vector<1x8x1xf32>
    %20 = math.rsqrt %19 : vector<1x8x1xf32>
    %21 = vector.broadcast %20 : vector<1x8x1xf32> to vector<1x8x64xf32>
    %22 = arith.mulf %17, %21 : vector<1x8x64xf32>
    %23 = vector.shape_cast %3 : vector<1x64xf32> to vector<1x1x64xf32>
    %24 = vector.broadcast %23 : vector<1x1x64xf32> to vector<1x8x64xf32>
    %25 = arith.mulf %22, %24 : vector<1x8x64xf32>
    %26 = vector.shape_cast %4 : vector<1x64xf32> to vector<1x1x64xf32>
    %27 = vector.broadcast %26 : vector<1x1x64xf32> to vector<1x8x64xf32>
    %28 = arith.addf %25, %27 : vector<1x8x64xf32>
    %cst_14 = arith.constant 5.000000e-01 : f32
    %29 = vector.broadcast %cst_14 : f32 to vector<1x8x64xf32>
    %30 = arith.mulf %29, %28 : vector<1x8x64xf32>
    %cst_15 = arith.constant 0.707106769 : f32
    %31 = vector.broadcast %cst_15 : f32 to vector<1x8x64xf32>
    %32 = arith.mulf %28, %31 : vector<1x8x64xf32>
    %33 = math.erf %32 : vector<1x8x64xf32>
    %cst_16 = arith.constant 1.000000e+00 : f32
    %34 = vector.broadcast %cst_16 : f32 to vector<1x8x64xf32>
    %35 = arith.addf %34, %33 : vector<1x8x64xf32>
    %36 = arith.mulf %30, %35 : vector<1x8x64xf32>
    %c0_17 = arith.constant 0 : index
    %c1 = arith.constant 1 : index
    %c0_18 = arith.constant 0 : index
    %37 = vector.load %arg11[%c0_17, %c1, %c0_18] : memref<1x10x64xf32, #tpu.memory_space<vmem>>, vector<1x8x64xf32>
    tpu.vector_store %arg11[%c0_17, %c1, %c0_18], %36 {strides = array<i32>} : memref<1x10x64xf32, #tpu.memory_space<vmem>>, vector<1x8x64xf32>,
    %c0_19 = arith.constant 0 : index
    %c0_20 = arith.constant 0 : index
    %c0_21 = arith.constant 0 : index
    %38 = vector.load %arg11[%c0_19, %c0_20, %c0_21] : memref<1x10x64xf32, #tpu.memory_space<vmem>>, vector<1x8x64xf32>
    %c0_22 = arith.constant 0 : index
    %c1_23 = arith.constant 1 : index
    %c0_24 = arith.constant 0 : index
    %39 = vector.load %arg11[%c0_22, %c1_23, %c0_24] : memref<1x10x64xf32, #tpu.memory_space<vmem>>, vector<1x8x64xf32>
    %c0_25 = arith.constant 0 : index
    %c2 = arith.constant 2 : index
    %c0_26 = arith.constant 0 : index
    %40 = vector.load %arg11[%c0_25, %c2, %c0_26] : memref<1x10x64xf32, #tpu.memory_space<vmem>>, vector<1x8x64xf32>
    %41 = tpu.concatenate %38, %39, %40 in 2 : vector<1x8x64xf32>, vector<1x8x64xf32>, vector<1x8x64xf32> -> vector<1x8x192xf32>
    %42 = vector.shape_cast %41 : vector<1x8x192xf32> to vector<8x192xf32>
    %c0_27 = arith.constant 0 : index
    %c0_28 = arith.constant 0 : index
    %43 = vector.load %arg4[%c0_27, %c0_28] : memref<192x64xf32, #tpu.memory_space<vmem>>, vector<192x64xf32>
    %44 = arith.truncf %42 : vector<8x192xf32> to vector<8x192xbf16>
    %45 = arith.truncf %43 : vector<192x64xf32> to vector<192x64xbf16>
    %cst_29 = arith.constant dense<0.000000e+00> : vector<8x64xf32>
    %46 = tpu.matmul %44, %45, %cst_29 {dimension_numbers = #tpu.dot_dimension_numbers<[1], [0], [0], [1], [0, 0, 1, 1], [], []>} : vector<8x192xbf16>, vector<192x64xbf16>, vector<8x64xf32> -> vector<8x64xf32>
    %c0_30 = arith.constant 0 : index
    %c0_31 = arith.constant 0 : index
    %47 = vector.load %arg5[%c0_30, %c0_31] : memref<1x64xf32, #tpu.memory_space<vmem>>, vector<1x64xf32>
    %48 = vector.broadcast %47 : vector<1x64xf32> to vector<8x64xf32>
    %49 = arith.addf %46, %48 : vector<8x64xf32>
    %50 = vector.shape_cast %49 : vector<8x64xf32> to vector<1x8x64xf32>
    %c0_32 = arith.constant 0 : index
    %c0_33 = arith.constant 0 : index
    %51 = vector.load %arg6[%c0_32, %c0_33] : memref<1x64xf32, #tpu.memory_space<vmem>>, vector<1x64xf32>
    %c0_34 = arith.constant 0 : index
    %c0_35 = arith.constant 0 : index
    %52 = vector.load %arg7[%c0_34, %c0_35] : memref<1x64xf32, #tpu.memory_space<vmem>>, vector<1x64xf32>
    %cst_36 = arith.constant dense<0.000000e+00> : vector<1x8xf32>
    %53 = vector.multi_reduction <add>, %50, %cst_36 [2] : vector<1x8x64xf32> to vector<1x8xf32>
    %54 = vector.shape_cast %53 : vector<1x8xf32> to vector<1x8x1xf32>
    %cst_37 = arith.constant 6.400000e+01 : f32
    %55 = vector.broadcast %cst_37 : f32 to vector<1x8x1xf32>
    %56 = arith.divf %54, %55 : vector<1x8x1xf32>
    %57 = vector.broadcast %56 : vector<1x8x1xf32> to vector<1x8x64xf32>
    %58 = arith.subf %50, %57 : vector<1x8x64xf32>
    %59 = arith.mulf %58, %58 : vector<1x8x64xf32>
    %cst_38 = arith.constant dense<0.000000e+00> : vector<1x8xf32>
    %60 = vector.multi_reduction <add>, %59, %cst_38 [2] : vector<1x8x64xf32> to vector<1x8xf32>
    %61 = vector.shape_cast %60 : vector<1x8xf32> to vector<1x8x1xf32>
    %cst_39 = arith.constant 6.400000e+01 : f32
    %62 = vector.broadcast %cst_39 : f32 to vector<1x8x1xf32>
    %63 = arith.divf %61, %62 : vector<1x8x1xf32>
    %64 = vector.broadcast %56 : vector<1x8x1xf32> to vector<1x8x64xf32>
    %65 = arith.subf %50, %64 : vector<1x8x64xf32>
    %cst_40 = arith.constant 9.99999974E-6 : f32
    %66 = vector.broadcast %cst_40 : f32 to vector<1x8x1xf32>
    %67 = arith.addf %63, %66 : vector<1x8x1xf32>
    %68 = math.rsqrt %67 : vector<1x8x1xf32>
    %69 = vector.broadcast %68 : vector<1x8x1xf32> to vector<1x8x64xf32>
    %70 = arith.mulf %65, %69 : vector<1x8x64xf32>
    %71 = vector.shape_cast %51 : vector<1x64xf32> to vector<1x1x64xf32>
    %72 = vector.broadcast %71 : vector<1x1x64xf32> to vector<1x8x64xf32>
    %73 = arith.mulf %70, %72 : vector<1x8x64xf32>
    %74 = vector.shape_cast %52 : vector<1x64xf32> to vector<1x1x64xf32>
    %75 = vector.broadcast %74 : vector<1x1x64xf32> to vector<1x8x64xf32>
    %76 = arith.addf %73, %75 : vector<1x8x64xf32>
    %cst_41 = arith.constant 5.000000e-01 : f32
    %77 = vector.broadcast %cst_41 : f32 to vector<1x8x64xf32>
    %78 = arith.mulf %77, %76 : vector<1x8x64xf32>
    %cst_42 = arith.constant 0.707106769 : f32
    %79 = vector.broadcast %cst_42 : f32 to vector<1x8x64xf32>
    %80 = arith.mulf %76, %79 : vector<1x8x64xf32>
    %81 = math.erf %80 : vector<1x8x64xf32>
    %cst_43 = arith.constant 1.000000e+00 : f32
    %82 = vector.broadcast %cst_43 : f32 to vector<1x8x64xf32>
    %83 = arith.addf %82, %81 : vector<1x8x64xf32>
    %84 = arith.mulf %78, %83 : vector<1x8x64xf32>
    %c0_44 = arith.constant 0 : index
    %c1_45 = arith.constant 1 : index
    %c0_46 = arith.constant 0 : index
    %85 = vector.load %arg11[%c0_44, %c1_45, %c0_46] : memref<1x10x64xf32, #tpu.memory_space<vmem>>, vector<1x8x64xf32>
    tpu.vector_store %arg11[%c0_44, %c1_45, %c0_46], %84 {strides = array<i32>} : memref<1x10x64xf32, #tpu.memory_space<vmem>>, vector<1x8x64xf32>,
    %c0_47 = arith.constant 0 : index
    %c0_48 = arith.constant 0 : index
    %c0_49 = arith.constant 0 : index
    %86 = vector.load %arg11[%c0_47, %c0_48, %c0_49] : memref<1x10x64xf32, #tpu.memory_space<vmem>>, vector<1x8x64xf32>
    %c0_50 = arith.constant 0 : index
    %c1_51 = arith.constant 1 : index
    %c0_52 = arith.constant 0 : index
    %87 = vector.load %arg11[%c0_50, %c1_51, %c0_52] : memref<1x10x64xf32, #tpu.memory_space<vmem>>, vector<1x8x64xf32>
    %c0_53 = arith.constant 0 : index
    %c2_54 = arith.constant 2 : index
    %c0_55 = arith.constant 0 : index
    %88 = vector.load %arg11[%c0_53, %c2_54, %c0_55] : memref<1x10x64xf32, #tpu.memory_space<vmem>>, vector<1x8x64xf32>
    %89 = tpu.concatenate %86, %87, %88 in 2 : vector<1x8x64xf32>, vector<1x8x64xf32>, vector<1x8x64xf32> -> vector<1x8x192xf32>
    %90 = vector.shape_cast %89 : vector<1x8x192xf32> to vector<8x192xf32>
    %c0_56 = arith.constant 0 : index
    %c0_57 = arith.constant 0 : index
    %91 = vector.load %arg8[%c0_56, %c0_57] : memref<192x64xf32, #tpu.memory_space<vmem>>, vector<192x64xf32>
    %92 = arith.truncf %90 : vector<8x192xf32> to vector<8x192xbf16>
    %93 = arith.truncf %91 : vector<192x64xf32> to vector<192x64xbf16>
    %cst_58 = arith.constant dense<0.000000e+00> : vector<8x64xf32>
    %94 = tpu.matmul %92, %93, %cst_58 {dimension_numbers = #tpu.dot_dimension_numbers<[1], [0], [0], [1], [0, 0, 1, 1], [], []>} : vector<8x192xbf16>, vector<192x64xbf16>, vector<8x64xf32> -> vector<8x64xf32>
    %c0_59 = arith.constant 0 : index
    %c0_60 = arith.constant 0 : index
    %95 = vector.load %arg9[%c0_59, %c0_60] : memref<1x64xf32, #tpu.memory_space<vmem>>, vector<1x64xf32>
    %96 = vector.broadcast %95 : vector<1x64xf32> to vector<8x64xf32>
    %97 = arith.addf %94, %96 : vector<8x64xf32>
    %98 = vector.shape_cast %97 : vector<8x64xf32> to vector<1x8x64xf32>
    %99 = arith.addf %98, %2 : vector<1x8x64xf32>
    %c0_61 = arith.constant 0 : index
    %c0_62 = arith.constant 0 : index
    %c0_63 = arith.constant 0 : index
    %100 = vector.load %arg10[%c0_61, %c0_62, %c0_63] : memref<1x8x64xf32, #tpu.memory_space<vmem>>, vector<1x8x64xf32>
    tpu.vector_store %arg10[%c0_61, %c0_62, %c0_63], %99 {strides = array<i32>} : memref<1x8x64xf32, #tpu.memory_space<vmem>>, vector<1x8x64xf32>,
    return
  }
  func.func @transform_0(%arg0: i32) -> (i32, i32, i32) {
    %c0_i32 = arith.constant 0 : i32
    %c0_i32_0 = arith.constant 0 : i32
    %c0_i32_1 = arith.constant 0 : i32
    return %arg0, %c0_i32, %c0_i32_0 : i32, i32, i32
  }
  func.func @transform_1(%arg0: i32) -> (i32, i32) {
    %c0_i32 = arith.constant 0 : i32
    %c0_i32_0 = arith.constant 0 : i32
    %c0_i32_1 = arith.constant 0 : i32
    return %c0_i32, %c0_i32_0 : i32, i32
  }
  func.func @transform_2(%arg0: i32) -> (i32, i32) {
    %c0_i32 = arith.constant 0 : i32
    %c0_i32_0 = arith.constant 0 : i32
    %c0_i32_1 = arith.constant 0 : i32
    return %c0_i32, %c0_i32_0 : i32, i32
  }
  func.func @transform_3(%arg0: i32) -> (i32, i32) {
    %c0_i32 = arith.constant 0 : i32
    %c0_i32_0 = arith.constant 0 : i32
    %c0_i32_1 = arith.constant 0 : i32
    return %c0_i32, %c0_i32_0 : i32, i32
  }
  func.func @transform_4(%arg0: i32) -> (i32, i32) {
    %c0_i32 = arith.constant 0 : i32
    %c0_i32_0 = arith.constant 0 : i32
    %c0_i32_1 = arith.constant 0 : i32
    return %c0_i32, %c0_i32_0 : i32, i32
  }
  func.func @transform_5(%arg0: i32) -> (i32, i32) {
    %c0_i32 = arith.constant 0 : i32
    %c0_i32_0 = arith.constant 0 : i32
    %c0_i32_1 = arith.constant 0 : i32
    return %c0_i32, %c0_i32_0 : i32, i32
  }
  func.func @transform_6(%arg0: i32) -> (i32, i32) {
    %c0_i32 = arith.constant 0 : i32
    %c0_i32_0 = arith.constant 0 : i32
    %c0_i32_1 = arith.constant 0 : i32
    return %c0_i32, %c0_i32_0 : i32, i32
  }
  func.func @transform_7(%arg0: i32) -> (i32, i32) {
    %c0_i32 = arith.constant 0 : i32
    %c0_i32_0 = arith.constant 0 : i32
    %c0_i32_1 = arith.constant 0 : i32
    return %c0_i32, %c0_i32_0 : i32, i32
  }
  func.func @transform_8(%arg0: i32) -> (i32, i32) {
    %c0_i32 = arith.constant 0 : i32
    %c0_i32_0 = arith.constant 0 : i32
    %c0_i32_1 = arith.constant 0 : i32
    return %c0_i32, %c0_i32_0 : i32, i32
  }
  func.func @transform_9(%arg0: i32) -> (i32, i32, i32) {
    %c0_i32 = arith.constant 0 : i32
    %c0_i32_0 = arith.constant 0 : i32
    %c0_i32_1 = arith.constant 0 : i32
    return %arg0, %c0_i32, %c0_i32_0 : i32, i32, i32
  }
}

module attributes {stable_mosaic.version = 11 : i64} {
  func.func @_dense_kernel(%arg0: i32, %arg1: memref<1x8x64xf32, #tpu.memory_space<vmem>>, %arg2: memref<64x32xf32, #tpu.memory_space<vmem>>, %arg3: memref<1x32xf32, #tpu.memory_space<vmem>>, %arg4: memref<1x8x32xf32, #tpu.memory_space<vmem>>) attributes {dimension_semantics = [#tpu.dimension_semantics<parallel>], iteration_bounds = array<i64: 2>, scalar_prefetch = 0 : i64, scratch_operands = 0 : i64, tpu.core_type = #tpu.core_type<tc>, window_params = [{transform_indices = @transform_0, window_bounds = array<i64: 1, 8, 64>}, {pipeline_mode = #tpu.pipeline_mode<synchronous>, transform_indices = @transform_1, window_bounds = array<i64: 64, 32>}, {pipeline_mode = #tpu.pipeline_mode<synchronous>, transform_indices = @transform_2, window_bounds = array<i64: 1, 32>}, {transform_indices = @transform_3, window_bounds = array<i64: 1, 8, 32>}]} {
    %c0 = arith.constant 0 : index
    %c0_0 = arith.constant 0 : index
    %c0_1 = arith.constant 0 : index
    %0 = vector.load %arg1[%c0, %c0_0, %c0_1] : memref<1x8x64xf32, #tpu.memory_space<vmem>>, vector<1x8x64xf32>
    %1 = vector.shape_cast %0 : vector<1x8x64xf32> to vector<8x64xf32>
    %c0_2 = arith.constant 0 : index
    %c0_3 = arith.constant 0 : index
    %2 = vector.load %arg2[%c0_2, %c0_3] : memref<64x32xf32, #tpu.memory_space<vmem>>, vector<64x32xf32>
    %3 = arith.truncf %1 : vector<8x64xf32> to vector<8x64xbf16>
    %4 = arith.truncf %2 : vector<64x32xf32> to vector<64x32xbf16>
    %cst = arith.constant dense<0.000000e+00> : vector<8x32xf32>
    %5 = tpu.matmul %3, %4, %cst {dimension_numbers = #tpu.dot_dimension_numbers<[1], [0], [0], [1], [0, 0, 1, 1], [], []>} : vector<8x64xbf16>, vector<64x32xbf16>, vector<8x32xf32> -> vector<8x32xf32>
    %c0_4 = arith.constant 0 : index
    %c0_5 = arith.constant 0 : index
    %6 = vector.load %arg3[%c0_4, %c0_5] : memref<1x32xf32, #tpu.memory_space<vmem>>, vector<1x32xf32>
    %7 = vector.broadcast %6 : vector<1x32xf32> to vector<8x32xf32>
    %8 = arith.addf %5, %7 : vector<8x32xf32>
    %9 = vector.shape_cast %8 : vector<8x32xf32> to vector<1x8x32xf32>
    %c0_6 = arith.constant 0 : index
    %c0_7 = arith.constant 0 : index
    %c0_8 = arith.constant 0 : index
    %10 = vector.load %arg4[%c0_6, %c0_7, %c0_8] : memref<1x8x32xf32, #tpu.memory_space<vmem>>, vector<1x8x32xf32>
    tpu.vector_store %arg4[%c0_6, %c0_7, %c0_8], %9 {strides = array<i32>} : memref<1x8x32xf32, #tpu.memory_space<vmem>>, vector<1x8x32xf32>,
    return
  }
  func.func @transform_0(%arg0: i32) -> (i32, i32, i32) {
    %c0_i32 = arith.constant 0 : i32
    %c0_i32_0 = arith.constant 0 : i32
    %c0_i32_1 = arith.constant 0 : i32
    return %arg0, %c0_i32, %c0_i32_0 : i32, i32, i32
  }
  func.func @transform_1(%arg0: i32) -> (i32, i32) {
    %c0_i32 = arith.constant 0 : i32
    %c0_i32_0 = arith.constant 0 : i32
    %c0_i32_1 = arith.constant 0 : i32
    return %c0_i32, %c0_i32_0 : i32, i32
  }
  func.func @transform_2(%arg0: i32) -> (i32, i32) {
    %c0_i32 = arith.constant 0 : i32
    %c0_i32_0 = arith.constant 0 : i32
    %c0_i32_1 = arith.constant 0 : i32
    return %c0_i32, %c0_i32_0 : i32, i32
  }
  func.func @transform_3(%arg0: i32) -> (i32, i32, i32) {
    %c0_i32 = arith.constant 0 : i32
    %c0_i32_0 = arith.constant 0 : i32
    %c0_i32_1 = arith.constant 0 : i32
    return %arg0, %c0_i32, %c0_i32_0 : i32, i32, i32
  }
}

module attributes {stable_mosaic.version = 11 : i64} {
  func.func @_bigru_kernel(%arg0: i32, %arg1: memref<8x8x32xf32, #tpu.memory_space<vmem>>, %arg2: memref<1x32xf32, #tpu.memory_space<vmem>>, %arg3: memref<1x32xf32, #tpu.memory_space<vmem>>, %arg4: memref<32x192xf32, #tpu.memory_space<vmem>>, %arg5: memref<1x192xf32, #tpu.memory_space<vmem>>, %arg6: memref<64x192xf32, #tpu.memory_space<vmem>>, %arg7: memref<1x192xf32, #tpu.memory_space<vmem>>, %arg8: memref<8x8x64xf32, #tpu.memory_space<vmem>>, %arg9: memref<8x8x96xf32, #tpu.memory_space<vmem>>, %arg10: memref<8x8x96xf32, #tpu.memory_space<vmem>>) attributes {dimension_semantics = [#tpu.dimension_semantics<parallel>], iteration_bounds = array<i64: 1>, scalar_prefetch = 0 : i64, scratch_operands = 2 : i64, tpu.core_type = #tpu.core_type<tc>, window_params = [{transform_indices = @transform_0, window_bounds = array<i64: 8, 8, 32>}, {pipeline_mode = #tpu.pipeline_mode<synchronous>, transform_indices = @transform_1, window_bounds = array<i64: 1, 32>}, {pipeline_mode = #tpu.pipeline_mode<synchronous>, transform_indices = @transform_2, window_bounds = array<i64: 1, 32>}, {pipeline_mode = #tpu.pipeline_mode<synchronous>, transform_indices = @transform_3, window_bounds = array<i64: 32, 192>}, {pipeline_mode = #tpu.pipeline_mode<synchronous>, transform_indices = @transform_4, window_bounds = array<i64: 1, 192>}, {pipeline_mode = #tpu.pipeline_mode<synchronous>, transform_indices = @transform_5, window_bounds = array<i64: 64, 192>}, {pipeline_mode = #tpu.pipeline_mode<synchronous>, transform_indices = @transform_6, window_bounds = array<i64: 1, 192>}, {transform_indices = @transform_7, window_bounds = array<i64: 8, 8, 64>}]} {
    %c0 = arith.constant 0 : index
    %c0_0 = arith.constant 0 : index
    %c0_1 = arith.constant 0 : index
    %0 = vector.load %arg1[%c0, %c0_0, %c0_1] : memref<8x8x32xf32, #tpu.memory_space<vmem>>, vector<8x8x32xf32>
    %c0_2 = arith.constant 0 : index
    %c0_3 = arith.constant 0 : index
    %1 = vector.load %arg2[%c0_2, %c0_3] : memref<1x32xf32, #tpu.memory_space<vmem>>, vector<1x32xf32>
    %c0_4 = arith.constant 0 : index
    %c0_5 = arith.constant 0 : index
    %2 = vector.load %arg3[%c0_4, %c0_5] : memref<1x32xf32, #tpu.memory_space<vmem>>, vector<1x32xf32>
    %cst = arith.constant dense<0.000000e+00> : vector<8x8xf32>
    %3 = vector.multi_reduction <add>, %0, %cst [2] : vector<8x8x32xf32> to vector<8x8xf32>
    %4 = vector.shape_cast %3 : vector<8x8xf32> to vector<8x8x1xf32>
    %cst_6 = arith.constant 3.200000e+01 : f32
    %5 = vector.broadcast %cst_6 : f32 to vector<8x8x1xf32>
    %6 = arith.divf %4, %5 : vector<8x8x1xf32>
    %7 = vector.broadcast %6 : vector<8x8x1xf32> to vector<8x8x32xf32>
    %8 = arith.subf %0, %7 : vector<8x8x32xf32>
    %9 = arith.mulf %8, %8 : vector<8x8x32xf32>
    %cst_7 = arith.constant dense<0.000000e+00> : vector<8x8xf32>
    %10 = vector.multi_reduction <add>, %9, %cst_7 [2] : vector<8x8x32xf32> to vector<8x8xf32>
    %11 = vector.shape_cast %10 : vector<8x8xf32> to vector<8x8x1xf32>
    %cst_8 = arith.constant 3.200000e+01 : f32
    %12 = vector.broadcast %cst_8 : f32 to vector<8x8x1xf32>
    %13 = arith.divf %11, %12 : vector<8x8x1xf32>
    %14 = vector.broadcast %6 : vector<8x8x1xf32> to vector<8x8x32xf32>
    %15 = arith.subf %0, %14 : vector<8x8x32xf32>
    %cst_9 = arith.constant 9.99999974E-6 : f32
    %16 = vector.broadcast %cst_9 : f32 to vector<8x8x1xf32>
    %17 = arith.addf %13, %16 : vector<8x8x1xf32>
    %18 = math.rsqrt %17 : vector<8x8x1xf32>
    %19 = vector.broadcast %18 : vector<8x8x1xf32> to vector<8x8x32xf32>
    %20 = arith.mulf %15, %19 : vector<8x8x32xf32>
    %21 = vector.shape_cast %1 : vector<1x32xf32> to vector<1x1x32xf32>
    %22 = vector.broadcast %21 : vector<1x1x32xf32> to vector<8x8x32xf32>
    %23 = arith.mulf %20, %22 : vector<8x8x32xf32>
    %24 = vector.shape_cast %2 : vector<1x32xf32> to vector<1x1x32xf32>
    %25 = vector.broadcast %24 : vector<1x1x32xf32> to vector<8x8x32xf32>
    %26 = arith.addf %23, %25 : vector<8x8x32xf32>
    %cst_10 = arith.constant 5.000000e-01 : f32
    %27 = vector.broadcast %cst_10 : f32 to vector<8x8x32xf32>
    %28 = arith.mulf %27, %26 : vector<8x8x32xf32>
    %cst_11 = arith.constant 0.707106769 : f32
    %29 = vector.broadcast %cst_11 : f32 to vector<8x8x32xf32>
    %30 = arith.mulf %26, %29 : vector<8x8x32xf32>
    %31 = math.erf %30 : vector<8x8x32xf32>
    %cst_12 = arith.constant 1.000000e+00 : f32
    %32 = vector.broadcast %cst_12 : f32 to vector<8x8x32xf32>
    %33 = arith.addf %32, %31 : vector<8x8x32xf32>
    %34 = arith.mulf %28, %33 : vector<8x8x32xf32>
    %35 = vector.shape_cast %34 : vector<8x8x32xf32> to vector<64x32xf32>
    %c0_13 = arith.constant 0 : index
    %c0_14 = arith.constant 0 : index
    %36 = vector.load %arg4[%c0_13, %c0_14] : memref<32x192xf32, #tpu.memory_space<vmem>>, vector<32x192xf32>
    %37 = arith.truncf %35 : vector<64x32xf32> to vector<64x32xbf16>
    %38 = arith.truncf %36 : vector<32x192xf32> to vector<32x192xbf16>
    %cst_15 = arith.constant dense<0.000000e+00> : vector<64x192xf32>
    %39 = tpu.matmul %37, %38, %cst_15 {dimension_numbers = #tpu.dot_dimension_numbers<[1], [0], [0], [1], [0, 0, 1, 1], [], []>} : vector<64x32xbf16>, vector<32x192xbf16>, vector<64x192xf32> -> vector<64x192xf32>
    %c0_16 = arith.constant 0 : index
    %c0_17 = arith.constant 0 : index
    %40 = vector.load %arg5[%c0_16, %c0_17] : memref<1x192xf32, #tpu.memory_space<vmem>>, vector<1x192xf32>
    %41 = vector.broadcast %40 : vector<1x192xf32> to vector<64x192xf32>
    %42 = arith.addf %39, %41 : vector<64x192xf32>
    %43 = vector.shape_cast %42 : vector<64x192xf32> to vector<8x8x192xf32>
    %44 = vector.extract_strided_slice %43 {offsets = [0, 0, 0], sizes = [8, 8, 96], strides = [1, 1, 1]} : vector<8x8x192xf32> to vector<8x8x96xf32>
    %c0_18 = arith.constant 0 : index
    %c0_19 = arith.constant 0 : index
    %c0_20 = arith.constant 0 : index
    %45 = vector.load %arg9[%c0_18, %c0_19, %c0_20] : memref<8x8x96xf32, #tpu.memory_space<vmem>>, vector<8x8x96xf32>
    tpu.vector_store %arg9[%c0_18, %c0_19, %c0_20], %44 {strides = array<i32>} : memref<8x8x96xf32, #tpu.memory_space<vmem>>, vector<8x8x96xf32>,
    %46 = vector.extract_strided_slice %43 {offsets = [0, 0, 96], sizes = [8, 8, 96], strides = [1, 1, 1]} : vector<8x8x192xf32> to vector<8x8x96xf32>
    %c0_21 = arith.constant 0 : index
    %c0_22 = arith.constant 0 : index
    %c0_23 = arith.constant 0 : index
    %47 = vector.load %arg10[%c0_21, %c0_22, %c0_23] : memref<8x8x96xf32, #tpu.memory_space<vmem>>, vector<8x8x96xf32>
    tpu.vector_store %arg10[%c0_21, %c0_22, %c0_23], %46 {strides = array<i32>} : memref<8x8x96xf32, #tpu.memory_space<vmem>>, vector<8x8x96xf32>,
    %c0_24 = arith.constant 0 : index
    %c0_25 = arith.constant 0 : index
    %48 = vector.load %arg6[%c0_24, %c0_25] : memref<64x192xf32, #tpu.memory_space<vmem>>, vector<64x192xf32>
    %49 = arith.truncf %48 : vector<64x192xf32> to vector<64x192xbf16>
    %c0_26 = arith.constant 0 : index
    %c0_27 = arith.constant 0 : index
    %50 = vector.load %arg7[%c0_26, %c0_27] : memref<1x192xf32, #tpu.memory_space<vmem>>, vector<1x192xf32>
    %cst_28 = arith.constant 0.000000e+00 : f32
    %51 = vector.broadcast %cst_28 : f32 to vector<8x32xf32>
    %c0_i32 = arith.constant 0 : i32
    %c7_i32 = arith.constant 7 : i32
    %52 = arith.subi %c7_i32, %c0_i32 : i32
    %53 = arith.index_cast %c0_i32 : i32 to index
    %c0_29 = arith.constant 0 : index
    %c0_30 = arith.constant 0 : index
    %54 = vector.load %arg9[%53, %c0_29, %c0_30] : memref<8x8x96xf32, #tpu.memory_space<vmem>>, vector<1x8x96xf32>
    %55 = vector.shape_cast %54 : vector<1x8x96xf32> to vector<8x96xf32>
    %56 = arith.index_cast %52 : i32 to index
    %c0_31 = arith.constant 0 : index
    %c0_32 = arith.constant 0 : index
    %57 = vector.load %arg10[%56, %c0_31, %c0_32] : memref<8x8x96xf32, #tpu.memory_space<vmem>>, vector<1x8x96xf32>
    %58 = vector.shape_cast %57 : vector<1x8x96xf32> to vector<8x96xf32>
    %59 = tpu.concatenate %51, %51 in 1 : vector<8x32xf32>, vector<8x32xf32> -> vector<8x64xf32>
    %60 = arith.truncf %59 : vector<8x64xf32> to vector<8x64xbf16>
    %cst_33 = arith.constant dense<0.000000e+00> : vector<8x192xf32>
    %61 = tpu.matmul %60, %49, %cst_33 {dimension_numbers = #tpu.dot_dimension_numbers<[1], [0], [0], [1], [0, 0, 1, 1], [], []>} : vector<8x64xbf16>, vector<64x192xbf16>, vector<8x192xf32> -> vector<8x192xf32>
    %62 = vector.broadcast %50 : vector<1x192xf32> to vector<8x192xf32>
    %63 = arith.addf %61, %62 : vector<8x192xf32>
    %64 = vector.extract_strided_slice %63 {offsets = [0, 0], sizes = [8, 96], strides = [1, 1]} : vector<8x192xf32> to vector<8x96xf32>
    %65 = vector.extract_strided_slice %55 {offsets = [0, 0], sizes = [8, 32], strides = [1, 1]} : vector<8x96xf32> to vector<8x32xf32>
    %66 = vector.extract_strided_slice %64 {offsets = [0, 0], sizes = [8, 32], strides = [1, 1]} : vector<8x96xf32> to vector<8x32xf32>
    %67 = arith.addf %65, %66 : vector<8x32xf32>
    %68 = arith.negf %67 : vector<8x32xf32>
    %69 = math.exp %68 : vector<8x32xf32>
    %cst_34 = arith.constant 1.000000e+00 : f32
    %70 = vector.broadcast %cst_34 : f32 to vector<8x32xf32>
    %71 = arith.addf %70, %69 : vector<8x32xf32>
    %72 = arith.divf %70, %71 : vector<8x32xf32>
    %73 = vector.extract_strided_slice %55 {offsets = [0, 32], sizes = [8, 32], strides = [1, 1]} : vector<8x96xf32> to vector<8x32xf32>
    %74 = vector.extract_strided_slice %64 {offsets = [0, 32], sizes = [8, 32], strides = [1, 1]} : vector<8x96xf32> to vector<8x32xf32>
    %75 = arith.addf %73, %74 : vector<8x32xf32>
    %76 = arith.negf %75 : vector<8x32xf32>
    %77 = math.exp %76 : vector<8x32xf32>
    %cst_35 = arith.constant 1.000000e+00 : f32
    %78 = vector.broadcast %cst_35 : f32 to vector<8x32xf32>
    %79 = arith.addf %78, %77 : vector<8x32xf32>
    %80 = arith.divf %78, %79 : vector<8x32xf32>
    %81 = vector.extract_strided_slice %55 {offsets = [0, 64], sizes = [8, 32], strides = [1, 1]} : vector<8x96xf32> to vector<8x32xf32>
    %82 = vector.extract_strided_slice %64 {offsets = [0, 64], sizes = [8, 32], strides = [1, 1]} : vector<8x96xf32> to vector<8x32xf32>
    %83 = arith.mulf %72, %82 : vector<8x32xf32>
    %84 = arith.addf %81, %83 : vector<8x32xf32>
    %85 = math.tanh %84 : vector<8x32xf32>
    %cst_36 = arith.constant 1.000000e+00 : f32
    %86 = vector.broadcast %cst_36 : f32 to vector<8x32xf32>
    %87 = arith.subf %86, %80 : vector<8x32xf32>
    %88 = arith.mulf %87, %85 : vector<8x32xf32>
    %89 = arith.mulf %80, %51 : vector<8x32xf32>
    %90 = arith.addf %88, %89 : vector<8x32xf32>
    %91 = vector.extract_strided_slice %63 {offsets = [0, 96], sizes = [8, 96], strides = [1, 1]} : vector<8x192xf32> to vector<8x96xf32>
    %92 = vector.extract_strided_slice %58 {offsets = [0, 0], sizes = [8, 32], strides = [1, 1]} : vector<8x96xf32> to vector<8x32xf32>
    %93 = vector.extract_strided_slice %91 {offsets = [0, 0], sizes = [8, 32], strides = [1, 1]} : vector<8x96xf32> to vector<8x32xf32>
    %94 = arith.addf %92, %93 : vector<8x32xf32>
    %95 = arith.negf %94 : vector<8x32xf32>
    %96 = math.exp %95 : vector<8x32xf32>
    %cst_37 = arith.constant 1.000000e+00 : f32
    %97 = vector.broadcast %cst_37 : f32 to vector<8x32xf32>
    %98 = arith.addf %97, %96 : vector<8x32xf32>
    %99 = arith.divf %97, %98 : vector<8x32xf32>
    %100 = vector.extract_strided_slice %58 {offsets = [0, 32], sizes = [8, 32], strides = [1, 1]} : vector<8x96xf32> to vector<8x32xf32>
    %101 = vector.extract_strided_slice %91 {offsets = [0, 32], sizes = [8, 32], strides = [1, 1]} : vector<8x96xf32> to vector<8x32xf32>
    %102 = arith.addf %100, %101 : vector<8x32xf32>
    %103 = arith.negf %102 : vector<8x32xf32>
    %104 = math.exp %103 : vector<8x32xf32>
    %cst_38 = arith.constant 1.000000e+00 : f32
    %105 = vector.broadcast %cst_38 : f32 to vector<8x32xf32>
    %106 = arith.addf %105, %104 : vector<8x32xf32>
    %107 = arith.divf %105, %106 : vector<8x32xf32>
    %108 = vector.extract_strided_slice %58 {offsets = [0, 64], sizes = [8, 32], strides = [1, 1]} : vector<8x96xf32> to vector<8x32xf32>
    %109 = vector.extract_strided_slice %91 {offsets = [0, 64], sizes = [8, 32], strides = [1, 1]} : vector<8x96xf32> to vector<8x32xf32>
    %110 = arith.mulf %99, %109 : vector<8x32xf32>
    %111 = arith.addf %108, %110 : vector<8x32xf32>
    %112 = math.tanh %111 : vector<8x32xf32>
    %cst_39 = arith.constant 1.000000e+00 : f32
    %113 = vector.broadcast %cst_39 : f32 to vector<8x32xf32>
    %114 = arith.subf %113, %107 : vector<8x32xf32>
    %115 = arith.mulf %114, %112 : vector<8x32xf32>
    %116 = arith.mulf %107, %51 : vector<8x32xf32>
    %117 = arith.addf %115, %116 : vector<8x32xf32>
    %118 = vector.shape_cast %90 : vector<8x32xf32> to vector<1x8x32xf32>
    %119 = arith.index_cast %c0_i32 : i32 to index
    %c0_40 = arith.constant 0 : index
    %c0_41 = arith.constant 0 : index
    %120 = vector.load %arg8[%119, %c0_40, %c0_41] : memref<8x8x64xf32, #tpu.memory_space<vmem>>, vector<1x8x32xf32>
    tpu.vector_store %arg8[%119, %c0_40, %c0_41], %118 {strides = array<i32>} : memref<8x8x64xf32, #tpu.memory_space<vmem>>, vector<1x8x32xf32>,
    %121 = vector.shape_cast %117 : vector<8x32xf32> to vector<1x8x32xf32>
    %122 = arith.index_cast %52 : i32 to index
    %c0_42 = arith.constant 0 : index
    %c32 = arith.constant 32 : index
    %123 = vector.load %arg8[%122, %c0_42, %c32] : memref<8x8x64xf32, #tpu.memory_space<vmem>>, vector<1x8x32xf32>
    tpu.vector_store %arg8[%122, %c0_42, %c32], %121 {strides = array<i32>} : memref<8x8x64xf32, #tpu.memory_space<vmem>>, vector<1x8x32xf32>,
    %c1_i32 = arith.constant 1 : i32
    %c7_i32_43 = arith.constant 7 : i32
    %124 = arith.subi %c7_i32_43, %c1_i32 : i32
    %125 = arith.index_cast %c1_i32 : i32 to index
    %c0_44 = arith.constant 0 : index
    %c0_45 = arith.constant 0 : index
    %126 = vector.load %arg9[%125, %c0_44, %c0_45] : memref<8x8x96xf32, #tpu.memory_space<vmem>>, vector<1x8x96xf32>
    %127 = vector.shape_cast %126 : vector<1x8x96xf32> to vector<8x96xf32>
    %128 = arith.index_cast %124 : i32 to index
    %c0_46 = arith.constant 0 : index
    %c0_47 = arith.constant 0 : index
    %129 = vector.load %arg10[%128, %c0_46, %c0_47] : memref<8x8x96xf32, #tpu.memory_space<vmem>>, vector<1x8x96xf32>
    %130 = vector.shape_cast %129 : vector<1x8x96xf32> to vector<8x96xf32>
    %131 = tpu.concatenate %90, %117 in 1 : vector<8x32xf32>, vector<8x32xf32> -> vector<8x64xf32>
    %132 = arith.truncf %131 : vector<8x64xf32> to vector<8x64xbf16>
    %cst_48 = arith.constant dense<0.000000e+00> : vector<8x192xf32>
    %133 = tpu.matmul %132, %49, %cst_48 {dimension_numbers = #tpu.dot_dimension_numbers<[1], [0], [0], [1], [0, 0, 1, 1], [], []>} : vector<8x64xbf16>, vector<64x192xbf16>, vector<8x192xf32> -> vector<8x192xf32>
    %134 = vector.broadcast %50 : vector<1x192xf32> to vector<8x192xf32>
    %135 = arith.addf %133, %134 : vector<8x192xf32>
    %136 = vector.extract_strided_slice %135 {offsets = [0, 0], sizes = [8, 96], strides = [1, 1]} : vector<8x192xf32> to vector<8x96xf32>
    %137 = vector.extract_strided_slice %127 {offsets = [0, 0], sizes = [8, 32], strides = [1, 1]} : vector<8x96xf32> to vector<8x32xf32>
    %138 = vector.extract_strided_slice %136 {offsets = [0, 0], sizes = [8, 32], strides = [1, 1]} : vector<8x96xf32> to vector<8x32xf32>
    %139 = arith.addf %137, %138 : vector<8x32xf32>
    %140 = arith.negf %139 : vector<8x32xf32>
    %141 = math.exp %140 : vector<8x32xf32>
    %cst_49 = arith.constant 1.000000e+00 : f32
    %142 = vector.broadcast %cst_49 : f32 to vector<8x32xf32>
    %143 = arith.addf %142, %141 : vector<8x32xf32>
    %144 = arith.divf %142, %143 : vector<8x32xf32>
    %145 = vector.extract_strided_slice %127 {offsets = [0, 32], sizes = [8, 32], strides = [1, 1]} : vector<8x96xf32> to vector<8x32xf32>
    %146 = vector.extract_strided_slice %136 {offsets = [0, 32], sizes = [8, 32], strides = [1, 1]} : vector<8x96xf32> to vector<8x32xf32>
    %147 = arith.addf %145, %146 : vector<8x32xf32>
    %148 = arith.negf %147 : vector<8x32xf32>
    %149 = math.exp %148 : vector<8x32xf32>
    %cst_50 = arith.constant 1.000000e+00 : f32
    %150 = vector.broadcast %cst_50 : f32 to vector<8x32xf32>
    %151 = arith.addf %150, %149 : vector<8x32xf32>
    %152 = arith.divf %150, %151 : vector<8x32xf32>
    %153 = vector.extract_strided_slice %127 {offsets = [0, 64], sizes = [8, 32], strides = [1, 1]} : vector<8x96xf32> to vector<8x32xf32>
    %154 = vector.extract_strided_slice %136 {offsets = [0, 64], sizes = [8, 32], strides = [1, 1]} : vector<8x96xf32> to vector<8x32xf32>
    %155 = arith.mulf %144, %154 : vector<8x32xf32>
    %156 = arith.addf %153, %155 : vector<8x32xf32>
    %157 = math.tanh %156 : vector<8x32xf32>
    %cst_51 = arith.constant 1.000000e+00 : f32
    %158 = vector.broadcast %cst_51 : f32 to vector<8x32xf32>
    %159 = arith.subf %158, %152 : vector<8x32xf32>
    %160 = arith.mulf %159, %157 : vector<8x32xf32>
    %161 = arith.mulf %152, %90 : vector<8x32xf32>
    %162 = arith.addf %160, %161 : vector<8x32xf32>
    %163 = vector.extract_strided_slice %135 {offsets = [0, 96], sizes = [8, 96], strides = [1, 1]} : vector<8x192xf32> to vector<8x96xf32>
    %164 = vector.extract_strided_slice %130 {offsets = [0, 0], sizes = [8, 32], strides = [1, 1]} : vector<8x96xf32> to vector<8x32xf32>
    %165 = vector.extract_strided_slice %163 {offsets = [0, 0], sizes = [8, 32], strides = [1, 1]} : vector<8x96xf32> to vector<8x32xf32>
    %166 = arith.addf %164, %165 : vector<8x32xf32>
    %167 = arith.negf %166 : vector<8x32xf32>
    %168 = math.exp %167 : vector<8x32xf32>
    %cst_52 = arith.constant 1.000000e+00 : f32
    %169 = vector.broadcast %cst_52 : f32 to vector<8x32xf32>
    %170 = arith.addf %169, %168 : vector<8x32xf32>
    %171 = arith.divf %169, %170 : vector<8x32xf32>
    %172 = vector.extract_strided_slice %130 {offsets = [0, 32], sizes = [8, 32], strides = [1, 1]} : vector<8x96xf32> to vector<8x32xf32>
    %173 = vector.extract_strided_slice %163 {offsets = [0, 32], sizes = [8, 32], strides = [1, 1]} : vector<8x96xf32> to vector<8x32xf32>
    %174 = arith.addf %172, %173 : vector<8x32xf32>
    %175 = arith.negf %174 : vector<8x32xf32>
    %176 = math.exp %175 : vector<8x32xf32>
    %cst_53 = arith.constant 1.000000e+00 : f32
    %177 = vector.broadcast %cst_53 : f32 to vector<8x32xf32>
    %178 = arith.addf %177, %176 : vector<8x32xf32>
    %179 = arith.divf %177, %178 : vector<8x32xf32>
    %180 = vector.extract_strided_slice %130 {offsets = [0, 64], sizes = [8, 32], strides = [1, 1]} : vector<8x96xf32> to vector<8x32xf32>
    %181 = vector.extract_strided_slice %163 {offsets = [0, 64], sizes = [8, 32], strides = [1, 1]} : vector<8x96xf32> to vector<8x32xf32>
    %182 = arith.mulf %171, %181 : vector<8x32xf32>
    %183 = arith.addf %180, %182 : vector<8x32xf32>
    %184 = math.tanh %183 : vector<8x32xf32>
    %cst_54 = arith.constant 1.000000e+00 : f32
    %185 = vector.broadcast %cst_54 : f32 to vector<8x32xf32>
    %186 = arith.subf %185, %179 : vector<8x32xf32>
    %187 = arith.mulf %186, %184 : vector<8x32xf32>
    %188 = arith.mulf %179, %117 : vector<8x32xf32>
    %189 = arith.addf %187, %188 : vector<8x32xf32>
    %190 = vector.shape_cast %162 : vector<8x32xf32> to vector<1x8x32xf32>
    %191 = arith.index_cast %c1_i32 : i32 to index
    %c0_55 = arith.constant 0 : index
    %c0_56 = arith.constant 0 : index
    %192 = vector.load %arg8[%191, %c0_55, %c0_56] : memref<8x8x64xf32, #tpu.memory_space<vmem>>, vector<1x8x32xf32>
    tpu.vector_store %arg8[%191, %c0_55, %c0_56], %190 {strides = array<i32>} : memref<8x8x64xf32, #tpu.memory_space<vmem>>, vector<1x8x32xf32>,
    %193 = vector.shape_cast %189 : vector<8x32xf32> to vector<1x8x32xf32>
    %194 = arith.index_cast %124 : i32 to index
    %c0_57 = arith.constant 0 : index
    %c32_58 = arith.constant 32 : index
    %195 = vector.load %arg8[%194, %c0_57, %c32_58] : memref<8x8x64xf32, #tpu.memory_space<vmem>>, vector<1x8x32xf32>
    tpu.vector_store %arg8[%194, %c0_57, %c32_58], %193 {strides = array<i32>} : memref<8x8x64xf32, #tpu.memory_space<vmem>>, vector<1x8x32xf32>,
    %c2_i32 = arith.constant 2 : i32
    %c7_i32_59 = arith.constant 7 : i32
    %196 = arith.subi %c7_i32_59, %c2_i32 : i32
    %197 = arith.index_cast %c2_i32 : i32 to index
    %c0_60 = arith.constant 0 : index
    %c0_61 = arith.constant 0 : index
    %198 = vector.load %arg9[%197, %c0_60, %c0_61] : memref<8x8x96xf32, #tpu.memory_space<vmem>>, vector<1x8x96xf32>
    %199 = vector.shape_cast %198 : vector<1x8x96xf32> to vector<8x96xf32>
    %200 = arith.index_cast %196 : i32 to index
    %c0_62 = arith.constant 0 : index
    %c0_63 = arith.constant 0 : index
    %201 = vector.load %arg10[%200, %c0_62, %c0_63] : memref<8x8x96xf32, #tpu.memory_space<vmem>>, vector<1x8x96xf32>
    %202 = vector.shape_cast %201 : vector<1x8x96xf32> to vector<8x96xf32>
    %203 = tpu.concatenate %162, %189 in 1 : vector<8x32xf32>, vector<8x32xf32> -> vector<8x64xf32>
    %204 = arith.truncf %203 : vector<8x64xf32> to vector<8x64xbf16>
    %cst_64 = arith.constant dense<0.000000e+00> : vector<8x192xf32>
    %205 = tpu.matmul %204, %49, %cst_64 {dimension_numbers = #tpu.dot_dimension_numbers<[1], [0], [0], [1], [0, 0, 1, 1], [], []>} : vector<8x64xbf16>, vector<64x192xbf16>, vector<8x192xf32> -> vector<8x192xf32>
    %206 = vector.broadcast %50 : vector<1x192xf32> to vector<8x192xf32>
    %207 = arith.addf %205, %206 : vector<8x192xf32>
    %208 = vector.extract_strided_slice %207 {offsets = [0, 0], sizes = [8, 96], strides = [1, 1]} : vector<8x192xf32> to vector<8x96xf32>
    %209 = vector.extract_strided_slice %199 {offsets = [0, 0], sizes = [8, 32], strides = [1, 1]} : vector<8x96xf32> to vector<8x32xf32>
    %210 = vector.extract_strided_slice %208 {offsets = [0, 0], sizes = [8, 32], strides = [1, 1]} : vector<8x96xf32> to vector<8x32xf32>
    %211 = arith.addf %209, %210 : vector<8x32xf32>
    %212 = arith.negf %211 : vector<8x32xf32>
    %213 = math.exp %212 : vector<8x32xf32>
    %cst_65 = arith.constant 1.000000e+00 : f32
    %214 = vector.broadcast %cst_65 : f32 to vector<8x32xf32>
    %215 = arith.addf %214, %213 : vector<8x32xf32>
    %216 = arith.divf %214, %215 : vector<8x32xf32>
    %217 = vector.extract_strided_slice %199 {offsets = [0, 32], sizes = [8, 32], strides = [1, 1]} : vector<8x96xf32> to vector<8x32xf32>
    %218 = vector.extract_strided_slice %208 {offsets = [0, 32], sizes = [8, 32], strides = [1, 1]} : vector<8x96xf32> to vector<8x32xf32>
    %219 = arith.addf %217, %218 : vector<8x32xf32>
    %220 = arith.negf %219 : vector<8x32xf32>
    %221 = math.exp %220 : vector<8x32xf32>
    %cst_66 = arith.constant 1.000000e+00 : f32
    %222 = vector.broadcast %cst_66 : f32 to vector<8x32xf32>
    %223 = arith.addf %222, %221 : vector<8x32xf32>
    %224 = arith.divf %222, %223 : vector<8x32xf32>
    %225 = vector.extract_strided_slice %199 {offsets = [0, 64], sizes = [8, 32], strides = [1, 1]} : vector<8x96xf32> to vector<8x32xf32>
    %226 = vector.extract_strided_slice %208 {offsets = [0, 64], sizes = [8, 32], strides = [1, 1]} : vector<8x96xf32> to vector<8x32xf32>
    %227 = arith.mulf %216, %226 : vector<8x32xf32>
    %228 = arith.addf %225, %227 : vector<8x32xf32>
    %229 = math.tanh %228 : vector<8x32xf32>
    %cst_67 = arith.constant 1.000000e+00 : f32
    %230 = vector.broadcast %cst_67 : f32 to vector<8x32xf32>
    %231 = arith.subf %230, %224 : vector<8x32xf32>
    %232 = arith.mulf %231, %229 : vector<8x32xf32>
    %233 = arith.mulf %224, %162 : vector<8x32xf32>
    %234 = arith.addf %232, %233 : vector<8x32xf32>
    %235 = vector.extract_strided_slice %207 {offsets = [0, 96], sizes = [8, 96], strides = [1, 1]} : vector<8x192xf32> to vector<8x96xf32>
    %236 = vector.extract_strided_slice %202 {offsets = [0, 0], sizes = [8, 32], strides = [1, 1]} : vector<8x96xf32> to vector<8x32xf32>
    %237 = vector.extract_strided_slice %235 {offsets = [0, 0], sizes = [8, 32], strides = [1, 1]} : vector<8x96xf32> to vector<8x32xf32>
    %238 = arith.addf %236, %237 : vector<8x32xf32>
    %239 = arith.negf %238 : vector<8x32xf32>
    %240 = math.exp %239 : vector<8x32xf32>
    %cst_68 = arith.constant 1.000000e+00 : f32
    %241 = vector.broadcast %cst_68 : f32 to vector<8x32xf32>
    %242 = arith.addf %241, %240 : vector<8x32xf32>
    %243 = arith.divf %241, %242 : vector<8x32xf32>
    %244 = vector.extract_strided_slice %202 {offsets = [0, 32], sizes = [8, 32], strides = [1, 1]} : vector<8x96xf32> to vector<8x32xf32>
    %245 = vector.extract_strided_slice %235 {offsets = [0, 32], sizes = [8, 32], strides = [1, 1]} : vector<8x96xf32> to vector<8x32xf32>
    %246 = arith.addf %244, %245 : vector<8x32xf32>
    %247 = arith.negf %246 : vector<8x32xf32>
    %248 = math.exp %247 : vector<8x32xf32>
    %cst_69 = arith.constant 1.000000e+00 : f32
    %249 = vector.broadcast %cst_69 : f32 to vector<8x32xf32>
    %250 = arith.addf %249, %248 : vector<8x32xf32>
    %251 = arith.divf %249, %250 : vector<8x32xf32>
    %252 = vector.extract_strided_slice %202 {offsets = [0, 64], sizes = [8, 32], strides = [1, 1]} : vector<8x96xf32> to vector<8x32xf32>
    %253 = vector.extract_strided_slice %235 {offsets = [0, 64], sizes = [8, 32], strides = [1, 1]} : vector<8x96xf32> to vector<8x32xf32>
    %254 = arith.mulf %243, %253 : vector<8x32xf32>
    %255 = arith.addf %252, %254 : vector<8x32xf32>
    %256 = math.tanh %255 : vector<8x32xf32>
    %cst_70 = arith.constant 1.000000e+00 : f32
    %257 = vector.broadcast %cst_70 : f32 to vector<8x32xf32>
    %258 = arith.subf %257, %251 : vector<8x32xf32>
    %259 = arith.mulf %258, %256 : vector<8x32xf32>
    %260 = arith.mulf %251, %189 : vector<8x32xf32>
    %261 = arith.addf %259, %260 : vector<8x32xf32>
    %262 = vector.shape_cast %234 : vector<8x32xf32> to vector<1x8x32xf32>
    %263 = arith.index_cast %c2_i32 : i32 to index
    %c0_71 = arith.constant 0 : index
    %c0_72 = arith.constant 0 : index
    %264 = vector.load %arg8[%263, %c0_71, %c0_72] : memref<8x8x64xf32, #tpu.memory_space<vmem>>, vector<1x8x32xf32>
    tpu.vector_store %arg8[%263, %c0_71, %c0_72], %262 {strides = array<i32>} : memref<8x8x64xf32, #tpu.memory_space<vmem>>, vector<1x8x32xf32>,
    %265 = vector.shape_cast %261 : vector<8x32xf32> to vector<1x8x32xf32>
    %266 = arith.index_cast %196 : i32 to index
    %c0_73 = arith.constant 0 : index
    %c32_74 = arith.constant 32 : index
    %267 = vector.load %arg8[%266, %c0_73, %c32_74] : memref<8x8x64xf32, #tpu.memory_space<vmem>>, vector<1x8x32xf32>
    tpu.vector_store %arg8[%266, %c0_73, %c32_74], %265 {strides = array<i32>} : memref<8x8x64xf32, #tpu.memory_space<vmem>>, vector<1x8x32xf32>,
    %c3_i32 = arith.constant 3 : i32
    %c7_i32_75 = arith.constant 7 : i32
    %268 = arith.subi %c7_i32_75, %c3_i32 : i32
    %269 = arith.index_cast %c3_i32 : i32 to index
    %c0_76 = arith.constant 0 : index
    %c0_77 = arith.constant 0 : index
    %270 = vector.load %arg9[%269, %c0_76, %c0_77] : memref<8x8x96xf32, #tpu.memory_space<vmem>>, vector<1x8x96xf32>
    %271 = vector.shape_cast %270 : vector<1x8x96xf32> to vector<8x96xf32>
    %272 = arith.index_cast %268 : i32 to index
    %c0_78 = arith.constant 0 : index
    %c0_79 = arith.constant 0 : index
    %273 = vector.load %arg10[%272, %c0_78, %c0_79] : memref<8x8x96xf32, #tpu.memory_space<vmem>>, vector<1x8x96xf32>
    %274 = vector.shape_cast %273 : vector<1x8x96xf32> to vector<8x96xf32>
    %275 = tpu.concatenate %234, %261 in 1 : vector<8x32xf32>, vector<8x32xf32> -> vector<8x64xf32>
    %276 = arith.truncf %275 : vector<8x64xf32> to vector<8x64xbf16>
    %cst_80 = arith.constant dense<0.000000e+00> : vector<8x192xf32>
    %277 = tpu.matmul %276, %49, %cst_80 {dimension_numbers = #tpu.dot_dimension_numbers<[1], [0], [0], [1], [0, 0, 1, 1], [], []>} : vector<8x64xbf16>, vector<64x192xbf16>, vector<8x192xf32> -> vector<8x192xf32>
    %278 = vector.broadcast %50 : vector<1x192xf32> to vector<8x192xf32>
    %279 = arith.addf %277, %278 : vector<8x192xf32>
    %280 = vector.extract_strided_slice %279 {offsets = [0, 0], sizes = [8, 96], strides = [1, 1]} : vector<8x192xf32> to vector<8x96xf32>
    %281 = vector.extract_strided_slice %271 {offsets = [0, 0], sizes = [8, 32], strides = [1, 1]} : vector<8x96xf32> to vector<8x32xf32>
    %282 = vector.extract_strided_slice %280 {offsets = [0, 0], sizes = [8, 32], strides = [1, 1]} : vector<8x96xf32> to vector<8x32xf32>
    %283 = arith.addf %281, %282 : vector<8x32xf32>
    %284 = arith.negf %283 : vector<8x32xf32>
    %285 = math.exp %284 : vector<8x32xf32>
    %cst_81 = arith.constant 1.000000e+00 : f32
    %286 = vector.broadcast %cst_81 : f32 to vector<8x32xf32>
    %287 = arith.addf %286, %285 : vector<8x32xf32>
    %288 = arith.divf %286, %287 : vector<8x32xf32>
    %289 = vector.extract_strided_slice %271 {offsets = [0, 32], sizes = [8, 32], strides = [1, 1]} : vector<8x96xf32> to vector<8x32xf32>
    %290 = vector.extract_strided_slice %280 {offsets = [0, 32], sizes = [8, 32], strides = [1, 1]} : vector<8x96xf32> to vector<8x32xf32>
    %291 = arith.addf %289, %290 : vector<8x32xf32>
    %292 = arith.negf %291 : vector<8x32xf32>
    %293 = math.exp %292 : vector<8x32xf32>
    %cst_82 = arith.constant 1.000000e+00 : f32
    %294 = vector.broadcast %cst_82 : f32 to vector<8x32xf32>
    %295 = arith.addf %294, %293 : vector<8x32xf32>
    %296 = arith.divf %294, %295 : vector<8x32xf32>
    %297 = vector.extract_strided_slice %271 {offsets = [0, 64], sizes = [8, 32], strides = [1, 1]} : vector<8x96xf32> to vector<8x32xf32>
    %298 = vector.extract_strided_slice %280 {offsets = [0, 64], sizes = [8, 32], strides = [1, 1]} : vector<8x96xf32> to vector<8x32xf32>
    %299 = arith.mulf %288, %298 : vector<8x32xf32>
    %300 = arith.addf %297, %299 : vector<8x32xf32>
    %301 = math.tanh %300 : vector<8x32xf32>
    %cst_83 = arith.constant 1.000000e+00 : f32
    %302 = vector.broadcast %cst_83 : f32 to vector<8x32xf32>
    %303 = arith.subf %302, %296 : vector<8x32xf32>
    %304 = arith.mulf %303, %301 : vector<8x32xf32>
    %305 = arith.mulf %296, %234 : vector<8x32xf32>
    %306 = arith.addf %304, %305 : vector<8x32xf32>
    %307 = vector.extract_strided_slice %279 {offsets = [0, 96], sizes = [8, 96], strides = [1, 1]} : vector<8x192xf32> to vector<8x96xf32>
    %308 = vector.extract_strided_slice %274 {offsets = [0, 0], sizes = [8, 32], strides = [1, 1]} : vector<8x96xf32> to vector<8x32xf32>
    %309 = vector.extract_strided_slice %307 {offsets = [0, 0], sizes = [8, 32], strides = [1, 1]} : vector<8x96xf32> to vector<8x32xf32>
    %310 = arith.addf %308, %309 : vector<8x32xf32>
    %311 = arith.negf %310 : vector<8x32xf32>
    %312 = math.exp %311 : vector<8x32xf32>
    %cst_84 = arith.constant 1.000000e+00 : f32
    %313 = vector.broadcast %cst_84 : f32 to vector<8x32xf32>
    %314 = arith.addf %313, %312 : vector<8x32xf32>
    %315 = arith.divf %313, %314 : vector<8x32xf32>
    %316 = vector.extract_strided_slice %274 {offsets = [0, 32], sizes = [8, 32], strides = [1, 1]} : vector<8x96xf32> to vector<8x32xf32>
    %317 = vector.extract_strided_slice %307 {offsets = [0, 32], sizes = [8, 32], strides = [1, 1]} : vector<8x96xf32> to vector<8x32xf32>
    %318 = arith.addf %316, %317 : vector<8x32xf32>
    %319 = arith.negf %318 : vector<8x32xf32>
    %320 = math.exp %319 : vector<8x32xf32>
    %cst_85 = arith.constant 1.000000e+00 : f32
    %321 = vector.broadcast %cst_85 : f32 to vector<8x32xf32>
    %322 = arith.addf %321, %320 : vector<8x32xf32>
    %323 = arith.divf %321, %322 : vector<8x32xf32>
    %324 = vector.extract_strided_slice %274 {offsets = [0, 64], sizes = [8, 32], strides = [1, 1]} : vector<8x96xf32> to vector<8x32xf32>
    %325 = vector.extract_strided_slice %307 {offsets = [0, 64], sizes = [8, 32], strides = [1, 1]} : vector<8x96xf32> to vector<8x32xf32>
    %326 = arith.mulf %315, %325 : vector<8x32xf32>
    %327 = arith.addf %324, %326 : vector<8x32xf32>
    %328 = math.tanh %327 : vector<8x32xf32>
    %cst_86 = arith.constant 1.000000e+00 : f32
    %329 = vector.broadcast %cst_86 : f32 to vector<8x32xf32>
    %330 = arith.subf %329, %323 : vector<8x32xf32>
    %331 = arith.mulf %330, %328 : vector<8x32xf32>
    %332 = arith.mulf %323, %261 : vector<8x32xf32>
    %333 = arith.addf %331, %332 : vector<8x32xf32>
    %334 = vector.shape_cast %306 : vector<8x32xf32> to vector<1x8x32xf32>
    %335 = arith.index_cast %c3_i32 : i32 to index
    %c0_87 = arith.constant 0 : index
    %c0_88 = arith.constant 0 : index
    %336 = vector.load %arg8[%335, %c0_87, %c0_88] : memref<8x8x64xf32, #tpu.memory_space<vmem>>, vector<1x8x32xf32>
    tpu.vector_store %arg8[%335, %c0_87, %c0_88], %334 {strides = array<i32>} : memref<8x8x64xf32, #tpu.memory_space<vmem>>, vector<1x8x32xf32>,
    %337 = vector.shape_cast %333 : vector<8x32xf32> to vector<1x8x32xf32>
    %338 = arith.index_cast %268 : i32 to index
    %c0_89 = arith.constant 0 : index
    %c32_90 = arith.constant 32 : index
    %339 = vector.load %arg8[%338, %c0_89, %c32_90] : memref<8x8x64xf32, #tpu.memory_space<vmem>>, vector<1x8x32xf32>
    tpu.vector_store %arg8[%338, %c0_89, %c32_90], %337 {strides = array<i32>} : memref<8x8x64xf32, #tpu.memory_space<vmem>>, vector<1x8x32xf32>,
    %c4_i32 = arith.constant 4 : i32
    %c7_i32_91 = arith.constant 7 : i32
    %340 = arith.subi %c7_i32_91, %c4_i32 : i32
    %341 = arith.index_cast %c4_i32 : i32 to index
    %c0_92 = arith.constant 0 : index
    %c0_93 = arith.constant 0 : index
    %342 = vector.load %arg9[%341, %c0_92, %c0_93] : memref<8x8x96xf32, #tpu.memory_space<vmem>>, vector<1x8x96xf32>
    %343 = vector.shape_cast %342 : vector<1x8x96xf32> to vector<8x96xf32>
    %344 = arith.index_cast %340 : i32 to index
    %c0_94 = arith.constant 0 : index
    %c0_95 = arith.constant 0 : index
    %345 = vector.load %arg10[%344, %c0_94, %c0_95] : memref<8x8x96xf32, #tpu.memory_space<vmem>>, vector<1x8x96xf32>
    %346 = vector.shape_cast %345 : vector<1x8x96xf32> to vector<8x96xf32>
    %347 = tpu.concatenate %306, %333 in 1 : vector<8x32xf32>, vector<8x32xf32> -> vector<8x64xf32>
    %348 = arith.truncf %347 : vector<8x64xf32> to vector<8x64xbf16>
    %cst_96 = arith.constant dense<0.000000e+00> : vector<8x192xf32>
    %349 = tpu.matmul %348, %49, %cst_96 {dimension_numbers = #tpu.dot_dimension_numbers<[1], [0], [0], [1], [0, 0, 1, 1], [], []>} : vector<8x64xbf16>, vector<64x192xbf16>, vector<8x192xf32> -> vector<8x192xf32>
    %350 = vector.broadcast %50 : vector<1x192xf32> to vector<8x192xf32>
    %351 = arith.addf %349, %350 : vector<8x192xf32>
    %352 = vector.extract_strided_slice %351 {offsets = [0, 0], sizes = [8, 96], strides = [1, 1]} : vector<8x192xf32> to vector<8x96xf32>
    %353 = vector.extract_strided_slice %343 {offsets = [0, 0], sizes = [8, 32], strides = [1, 1]} : vector<8x96xf32> to vector<8x32xf32>
    %354 = vector.extract_strided_slice %352 {offsets = [0, 0], sizes = [8, 32], strides = [1, 1]} : vector<8x96xf32> to vector<8x32xf32>
    %355 = arith.addf %353, %354 : vector<8x32xf32>
    %356 = arith.negf %355 : vector<8x32xf32>
    %357 = math.exp %356 : vector<8x32xf32>
    %cst_97 = arith.constant 1.000000e+00 : f32
    %358 = vector.broadcast %cst_97 : f32 to vector<8x32xf32>
    %359 = arith.addf %358, %357 : vector<8x32xf32>
    %360 = arith.divf %358, %359 : vector<8x32xf32>
    %361 = vector.extract_strided_slice %343 {offsets = [0, 32], sizes = [8, 32], strides = [1, 1]} : vector<8x96xf32> to vector<8x32xf32>
    %362 = vector.extract_strided_slice %352 {offsets = [0, 32], sizes = [8, 32], strides = [1, 1]} : vector<8x96xf32> to vector<8x32xf32>
    %363 = arith.addf %361, %362 : vector<8x32xf32>
    %364 = arith.negf %363 : vector<8x32xf32>
    %365 = math.exp %364 : vector<8x32xf32>
    %cst_98 = arith.constant 1.000000e+00 : f32
    %366 = vector.broadcast %cst_98 : f32 to vector<8x32xf32>
    %367 = arith.addf %366, %365 : vector<8x32xf32>
    %368 = arith.divf %366, %367 : vector<8x32xf32>
    %369 = vector.extract_strided_slice %343 {offsets = [0, 64], sizes = [8, 32], strides = [1, 1]} : vector<8x96xf32> to vector<8x32xf32>
    %370 = vector.extract_strided_slice %352 {offsets = [0, 64], sizes = [8, 32], strides = [1, 1]} : vector<8x96xf32> to vector<8x32xf32>
    %371 = arith.mulf %360, %370 : vector<8x32xf32>
    %372 = arith.addf %369, %371 : vector<8x32xf32>
    %373 = math.tanh %372 : vector<8x32xf32>
    %cst_99 = arith.constant 1.000000e+00 : f32
    %374 = vector.broadcast %cst_99 : f32 to vector<8x32xf32>
    %375 = arith.subf %374, %368 : vector<8x32xf32>
    %376 = arith.mulf %375, %373 : vector<8x32xf32>
    %377 = arith.mulf %368, %306 : vector<8x32xf32>
    %378 = arith.addf %376, %377 : vector<8x32xf32>
    %379 = vector.extract_strided_slice %351 {offsets = [0, 96], sizes = [8, 96], strides = [1, 1]} : vector<8x192xf32> to vector<8x96xf32>
    %380 = vector.extract_strided_slice %346 {offsets = [0, 0], sizes = [8, 32], strides = [1, 1]} : vector<8x96xf32> to vector<8x32xf32>
    %381 = vector.extract_strided_slice %379 {offsets = [0, 0], sizes = [8, 32], strides = [1, 1]} : vector<8x96xf32> to vector<8x32xf32>
    %382 = arith.addf %380, %381 : vector<8x32xf32>
    %383 = arith.negf %382 : vector<8x32xf32>
    %384 = math.exp %383 : vector<8x32xf32>
    %cst_100 = arith.constant 1.000000e+00 : f32
    %385 = vector.broadcast %cst_100 : f32 to vector<8x32xf32>
    %386 = arith.addf %385, %384 : vector<8x32xf32>
    %387 = arith.divf %385, %386 : vector<8x32xf32>
    %388 = vector.extract_strided_slice %346 {offsets = [0, 32], sizes = [8, 32], strides = [1, 1]} : vector<8x96xf32> to vector<8x32xf32>
    %389 = vector.extract_strided_slice %379 {offsets = [0, 32], sizes = [8, 32], strides = [1, 1]} : vector<8x96xf32> to vector<8x32xf32>
    %390 = arith.addf %388, %389 : vector<8x32xf32>
    %391 = arith.negf %390 : vector<8x32xf32>
    %392 = math.exp %391 : vector<8x32xf32>
    %cst_101 = arith.constant 1.000000e+00 : f32
    %393 = vector.broadcast %cst_101 : f32 to vector<8x32xf32>
    %394 = arith.addf %393, %392 : vector<8x32xf32>
    %395 = arith.divf %393, %394 : vector<8x32xf32>
    %396 = vector.extract_strided_slice %346 {offsets = [0, 64], sizes = [8, 32], strides = [1, 1]} : vector<8x96xf32> to vector<8x32xf32>
    %397 = vector.extract_strided_slice %379 {offsets = [0, 64], sizes = [8, 32], strides = [1, 1]} : vector<8x96xf32> to vector<8x32xf32>
    %398 = arith.mulf %387, %397 : vector<8x32xf32>
    %399 = arith.addf %396, %398 : vector<8x32xf32>
    %400 = math.tanh %399 : vector<8x32xf32>
    %cst_102 = arith.constant 1.000000e+00 : f32
    %401 = vector.broadcast %cst_102 : f32 to vector<8x32xf32>
    %402 = arith.subf %401, %395 : vector<8x32xf32>
    %403 = arith.mulf %402, %400 : vector<8x32xf32>
    %404 = arith.mulf %395, %333 : vector<8x32xf32>
    %405 = arith.addf %403, %404 : vector<8x32xf32>
    %406 = vector.shape_cast %378 : vector<8x32xf32> to vector<1x8x32xf32>
    %407 = arith.index_cast %c4_i32 : i32 to index
    %c0_103 = arith.constant 0 : index
    %c0_104 = arith.constant 0 : index
    %408 = vector.load %arg8[%407, %c0_103, %c0_104] : memref<8x8x64xf32, #tpu.memory_space<vmem>>, vector<1x8x32xf32>
    tpu.vector_store %arg8[%407, %c0_103, %c0_104], %406 {strides = array<i32>} : memref<8x8x64xf32, #tpu.memory_space<vmem>>, vector<1x8x32xf32>,
    %409 = vector.shape_cast %405 : vector<8x32xf32> to vector<1x8x32xf32>
    %410 = arith.index_cast %340 : i32 to index
    %c0_105 = arith.constant 0 : index
    %c32_106 = arith.constant 32 : index
    %411 = vector.load %arg8[%410, %c0_105, %c32_106] : memref<8x8x64xf32, #tpu.memory_space<vmem>>, vector<1x8x32xf32>
    tpu.vector_store %arg8[%410, %c0_105, %c32_106], %409 {strides = array<i32>} : memref<8x8x64xf32, #tpu.memory_space<vmem>>, vector<1x8x32xf32>,
    %c5_i32 = arith.constant 5 : i32
    %c7_i32_107 = arith.constant 7 : i32
    %412 = arith.subi %c7_i32_107, %c5_i32 : i32
    %413 = arith.index_cast %c5_i32 : i32 to index
    %c0_108 = arith.constant 0 : index
    %c0_109 = arith.constant 0 : index
    %414 = vector.load %arg9[%413, %c0_108, %c0_109] : memref<8x8x96xf32, #tpu.memory_space<vmem>>, vector<1x8x96xf32>
    %415 = vector.shape_cast %414 : vector<1x8x96xf32> to vector<8x96xf32>
    %416 = arith.index_cast %412 : i32 to index
    %c0_110 = arith.constant 0 : index
    %c0_111 = arith.constant 0 : index
    %417 = vector.load %arg10[%416, %c0_110, %c0_111] : memref<8x8x96xf32, #tpu.memory_space<vmem>>, vector<1x8x96xf32>
    %418 = vector.shape_cast %417 : vector<1x8x96xf32> to vector<8x96xf32>
    %419 = tpu.concatenate %378, %405 in 1 : vector<8x32xf32>, vector<8x32xf32> -> vector<8x64xf32>
    %420 = arith.truncf %419 : vector<8x64xf32> to vector<8x64xbf16>
    %cst_112 = arith.constant dense<0.000000e+00> : vector<8x192xf32>
    %421 = tpu.matmul %420, %49, %cst_112 {dimension_numbers = #tpu.dot_dimension_numbers<[1], [0], [0], [1], [0, 0, 1, 1], [], []>} : vector<8x64xbf16>, vector<64x192xbf16>, vector<8x192xf32> -> vector<8x192xf32>
    %422 = vector.broadcast %50 : vector<1x192xf32> to vector<8x192xf32>
    %423 = arith.addf %421, %422 : vector<8x192xf32>
    %424 = vector.extract_strided_slice %423 {offsets = [0, 0], sizes = [8, 96], strides = [1, 1]} : vector<8x192xf32> to vector<8x96xf32>
    %425 = vector.extract_strided_slice %415 {offsets = [0, 0], sizes = [8, 32], strides = [1, 1]} : vector<8x96xf32> to vector<8x32xf32>
    %426 = vector.extract_strided_slice %424 {offsets = [0, 0], sizes = [8, 32], strides = [1, 1]} : vector<8x96xf32> to vector<8x32xf32>
    %427 = arith.addf %425, %426 : vector<8x32xf32>
    %428 = arith.negf %427 : vector<8x32xf32>
    %429 = math.exp %428 : vector<8x32xf32>
    %cst_113 = arith.constant 1.000000e+00 : f32
    %430 = vector.broadcast %cst_113 : f32 to vector<8x32xf32>
    %431 = arith.addf %430, %429 : vector<8x32xf32>
    %432 = arith.divf %430, %431 : vector<8x32xf32>
    %433 = vector.extract_strided_slice %415 {offsets = [0, 32], sizes = [8, 32], strides = [1, 1]} : vector<8x96xf32> to vector<8x32xf32>
    %434 = vector.extract_strided_slice %424 {offsets = [0, 32], sizes = [8, 32], strides = [1, 1]} : vector<8x96xf32> to vector<8x32xf32>
    %435 = arith.addf %433, %434 : vector<8x32xf32>
    %436 = arith.negf %435 : vector<8x32xf32>
    %437 = math.exp %436 : vector<8x32xf32>
    %cst_114 = arith.constant 1.000000e+00 : f32
    %438 = vector.broadcast %cst_114 : f32 to vector<8x32xf32>
    %439 = arith.addf %438, %437 : vector<8x32xf32>
    %440 = arith.divf %438, %439 : vector<8x32xf32>
    %441 = vector.extract_strided_slice %415 {offsets = [0, 64], sizes = [8, 32], strides = [1, 1]} : vector<8x96xf32> to vector<8x32xf32>
    %442 = vector.extract_strided_slice %424 {offsets = [0, 64], sizes = [8, 32], strides = [1, 1]} : vector<8x96xf32> to vector<8x32xf32>
    %443 = arith.mulf %432, %442 : vector<8x32xf32>
    %444 = arith.addf %441, %443 : vector<8x32xf32>
    %445 = math.tanh %444 : vector<8x32xf32>
    %cst_115 = arith.constant 1.000000e+00 : f32
    %446 = vector.broadcast %cst_115 : f32 to vector<8x32xf32>
    %447 = arith.subf %446, %440 : vector<8x32xf32>
    %448 = arith.mulf %447, %445 : vector<8x32xf32>
    %449 = arith.mulf %440, %378 : vector<8x32xf32>
    %450 = arith.addf %448, %449 : vector<8x32xf32>
    %451 = vector.extract_strided_slice %423 {offsets = [0, 96], sizes = [8, 96], strides = [1, 1]} : vector<8x192xf32> to vector<8x96xf32>
    %452 = vector.extract_strided_slice %418 {offsets = [0, 0], sizes = [8, 32], strides = [1, 1]} : vector<8x96xf32> to vector<8x32xf32>
    %453 = vector.extract_strided_slice %451 {offsets = [0, 0], sizes = [8, 32], strides = [1, 1]} : vector<8x96xf32> to vector<8x32xf32>
    %454 = arith.addf %452, %453 : vector<8x32xf32>
    %455 = arith.negf %454 : vector<8x32xf32>
    %456 = math.exp %455 : vector<8x32xf32>
    %cst_116 = arith.constant 1.000000e+00 : f32
    %457 = vector.broadcast %cst_116 : f32 to vector<8x32xf32>
    %458 = arith.addf %457, %456 : vector<8x32xf32>
    %459 = arith.divf %457, %458 : vector<8x32xf32>
    %460 = vector.extract_strided_slice %418 {offsets = [0, 32], sizes = [8, 32], strides = [1, 1]} : vector<8x96xf32> to vector<8x32xf32>
    %461 = vector.extract_strided_slice %451 {offsets = [0, 32], sizes = [8, 32], strides = [1, 1]} : vector<8x96xf32> to vector<8x32xf32>
    %462 = arith.addf %460, %461 : vector<8x32xf32>
    %463 = arith.negf %462 : vector<8x32xf32>
    %464 = math.exp %463 : vector<8x32xf32>
    %cst_117 = arith.constant 1.000000e+00 : f32
    %465 = vector.broadcast %cst_117 : f32 to vector<8x32xf32>
    %466 = arith.addf %465, %464 : vector<8x32xf32>
    %467 = arith.divf %465, %466 : vector<8x32xf32>
    %468 = vector.extract_strided_slice %418 {offsets = [0, 64], sizes = [8, 32], strides = [1, 1]} : vector<8x96xf32> to vector<8x32xf32>
    %469 = vector.extract_strided_slice %451 {offsets = [0, 64], sizes = [8, 32], strides = [1, 1]} : vector<8x96xf32> to vector<8x32xf32>
    %470 = arith.mulf %459, %469 : vector<8x32xf32>
    %471 = arith.addf %468, %470 : vector<8x32xf32>
    %472 = math.tanh %471 : vector<8x32xf32>
    %cst_118 = arith.constant 1.000000e+00 : f32
    %473 = vector.broadcast %cst_118 : f32 to vector<8x32xf32>
    %474 = arith.subf %473, %467 : vector<8x32xf32>
    %475 = arith.mulf %474, %472 : vector<8x32xf32>
    %476 = arith.mulf %467, %405 : vector<8x32xf32>
    %477 = arith.addf %475, %476 : vector<8x32xf32>
    %478 = vector.shape_cast %450 : vector<8x32xf32> to vector<1x8x32xf32>
    %479 = arith.index_cast %c5_i32 : i32 to index
    %c0_119 = arith.constant 0 : index
    %c0_120 = arith.constant 0 : index
    %480 = vector.load %arg8[%479, %c0_119, %c0_120] : memref<8x8x64xf32, #tpu.memory_space<vmem>>, vector<1x8x32xf32>
    tpu.vector_store %arg8[%479, %c0_119, %c0_120], %478 {strides = array<i32>} : memref<8x8x64xf32, #tpu.memory_space<vmem>>, vector<1x8x32xf32>,
    %481 = vector.shape_cast %477 : vector<8x32xf32> to vector<1x8x32xf32>
    %482 = arith.index_cast %412 : i32 to index
    %c0_121 = arith.constant 0 : index
    %c32_122 = arith.constant 32 : index
    %483 = vector.load %arg8[%482, %c0_121, %c32_122] : memref<8x8x64xf32, #tpu.memory_space<vmem>>, vector<1x8x32xf32>
    tpu.vector_store %arg8[%482, %c0_121, %c32_122], %481 {strides = array<i32>} : memref<8x8x64xf32, #tpu.memory_space<vmem>>, vector<1x8x32xf32>,
    %c6_i32 = arith.constant 6 : i32
    %c7_i32_123 = arith.constant 7 : i32
    %484 = arith.subi %c7_i32_123, %c6_i32 : i32
    %485 = arith.index_cast %c6_i32 : i32 to index
    %c0_124 = arith.constant 0 : index
    %c0_125 = arith.constant 0 : index
    %486 = vector.load %arg9[%485, %c0_124, %c0_125] : memref<8x8x96xf32, #tpu.memory_space<vmem>>, vector<1x8x96xf32>
    %487 = vector.shape_cast %486 : vector<1x8x96xf32> to vector<8x96xf32>
    %488 = arith.index_cast %484 : i32 to index
    %c0_126 = arith.constant 0 : index
    %c0_127 = arith.constant 0 : index
    %489 = vector.load %arg10[%488, %c0_126, %c0_127] : memref<8x8x96xf32, #tpu.memory_space<vmem>>, vector<1x8x96xf32>
    %490 = vector.shape_cast %489 : vector<1x8x96xf32> to vector<8x96xf32>
    %491 = tpu.concatenate %450, %477 in 1 : vector<8x32xf32>, vector<8x32xf32> -> vector<8x64xf32>
    %492 = arith.truncf %491 : vector<8x64xf32> to vector<8x64xbf16>
    %cst_128 = arith.constant dense<0.000000e+00> : vector<8x192xf32>
    %493 = tpu.matmul %492, %49, %cst_128 {dimension_numbers = #tpu.dot_dimension_numbers<[1], [0], [0], [1], [0, 0, 1, 1], [], []>} : vector<8x64xbf16>, vector<64x192xbf16>, vector<8x192xf32> -> vector<8x192xf32>
    %494 = vector.broadcast %50 : vector<1x192xf32> to vector<8x192xf32>
    %495 = arith.addf %493, %494 : vector<8x192xf32>
    %496 = vector.extract_strided_slice %495 {offsets = [0, 0], sizes = [8, 96], strides = [1, 1]} : vector<8x192xf32> to vector<8x96xf32>
    %497 = vector.extract_strided_slice %487 {offsets = [0, 0], sizes = [8, 32], strides = [1, 1]} : vector<8x96xf32> to vector<8x32xf32>
    %498 = vector.extract_strided_slice %496 {offsets = [0, 0], sizes = [8, 32], strides = [1, 1]} : vector<8x96xf32> to vector<8x32xf32>
    %499 = arith.addf %497, %498 : vector<8x32xf32>
    %500 = arith.negf %499 : vector<8x32xf32>
    %501 = math.exp %500 : vector<8x32xf32>
    %cst_129 = arith.constant 1.000000e+00 : f32
    %502 = vector.broadcast %cst_129 : f32 to vector<8x32xf32>
    %503 = arith.addf %502, %501 : vector<8x32xf32>
    %504 = arith.divf %502, %503 : vector<8x32xf32>
    %505 = vector.extract_strided_slice %487 {offsets = [0, 32], sizes = [8, 32], strides = [1, 1]} : vector<8x96xf32> to vector<8x32xf32>
    %506 = vector.extract_strided_slice %496 {offsets = [0, 32], sizes = [8, 32], strides = [1, 1]} : vector<8x96xf32> to vector<8x32xf32>
    %507 = arith.addf %505, %506 : vector<8x32xf32>
    %508 = arith.negf %507 : vector<8x32xf32>
    %509 = math.exp %508 : vector<8x32xf32>
    %cst_130 = arith.constant 1.000000e+00 : f32
    %510 = vector.broadcast %cst_130 : f32 to vector<8x32xf32>
    %511 = arith.addf %510, %509 : vector<8x32xf32>
    %512 = arith.divf %510, %511 : vector<8x32xf32>
    %513 = vector.extract_strided_slice %487 {offsets = [0, 64], sizes = [8, 32], strides = [1, 1]} : vector<8x96xf32> to vector<8x32xf32>
    %514 = vector.extract_strided_slice %496 {offsets = [0, 64], sizes = [8, 32], strides = [1, 1]} : vector<8x96xf32> to vector<8x32xf32>
    %515 = arith.mulf %504, %514 : vector<8x32xf32>
    %516 = arith.addf %513, %515 : vector<8x32xf32>
    %517 = math.tanh %516 : vector<8x32xf32>
    %cst_131 = arith.constant 1.000000e+00 : f32
    %518 = vector.broadcast %cst_131 : f32 to vector<8x32xf32>
    %519 = arith.subf %518, %512 : vector<8x32xf32>
    %520 = arith.mulf %519, %517 : vector<8x32xf32>
    %521 = arith.mulf %512, %450 : vector<8x32xf32>
    %522 = arith.addf %520, %521 : vector<8x32xf32>
    %523 = vector.extract_strided_slice %495 {offsets = [0, 96], sizes = [8, 96], strides = [1, 1]} : vector<8x192xf32> to vector<8x96xf32>
    %524 = vector.extract_strided_slice %490 {offsets = [0, 0], sizes = [8, 32], strides = [1, 1]} : vector<8x96xf32> to vector<8x32xf32>
    %525 = vector.extract_strided_slice %523 {offsets = [0, 0], sizes = [8, 32], strides = [1, 1]} : vector<8x96xf32> to vector<8x32xf32>
    %526 = arith.addf %524, %525 : vector<8x32xf32>
    %527 = arith.negf %526 : vector<8x32xf32>
    %528 = math.exp %527 : vector<8x32xf32>
    %cst_132 = arith.constant 1.000000e+00 : f32
    %529 = vector.broadcast %cst_132 : f32 to vector<8x32xf32>
    %530 = arith.addf %529, %528 : vector<8x32xf32>
    %531 = arith.divf %529, %530 : vector<8x32xf32>
    %532 = vector.extract_strided_slice %490 {offsets = [0, 32], sizes = [8, 32], strides = [1, 1]} : vector<8x96xf32> to vector<8x32xf32>
    %533 = vector.extract_strided_slice %523 {offsets = [0, 32], sizes = [8, 32], strides = [1, 1]} : vector<8x96xf32> to vector<8x32xf32>
    %534 = arith.addf %532, %533 : vector<8x32xf32>
    %535 = arith.negf %534 : vector<8x32xf32>
    %536 = math.exp %535 : vector<8x32xf32>
    %cst_133 = arith.constant 1.000000e+00 : f32
    %537 = vector.broadcast %cst_133 : f32 to vector<8x32xf32>
    %538 = arith.addf %537, %536 : vector<8x32xf32>
    %539 = arith.divf %537, %538 : vector<8x32xf32>
    %540 = vector.extract_strided_slice %490 {offsets = [0, 64], sizes = [8, 32], strides = [1, 1]} : vector<8x96xf32> to vector<8x32xf32>
    %541 = vector.extract_strided_slice %523 {offsets = [0, 64], sizes = [8, 32], strides = [1, 1]} : vector<8x96xf32> to vector<8x32xf32>
    %542 = arith.mulf %531, %541 : vector<8x32xf32>
    %543 = arith.addf %540, %542 : vector<8x32xf32>
    %544 = math.tanh %543 : vector<8x32xf32>
    %cst_134 = arith.constant 1.000000e+00 : f32
    %545 = vector.broadcast %cst_134 : f32 to vector<8x32xf32>
    %546 = arith.subf %545, %539 : vector<8x32xf32>
    %547 = arith.mulf %546, %544 : vector<8x32xf32>
    %548 = arith.mulf %539, %477 : vector<8x32xf32>
    %549 = arith.addf %547, %548 : vector<8x32xf32>
    %550 = vector.shape_cast %522 : vector<8x32xf32> to vector<1x8x32xf32>
    %551 = arith.index_cast %c6_i32 : i32 to index
    %c0_135 = arith.constant 0 : index
    %c0_136 = arith.constant 0 : index
    %552 = vector.load %arg8[%551, %c0_135, %c0_136] : memref<8x8x64xf32, #tpu.memory_space<vmem>>, vector<1x8x32xf32>
    tpu.vector_store %arg8[%551, %c0_135, %c0_136], %550 {strides = array<i32>} : memref<8x8x64xf32, #tpu.memory_space<vmem>>, vector<1x8x32xf32>,
    %553 = vector.shape_cast %549 : vector<8x32xf32> to vector<1x8x32xf32>
    %554 = arith.index_cast %484 : i32 to index
    %c0_137 = arith.constant 0 : index
    %c32_138 = arith.constant 32 : index
    %555 = vector.load %arg8[%554, %c0_137, %c32_138] : memref<8x8x64xf32, #tpu.memory_space<vmem>>, vector<1x8x32xf32>
    tpu.vector_store %arg8[%554, %c0_137, %c32_138], %553 {strides = array<i32>} : memref<8x8x64xf32, #tpu.memory_space<vmem>>, vector<1x8x32xf32>,
    %c7_i32_139 = arith.constant 7 : i32
    %c7_i32_140 = arith.constant 7 : i32
    %556 = arith.subi %c7_i32_140, %c7_i32_139 : i32
    %557 = arith.index_cast %c7_i32_139 : i32 to index
    %c0_141 = arith.constant 0 : index
    %c0_142 = arith.constant 0 : index
    %558 = vector.load %arg9[%557, %c0_141, %c0_142] : memref<8x8x96xf32, #tpu.memory_space<vmem>>, vector<1x8x96xf32>
    %559 = vector.shape_cast %558 : vector<1x8x96xf32> to vector<8x96xf32>
    %560 = arith.index_cast %556 : i32 to index
    %c0_143 = arith.constant 0 : index
    %c0_144 = arith.constant 0 : index
    %561 = vector.load %arg10[%560, %c0_143, %c0_144] : memref<8x8x96xf32, #tpu.memory_space<vmem>>, vector<1x8x96xf32>
    %562 = vector.shape_cast %561 : vector<1x8x96xf32> to vector<8x96xf32>
    %563 = tpu.concatenate %522, %549 in 1 : vector<8x32xf32>, vector<8x32xf32> -> vector<8x64xf32>
    %564 = arith.truncf %563 : vector<8x64xf32> to vector<8x64xbf16>
    %cst_145 = arith.constant dense<0.000000e+00> : vector<8x192xf32>
    %565 = tpu.matmul %564, %49, %cst_145 {dimension_numbers = #tpu.dot_dimension_numbers<[1], [0], [0], [1], [0, 0, 1, 1], [], []>} : vector<8x64xbf16>, vector<64x192xbf16>, vector<8x192xf32> -> vector<8x192xf32>
    %566 = vector.broadcast %50 : vector<1x192xf32> to vector<8x192xf32>
    %567 = arith.addf %565, %566 : vector<8x192xf32>
    %568 = vector.extract_strided_slice %567 {offsets = [0, 0], sizes = [8, 96], strides = [1, 1]} : vector<8x192xf32> to vector<8x96xf32>
    %569 = vector.extract_strided_slice %559 {offsets = [0, 0], sizes = [8, 32], strides = [1, 1]} : vector<8x96xf32> to vector<8x32xf32>
    %570 = vector.extract_strided_slice %568 {offsets = [0, 0], sizes = [8, 32], strides = [1, 1]} : vector<8x96xf32> to vector<8x32xf32>
    %571 = arith.addf %569, %570 : vector<8x32xf32>
    %572 = arith.negf %571 : vector<8x32xf32>
    %573 = math.exp %572 : vector<8x32xf32>
    %cst_146 = arith.constant 1.000000e+00 : f32
    %574 = vector.broadcast %cst_146 : f32 to vector<8x32xf32>
    %575 = arith.addf %574, %573 : vector<8x32xf32>
    %576 = arith.divf %574, %575 : vector<8x32xf32>
    %577 = vector.extract_strided_slice %559 {offsets = [0, 32], sizes = [8, 32], strides = [1, 1]} : vector<8x96xf32> to vector<8x32xf32>
    %578 = vector.extract_strided_slice %568 {offsets = [0, 32], sizes = [8, 32], strides = [1, 1]} : vector<8x96xf32> to vector<8x32xf32>
    %579 = arith.addf %577, %578 : vector<8x32xf32>
    %580 = arith.negf %579 : vector<8x32xf32>
    %581 = math.exp %580 : vector<8x32xf32>
    %cst_147 = arith.constant 1.000000e+00 : f32
    %582 = vector.broadcast %cst_147 : f32 to vector<8x32xf32>
    %583 = arith.addf %582, %581 : vector<8x32xf32>
    %584 = arith.divf %582, %583 : vector<8x32xf32>
    %585 = vector.extract_strided_slice %559 {offsets = [0, 64], sizes = [8, 32], strides = [1, 1]} : vector<8x96xf32> to vector<8x32xf32>
    %586 = vector.extract_strided_slice %568 {offsets = [0, 64], sizes = [8, 32], strides = [1, 1]} : vector<8x96xf32> to vector<8x32xf32>
    %587 = arith.mulf %576, %586 : vector<8x32xf32>
    %588 = arith.addf %585, %587 : vector<8x32xf32>
    %589 = math.tanh %588 : vector<8x32xf32>
    %cst_148 = arith.constant 1.000000e+00 : f32
    %590 = vector.broadcast %cst_148 : f32 to vector<8x32xf32>
    %591 = arith.subf %590, %584 : vector<8x32xf32>
    %592 = arith.mulf %591, %589 : vector<8x32xf32>
    %593 = arith.mulf %584, %522 : vector<8x32xf32>
    %594 = arith.addf %592, %593 : vector<8x32xf32>
    %595 = vector.extract_strided_slice %567 {offsets = [0, 96], sizes = [8, 96], strides = [1, 1]} : vector<8x192xf32> to vector<8x96xf32>
    %596 = vector.extract_strided_slice %562 {offsets = [0, 0], sizes = [8, 32], strides = [1, 1]} : vector<8x96xf32> to vector<8x32xf32>
    %597 = vector.extract_strided_slice %595 {offsets = [0, 0], sizes = [8, 32], strides = [1, 1]} : vector<8x96xf32> to vector<8x32xf32>
    %598 = arith.addf %596, %597 : vector<8x32xf32>
    %599 = arith.negf %598 : vector<8x32xf32>
    %600 = math.exp %599 : vector<8x32xf32>
    %cst_149 = arith.constant 1.000000e+00 : f32
    %601 = vector.broadcast %cst_149 : f32 to vector<8x32xf32>
    %602 = arith.addf %601, %600 : vector<8x32xf32>
    %603 = arith.divf %601, %602 : vector<8x32xf32>
    %604 = vector.extract_strided_slice %562 {offsets = [0, 32], sizes = [8, 32], strides = [1, 1]} : vector<8x96xf32> to vector<8x32xf32>
    %605 = vector.extract_strided_slice %595 {offsets = [0, 32], sizes = [8, 32], strides = [1, 1]} : vector<8x96xf32> to vector<8x32xf32>
    %606 = arith.addf %604, %605 : vector<8x32xf32>
    %607 = arith.negf %606 : vector<8x32xf32>
    %608 = math.exp %607 : vector<8x32xf32>
    %cst_150 = arith.constant 1.000000e+00 : f32
    %609 = vector.broadcast %cst_150 : f32 to vector<8x32xf32>
    %610 = arith.addf %609, %608 : vector<8x32xf32>
    %611 = arith.divf %609, %610 : vector<8x32xf32>
    %612 = vector.extract_strided_slice %562 {offsets = [0, 64], sizes = [8, 32], strides = [1, 1]} : vector<8x96xf32> to vector<8x32xf32>
    %613 = vector.extract_strided_slice %595 {offsets = [0, 64], sizes = [8, 32], strides = [1, 1]} : vector<8x96xf32> to vector<8x32xf32>
    %614 = arith.mulf %603, %613 : vector<8x32xf32>
    %615 = arith.addf %612, %614 : vector<8x32xf32>
    %616 = math.tanh %615 : vector<8x32xf32>
    %cst_151 = arith.constant 1.000000e+00 : f32
    %617 = vector.broadcast %cst_151 : f32 to vector<8x32xf32>
    %618 = arith.subf %617, %611 : vector<8x32xf32>
    %619 = arith.mulf %618, %616 : vector<8x32xf32>
    %620 = arith.mulf %611, %549 : vector<8x32xf32>
    %621 = arith.addf %619, %620 : vector<8x32xf32>
    %622 = vector.shape_cast %594 : vector<8x32xf32> to vector<1x8x32xf32>
    %623 = arith.index_cast %c7_i32_139 : i32 to index
    %c0_152 = arith.constant 0 : index
    %c0_153 = arith.constant 0 : index
    %624 = vector.load %arg8[%623, %c0_152, %c0_153] : memref<8x8x64xf32, #tpu.memory_space<vmem>>, vector<1x8x32xf32>
    tpu.vector_store %arg8[%623, %c0_152, %c0_153], %622 {strides = array<i32>} : memref<8x8x64xf32, #tpu.memory_space<vmem>>, vector<1x8x32xf32>,
    %625 = vector.shape_cast %621 : vector<8x32xf32> to vector<1x8x32xf32>
    %626 = arith.index_cast %556 : i32 to index
    %c0_154 = arith.constant 0 : index
    %c32_155 = arith.constant 32 : index
    %627 = vector.load %arg8[%626, %c0_154, %c32_155] : memref<8x8x64xf32, #tpu.memory_space<vmem>>, vector<1x8x32xf32>
    tpu.vector_store %arg8[%626, %c0_154, %c32_155], %625 {strides = array<i32>} : memref<8x8x64xf32, #tpu.memory_space<vmem>>, vector<1x8x32xf32>,
    %c8_i32 = arith.constant 8 : i32
    return
  }
  func.func @transform_0(%arg0: i32) -> (i32, i32, i32) {
    %c0_i32 = arith.constant 0 : i32
    %c0_i32_0 = arith.constant 0 : i32
    %c0_i32_1 = arith.constant 0 : i32
    return %c0_i32, %arg0, %c0_i32_0 : i32, i32, i32
  }
  func.func @transform_1(%arg0: i32) -> (i32, i32) {
    %c0_i32 = arith.constant 0 : i32
    %c0_i32_0 = arith.constant 0 : i32
    %c0_i32_1 = arith.constant 0 : i32
    return %c0_i32, %c0_i32_0 : i32, i32
  }
  func.func @transform_2(%arg0: i32) -> (i32, i32) {
    %c0_i32 = arith.constant 0 : i32
    %c0_i32_0 = arith.constant 0 : i32
    %c0_i32_1 = arith.constant 0 : i32
    return %c0_i32, %c0_i32_0 : i32, i32
  }
  func.func @transform_3(%arg0: i32) -> (i32, i32) {
    %c0_i32 = arith.constant 0 : i32
    %c0_i32_0 = arith.constant 0 : i32
    %c0_i32_1 = arith.constant 0 : i32
    return %c0_i32, %c0_i32_0 : i32, i32
  }
  func.func @transform_4(%arg0: i32) -> (i32, i32) {
    %c0_i32 = arith.constant 0 : i32
    %c0_i32_0 = arith.constant 0 : i32
    %c0_i32_1 = arith.constant 0 : i32
    return %c0_i32, %c0_i32_0 : i32, i32
  }
  func.func @transform_5(%arg0: i32) -> (i32, i32) {
    %c0_i32 = arith.constant 0 : i32
    %c0_i32_0 = arith.constant 0 : i32
    %c0_i32_1 = arith.constant 0 : i32
    return %c0_i32, %c0_i32_0 : i32, i32
  }
  func.func @transform_6(%arg0: i32) -> (i32, i32) {
    %c0_i32 = arith.constant 0 : i32
    %c0_i32_0 = arith.constant 0 : i32
    %c0_i32_1 = arith.constant 0 : i32
    return %c0_i32, %c0_i32_0 : i32, i32
  }
  func.func @transform_7(%arg0: i32) -> (i32, i32, i32) {
    %c0_i32 = arith.constant 0 : i32
    %c0_i32_0 = arith.constant 0 : i32
    %c0_i32_1 = arith.constant 0 : i32
    return %c0_i32, %arg0, %c0_i32_0 : i32, i32, i32
  }
}

module attributes {stable_mosaic.version = 11 : i64} {
  func.func @_bigru_kernel(%arg0: i32, %arg1: memref<2x8x64xf32, #tpu.memory_space<vmem>>, %arg2: memref<1x64xf32, #tpu.memory_space<vmem>>, %arg3: memref<1x64xf32, #tpu.memory_space<vmem>>, %arg4: memref<64x192xf32, #tpu.memory_space<vmem>>, %arg5: memref<1x192xf32, #tpu.memory_space<vmem>>, %arg6: memref<64x192xf32, #tpu.memory_space<vmem>>, %arg7: memref<1x192xf32, #tpu.memory_space<vmem>>, %arg8: memref<2x8x64xf32, #tpu.memory_space<vmem>>, %arg9: memref<2x8x96xf32, #tpu.memory_space<vmem>>, %arg10: memref<2x8x96xf32, #tpu.memory_space<vmem>>) attributes {dimension_semantics = [#tpu.dimension_semantics<parallel>], iteration_bounds = array<i64: 1>, scalar_prefetch = 0 : i64, scratch_operands = 2 : i64, tpu.core_type = #tpu.core_type<tc>, window_params = [{transform_indices = @transform_0, window_bounds = array<i64: 2, 8, 64>}, {pipeline_mode = #tpu.pipeline_mode<synchronous>, transform_indices = @transform_1, window_bounds = array<i64: 1, 64>}, {pipeline_mode = #tpu.pipeline_mode<synchronous>, transform_indices = @transform_2, window_bounds = array<i64: 1, 64>}, {pipeline_mode = #tpu.pipeline_mode<synchronous>, transform_indices = @transform_3, window_bounds = array<i64: 64, 192>}, {pipeline_mode = #tpu.pipeline_mode<synchronous>, transform_indices = @transform_4, window_bounds = array<i64: 1, 192>}, {pipeline_mode = #tpu.pipeline_mode<synchronous>, transform_indices = @transform_5, window_bounds = array<i64: 64, 192>}, {pipeline_mode = #tpu.pipeline_mode<synchronous>, transform_indices = @transform_6, window_bounds = array<i64: 1, 192>}, {transform_indices = @transform_7, window_bounds = array<i64: 2, 8, 64>}]} {
    %c0 = arith.constant 0 : index
    %c0_0 = arith.constant 0 : index
    %c0_1 = arith.constant 0 : index
    %0 = vector.load %arg1[%c0, %c0_0, %c0_1] : memref<2x8x64xf32, #tpu.memory_space<vmem>>, vector<2x8x64xf32>
    %c0_2 = arith.constant 0 : index
    %c0_3 = arith.constant 0 : index
    %1 = vector.load %arg2[%c0_2, %c0_3] : memref<1x64xf32, #tpu.memory_space<vmem>>, vector<1x64xf32>
    %c0_4 = arith.constant 0 : index
    %c0_5 = arith.constant 0 : index
    %2 = vector.load %arg3[%c0_4, %c0_5] : memref<1x64xf32, #tpu.memory_space<vmem>>, vector<1x64xf32>
    %cst = arith.constant dense<0.000000e+00> : vector<2x8xf32>
    %3 = vector.multi_reduction <add>, %0, %cst [2] : vector<2x8x64xf32> to vector<2x8xf32>
    %4 = vector.shape_cast %3 : vector<2x8xf32> to vector<2x8x1xf32>
    %cst_6 = arith.constant 6.400000e+01 : f32
    %5 = vector.broadcast %cst_6 : f32 to vector<2x8x1xf32>
    %6 = arith.divf %4, %5 : vector<2x8x1xf32>
    %7 = vector.broadcast %6 : vector<2x8x1xf32> to vector<2x8x64xf32>
    %8 = arith.subf %0, %7 : vector<2x8x64xf32>
    %9 = arith.mulf %8, %8 : vector<2x8x64xf32>
    %cst_7 = arith.constant dense<0.000000e+00> : vector<2x8xf32>
    %10 = vector.multi_reduction <add>, %9, %cst_7 [2] : vector<2x8x64xf32> to vector<2x8xf32>
    %11 = vector.shape_cast %10 : vector<2x8xf32> to vector<2x8x1xf32>
    %cst_8 = arith.constant 6.400000e+01 : f32
    %12 = vector.broadcast %cst_8 : f32 to vector<2x8x1xf32>
    %13 = arith.divf %11, %12 : vector<2x8x1xf32>
    %14 = vector.broadcast %6 : vector<2x8x1xf32> to vector<2x8x64xf32>
    %15 = arith.subf %0, %14 : vector<2x8x64xf32>
    %cst_9 = arith.constant 9.99999974E-6 : f32
    %16 = vector.broadcast %cst_9 : f32 to vector<2x8x1xf32>
    %17 = arith.addf %13, %16 : vector<2x8x1xf32>
    %18 = math.rsqrt %17 : vector<2x8x1xf32>
    %19 = vector.broadcast %18 : vector<2x8x1xf32> to vector<2x8x64xf32>
    %20 = arith.mulf %15, %19 : vector<2x8x64xf32>
    %21 = vector.shape_cast %1 : vector<1x64xf32> to vector<1x1x64xf32>
    %22 = vector.broadcast %21 : vector<1x1x64xf32> to vector<2x8x64xf32>
    %23 = arith.mulf %20, %22 : vector<2x8x64xf32>
    %24 = vector.shape_cast %2 : vector<1x64xf32> to vector<1x1x64xf32>
    %25 = vector.broadcast %24 : vector<1x1x64xf32> to vector<2x8x64xf32>
    %26 = arith.addf %23, %25 : vector<2x8x64xf32>
    %cst_10 = arith.constant 5.000000e-01 : f32
    %27 = vector.broadcast %cst_10 : f32 to vector<2x8x64xf32>
    %28 = arith.mulf %27, %26 : vector<2x8x64xf32>
    %cst_11 = arith.constant 0.707106769 : f32
    %29 = vector.broadcast %cst_11 : f32 to vector<2x8x64xf32>
    %30 = arith.mulf %26, %29 : vector<2x8x64xf32>
    %31 = math.erf %30 : vector<2x8x64xf32>
    %cst_12 = arith.constant 1.000000e+00 : f32
    %32 = vector.broadcast %cst_12 : f32 to vector<2x8x64xf32>
    %33 = arith.addf %32, %31 : vector<2x8x64xf32>
    %34 = arith.mulf %28, %33 : vector<2x8x64xf32>
    %35 = vector.shape_cast %34 : vector<2x8x64xf32> to vector<16x64xf32>
    %c0_13 = arith.constant 0 : index
    %c0_14 = arith.constant 0 : index
    %36 = vector.load %arg4[%c0_13, %c0_14] : memref<64x192xf32, #tpu.memory_space<vmem>>, vector<64x192xf32>
    %37 = arith.truncf %35 : vector<16x64xf32> to vector<16x64xbf16>
    %38 = arith.truncf %36 : vector<64x192xf32> to vector<64x192xbf16>
    %cst_15 = arith.constant dense<0.000000e+00> : vector<16x192xf32>
    %39 = tpu.matmul %37, %38, %cst_15 {dimension_numbers = #tpu.dot_dimension_numbers<[1], [0], [0], [1], [0, 0, 1, 1], [], []>} : vector<16x64xbf16>, vector<64x192xbf16>, vector<16x192xf32> -> vector<16x192xf32>
    %c0_16 = arith.constant 0 : index
    %c0_17 = arith.constant 0 : index
    %40 = vector.load %arg5[%c0_16, %c0_17] : memref<1x192xf32, #tpu.memory_space<vmem>>, vector<1x192xf32>
    %41 = vector.broadcast %40 : vector<1x192xf32> to vector<16x192xf32>
    %42 = arith.addf %39, %41 : vector<16x192xf32>
    %43 = vector.shape_cast %42 : vector<16x192xf32> to vector<2x8x192xf32>
    %44 = vector.extract_strided_slice %43 {offsets = [0, 0, 0], sizes = [2, 8, 96], strides = [1, 1, 1]} : vector<2x8x192xf32> to vector<2x8x96xf32>
    %c0_18 = arith.constant 0 : index
    %c0_19 = arith.constant 0 : index
    %c0_20 = arith.constant 0 : index
    %45 = vector.load %arg9[%c0_18, %c0_19, %c0_20] : memref<2x8x96xf32, #tpu.memory_space<vmem>>, vector<2x8x96xf32>
    tpu.vector_store %arg9[%c0_18, %c0_19, %c0_20], %44 {strides = array<i32>} : memref<2x8x96xf32, #tpu.memory_space<vmem>>, vector<2x8x96xf32>,
    %46 = vector.extract_strided_slice %43 {offsets = [0, 0, 96], sizes = [2, 8, 96], strides = [1, 1, 1]} : vector<2x8x192xf32> to vector<2x8x96xf32>
    %c0_21 = arith.constant 0 : index
    %c0_22 = arith.constant 0 : index
    %c0_23 = arith.constant 0 : index
    %47 = vector.load %arg10[%c0_21, %c0_22, %c0_23] : memref<2x8x96xf32, #tpu.memory_space<vmem>>, vector<2x8x96xf32>
    tpu.vector_store %arg10[%c0_21, %c0_22, %c0_23], %46 {strides = array<i32>} : memref<2x8x96xf32, #tpu.memory_space<vmem>>, vector<2x8x96xf32>,
    %c0_24 = arith.constant 0 : index
    %c0_25 = arith.constant 0 : index
    %48 = vector.load %arg6[%c0_24, %c0_25] : memref<64x192xf32, #tpu.memory_space<vmem>>, vector<64x192xf32>
    %49 = arith.truncf %48 : vector<64x192xf32> to vector<64x192xbf16>
    %c0_26 = arith.constant 0 : index
    %c0_27 = arith.constant 0 : index
    %50 = vector.load %arg7[%c0_26, %c0_27] : memref<1x192xf32, #tpu.memory_space<vmem>>, vector<1x192xf32>
    %cst_28 = arith.constant 0.000000e+00 : f32
    %51 = vector.broadcast %cst_28 : f32 to vector<8x32xf32>
    %c0_i32 = arith.constant 0 : i32
    %c1_i32 = arith.constant 1 : i32
    %52 = arith.subi %c1_i32, %c0_i32 : i32
    %53 = arith.index_cast %c0_i32 : i32 to index
    %c0_29 = arith.constant 0 : index
    %c0_30 = arith.constant 0 : index
    %54 = vector.load %arg9[%53, %c0_29, %c0_30] : memref<2x8x96xf32, #tpu.memory_space<vmem>>, vector<1x8x96xf32>
    %55 = vector.shape_cast %54 : vector<1x8x96xf32> to vector<8x96xf32>
    %56 = arith.index_cast %52 : i32 to index
    %c0_31 = arith.constant 0 : index
    %c0_32 = arith.constant 0 : index
    %57 = vector.load %arg10[%56, %c0_31, %c0_32] : memref<2x8x96xf32, #tpu.memory_space<vmem>>, vector<1x8x96xf32>
    %58 = vector.shape_cast %57 : vector<1x8x96xf32> to vector<8x96xf32>
    %59 = tpu.concatenate %51, %51 in 1 : vector<8x32xf32>, vector<8x32xf32> -> vector<8x64xf32>
    %60 = arith.truncf %59 : vector<8x64xf32> to vector<8x64xbf16>
    %cst_33 = arith.constant dense<0.000000e+00> : vector<8x192xf32>
    %61 = tpu.matmul %60, %49, %cst_33 {dimension_numbers = #tpu.dot_dimension_numbers<[1], [0], [0], [1], [0, 0, 1, 1], [], []>} : vector<8x64xbf16>, vector<64x192xbf16>, vector<8x192xf32> -> vector<8x192xf32>
    %62 = vector.broadcast %50 : vector<1x192xf32> to vector<8x192xf32>
    %63 = arith.addf %61, %62 : vector<8x192xf32>
    %64 = vector.extract_strided_slice %63 {offsets = [0, 0], sizes = [8, 96], strides = [1, 1]} : vector<8x192xf32> to vector<8x96xf32>
    %65 = vector.extract_strided_slice %55 {offsets = [0, 0], sizes = [8, 32], strides = [1, 1]} : vector<8x96xf32> to vector<8x32xf32>
    %66 = vector.extract_strided_slice %64 {offsets = [0, 0], sizes = [8, 32], strides = [1, 1]} : vector<8x96xf32> to vector<8x32xf32>
    %67 = arith.addf %65, %66 : vector<8x32xf32>
    %68 = arith.negf %67 : vector<8x32xf32>
    %69 = math.exp %68 : vector<8x32xf32>
    %cst_34 = arith.constant 1.000000e+00 : f32
    %70 = vector.broadcast %cst_34 : f32 to vector<8x32xf32>
    %71 = arith.addf %70, %69 : vector<8x32xf32>
    %72 = arith.divf %70, %71 : vector<8x32xf32>
    %73 = vector.extract_strided_slice %55 {offsets = [0, 32], sizes = [8, 32], strides = [1, 1]} : vector<8x96xf32> to vector<8x32xf32>
    %74 = vector.extract_strided_slice %64 {offsets = [0, 32], sizes = [8, 32], strides = [1, 1]} : vector<8x96xf32> to vector<8x32xf32>
    %75 = arith.addf %73, %74 : vector<8x32xf32>
    %76 = arith.negf %75 : vector<8x32xf32>
    %77 = math.exp %76 : vector<8x32xf32>
    %cst_35 = arith.constant 1.000000e+00 : f32
    %78 = vector.broadcast %cst_35 : f32 to vector<8x32xf32>
    %79 = arith.addf %78, %77 : vector<8x32xf32>
    %80 = arith.divf %78, %79 : vector<8x32xf32>
    %81 = vector.extract_strided_slice %55 {offsets = [0, 64], sizes = [8, 32], strides = [1, 1]} : vector<8x96xf32> to vector<8x32xf32>
    %82 = vector.extract_strided_slice %64 {offsets = [0, 64], sizes = [8, 32], strides = [1, 1]} : vector<8x96xf32> to vector<8x32xf32>
    %83 = arith.mulf %72, %82 : vector<8x32xf32>
    %84 = arith.addf %81, %83 : vector<8x32xf32>
    %85 = math.tanh %84 : vector<8x32xf32>
    %cst_36 = arith.constant 1.000000e+00 : f32
    %86 = vector.broadcast %cst_36 : f32 to vector<8x32xf32>
    %87 = arith.subf %86, %80 : vector<8x32xf32>
    %88 = arith.mulf %87, %85 : vector<8x32xf32>
    %89 = arith.mulf %80, %51 : vector<8x32xf32>
    %90 = arith.addf %88, %89 : vector<8x32xf32>
    %91 = vector.extract_strided_slice %63 {offsets = [0, 96], sizes = [8, 96], strides = [1, 1]} : vector<8x192xf32> to vector<8x96xf32>
    %92 = vector.extract_strided_slice %58 {offsets = [0, 0], sizes = [8, 32], strides = [1, 1]} : vector<8x96xf32> to vector<8x32xf32>
    %93 = vector.extract_strided_slice %91 {offsets = [0, 0], sizes = [8, 32], strides = [1, 1]} : vector<8x96xf32> to vector<8x32xf32>
    %94 = arith.addf %92, %93 : vector<8x32xf32>
    %95 = arith.negf %94 : vector<8x32xf32>
    %96 = math.exp %95 : vector<8x32xf32>
    %cst_37 = arith.constant 1.000000e+00 : f32
    %97 = vector.broadcast %cst_37 : f32 to vector<8x32xf32>
    %98 = arith.addf %97, %96 : vector<8x32xf32>
    %99 = arith.divf %97, %98 : vector<8x32xf32>
    %100 = vector.extract_strided_slice %58 {offsets = [0, 32], sizes = [8, 32], strides = [1, 1]} : vector<8x96xf32> to vector<8x32xf32>
    %101 = vector.extract_strided_slice %91 {offsets = [0, 32], sizes = [8, 32], strides = [1, 1]} : vector<8x96xf32> to vector<8x32xf32>
    %102 = arith.addf %100, %101 : vector<8x32xf32>
    %103 = arith.negf %102 : vector<8x32xf32>
    %104 = math.exp %103 : vector<8x32xf32>
    %cst_38 = arith.constant 1.000000e+00 : f32
    %105 = vector.broadcast %cst_38 : f32 to vector<8x32xf32>
    %106 = arith.addf %105, %104 : vector<8x32xf32>
    %107 = arith.divf %105, %106 : vector<8x32xf32>
    %108 = vector.extract_strided_slice %58 {offsets = [0, 64], sizes = [8, 32], strides = [1, 1]} : vector<8x96xf32> to vector<8x32xf32>
    %109 = vector.extract_strided_slice %91 {offsets = [0, 64], sizes = [8, 32], strides = [1, 1]} : vector<8x96xf32> to vector<8x32xf32>
    %110 = arith.mulf %99, %109 : vector<8x32xf32>
    %111 = arith.addf %108, %110 : vector<8x32xf32>
    %112 = math.tanh %111 : vector<8x32xf32>
    %cst_39 = arith.constant 1.000000e+00 : f32
    %113 = vector.broadcast %cst_39 : f32 to vector<8x32xf32>
    %114 = arith.subf %113, %107 : vector<8x32xf32>
    %115 = arith.mulf %114, %112 : vector<8x32xf32>
    %116 = arith.mulf %107, %51 : vector<8x32xf32>
    %117 = arith.addf %115, %116 : vector<8x32xf32>
    %118 = vector.shape_cast %90 : vector<8x32xf32> to vector<1x8x32xf32>
    %119 = arith.index_cast %c0_i32 : i32 to index
    %c0_40 = arith.constant 0 : index
    %c0_41 = arith.constant 0 : index
    %120 = vector.load %arg8[%119, %c0_40, %c0_41] : memref<2x8x64xf32, #tpu.memory_space<vmem>>, vector<1x8x32xf32>
    tpu.vector_store %arg8[%119, %c0_40, %c0_41], %118 {strides = array<i32>} : memref<2x8x64xf32, #tpu.memory_space<vmem>>, vector<1x8x32xf32>,
    %121 = vector.shape_cast %117 : vector<8x32xf32> to vector<1x8x32xf32>
    %122 = arith.index_cast %52 : i32 to index
    %c0_42 = arith.constant 0 : index
    %c32 = arith.constant 32 : index
    %123 = vector.load %arg8[%122, %c0_42, %c32] : memref<2x8x64xf32, #tpu.memory_space<vmem>>, vector<1x8x32xf32>
    tpu.vector_store %arg8[%122, %c0_42, %c32], %121 {strides = array<i32>} : memref<2x8x64xf32, #tpu.memory_space<vmem>>, vector<1x8x32xf32>,
    %c1_i32_43 = arith.constant 1 : i32
    %c1_i32_44 = arith.constant 1 : i32
    %124 = arith.subi %c1_i32_44, %c1_i32_43 : i32
    %125 = arith.index_cast %c1_i32_43 : i32 to index
    %c0_45 = arith.constant 0 : index
    %c0_46 = arith.constant 0 : index
    %126 = vector.load %arg9[%125, %c0_45, %c0_46] : memref<2x8x96xf32, #tpu.memory_space<vmem>>, vector<1x8x96xf32>
    %127 = vector.shape_cast %126 : vector<1x8x96xf32> to vector<8x96xf32>
    %128 = arith.index_cast %124 : i32 to index
    %c0_47 = arith.constant 0 : index
    %c0_48 = arith.constant 0 : index
    %129 = vector.load %arg10[%128, %c0_47, %c0_48] : memref<2x8x96xf32, #tpu.memory_space<vmem>>, vector<1x8x96xf32>
    %130 = vector.shape_cast %129 : vector<1x8x96xf32> to vector<8x96xf32>
    %131 = tpu.concatenate %90, %117 in 1 : vector<8x32xf32>, vector<8x32xf32> -> vector<8x64xf32>
    %132 = arith.truncf %131 : vector<8x64xf32> to vector<8x64xbf16>
    %cst_49 = arith.constant dense<0.000000e+00> : vector<8x192xf32>
    %133 = tpu.matmul %132, %49, %cst_49 {dimension_numbers = #tpu.dot_dimension_numbers<[1], [0], [0], [1], [0, 0, 1, 1], [], []>} : vector<8x64xbf16>, vector<64x192xbf16>, vector<8x192xf32> -> vector<8x192xf32>
    %134 = vector.broadcast %50 : vector<1x192xf32> to vector<8x192xf32>
    %135 = arith.addf %133, %134 : vector<8x192xf32>
    %136 = vector.extract_strided_slice %135 {offsets = [0, 0], sizes = [8, 96], strides = [1, 1]} : vector<8x192xf32> to vector<8x96xf32>
    %137 = vector.extract_strided_slice %127 {offsets = [0, 0], sizes = [8, 32], strides = [1, 1]} : vector<8x96xf32> to vector<8x32xf32>
    %138 = vector.extract_strided_slice %136 {offsets = [0, 0], sizes = [8, 32], strides = [1, 1]} : vector<8x96xf32> to vector<8x32xf32>
    %139 = arith.addf %137, %138 : vector<8x32xf32>
    %140 = arith.negf %139 : vector<8x32xf32>
    %141 = math.exp %140 : vector<8x32xf32>
    %cst_50 = arith.constant 1.000000e+00 : f32
    %142 = vector.broadcast %cst_50 : f32 to vector<8x32xf32>
    %143 = arith.addf %142, %141 : vector<8x32xf32>
    %144 = arith.divf %142, %143 : vector<8x32xf32>
    %145 = vector.extract_strided_slice %127 {offsets = [0, 32], sizes = [8, 32], strides = [1, 1]} : vector<8x96xf32> to vector<8x32xf32>
    %146 = vector.extract_strided_slice %136 {offsets = [0, 32], sizes = [8, 32], strides = [1, 1]} : vector<8x96xf32> to vector<8x32xf32>
    %147 = arith.addf %145, %146 : vector<8x32xf32>
    %148 = arith.negf %147 : vector<8x32xf32>
    %149 = math.exp %148 : vector<8x32xf32>
    %cst_51 = arith.constant 1.000000e+00 : f32
    %150 = vector.broadcast %cst_51 : f32 to vector<8x32xf32>
    %151 = arith.addf %150, %149 : vector<8x32xf32>
    %152 = arith.divf %150, %151 : vector<8x32xf32>
    %153 = vector.extract_strided_slice %127 {offsets = [0, 64], sizes = [8, 32], strides = [1, 1]} : vector<8x96xf32> to vector<8x32xf32>
    %154 = vector.extract_strided_slice %136 {offsets = [0, 64], sizes = [8, 32], strides = [1, 1]} : vector<8x96xf32> to vector<8x32xf32>
    %155 = arith.mulf %144, %154 : vector<8x32xf32>
    %156 = arith.addf %153, %155 : vector<8x32xf32>
    %157 = math.tanh %156 : vector<8x32xf32>
    %cst_52 = arith.constant 1.000000e+00 : f32
    %158 = vector.broadcast %cst_52 : f32 to vector<8x32xf32>
    %159 = arith.subf %158, %152 : vector<8x32xf32>
    %160 = arith.mulf %159, %157 : vector<8x32xf32>
    %161 = arith.mulf %152, %90 : vector<8x32xf32>
    %162 = arith.addf %160, %161 : vector<8x32xf32>
    %163 = vector.extract_strided_slice %135 {offsets = [0, 96], sizes = [8, 96], strides = [1, 1]} : vector<8x192xf32> to vector<8x96xf32>
    %164 = vector.extract_strided_slice %130 {offsets = [0, 0], sizes = [8, 32], strides = [1, 1]} : vector<8x96xf32> to vector<8x32xf32>
    %165 = vector.extract_strided_slice %163 {offsets = [0, 0], sizes = [8, 32], strides = [1, 1]} : vector<8x96xf32> to vector<8x32xf32>
    %166 = arith.addf %164, %165 : vector<8x32xf32>
    %167 = arith.negf %166 : vector<8x32xf32>
    %168 = math.exp %167 : vector<8x32xf32>
    %cst_53 = arith.constant 1.000000e+00 : f32
    %169 = vector.broadcast %cst_53 : f32 to vector<8x32xf32>
    %170 = arith.addf %169, %168 : vector<8x32xf32>
    %171 = arith.divf %169, %170 : vector<8x32xf32>
    %172 = vector.extract_strided_slice %130 {offsets = [0, 32], sizes = [8, 32], strides = [1, 1]} : vector<8x96xf32> to vector<8x32xf32>
    %173 = vector.extract_strided_slice %163 {offsets = [0, 32], sizes = [8, 32], strides = [1, 1]} : vector<8x96xf32> to vector<8x32xf32>
    %174 = arith.addf %172, %173 : vector<8x32xf32>
    %175 = arith.negf %174 : vector<8x32xf32>
    %176 = math.exp %175 : vector<8x32xf32>
    %cst_54 = arith.constant 1.000000e+00 : f32
    %177 = vector.broadcast %cst_54 : f32 to vector<8x32xf32>
    %178 = arith.addf %177, %176 : vector<8x32xf32>
    %179 = arith.divf %177, %178 : vector<8x32xf32>
    %180 = vector.extract_strided_slice %130 {offsets = [0, 64], sizes = [8, 32], strides = [1, 1]} : vector<8x96xf32> to vector<8x32xf32>
    %181 = vector.extract_strided_slice %163 {offsets = [0, 64], sizes = [8, 32], strides = [1, 1]} : vector<8x96xf32> to vector<8x32xf32>
    %182 = arith.mulf %171, %181 : vector<8x32xf32>
    %183 = arith.addf %180, %182 : vector<8x32xf32>
    %184 = math.tanh %183 : vector<8x32xf32>
    %cst_55 = arith.constant 1.000000e+00 : f32
    %185 = vector.broadcast %cst_55 : f32 to vector<8x32xf32>
    %186 = arith.subf %185, %179 : vector<8x32xf32>
    %187 = arith.mulf %186, %184 : vector<8x32xf32>
    %188 = arith.mulf %179, %117 : vector<8x32xf32>
    %189 = arith.addf %187, %188 : vector<8x32xf32>
    %190 = vector.shape_cast %162 : vector<8x32xf32> to vector<1x8x32xf32>
    %191 = arith.index_cast %c1_i32_43 : i32 to index
    %c0_56 = arith.constant 0 : index
    %c0_57 = arith.constant 0 : index
    %192 = vector.load %arg8[%191, %c0_56, %c0_57] : memref<2x8x64xf32, #tpu.memory_space<vmem>>, vector<1x8x32xf32>
    tpu.vector_store %arg8[%191, %c0_56, %c0_57], %190 {strides = array<i32>} : memref<2x8x64xf32, #tpu.memory_space<vmem>>, vector<1x8x32xf32>,
    %193 = vector.shape_cast %189 : vector<8x32xf32> to vector<1x8x32xf32>
    %194 = arith.index_cast %124 : i32 to index
    %c0_58 = arith.constant 0 : index
    %c32_59 = arith.constant 32 : index
    %195 = vector.load %arg8[%194, %c0_58, %c32_59] : memref<2x8x64xf32, #tpu.memory_space<vmem>>, vector<1x8x32xf32>
    tpu.vector_store %arg8[%194, %c0_58, %c32_59], %193 {strides = array<i32>} : memref<2x8x64xf32, #tpu.memory_space<vmem>>, vector<1x8x32xf32>,
    %c2_i32 = arith.constant 2 : i32
    return
  }
  func.func @transform_0(%arg0: i32) -> (i32, i32, i32) {
    %c0_i32 = arith.constant 0 : i32
    %c0_i32_0 = arith.constant 0 : i32
    %c0_i32_1 = arith.constant 0 : i32
    return %c0_i32, %arg0, %c0_i32_0 : i32, i32, i32
  }
  func.func @transform_1(%arg0: i32) -> (i32, i32) {
    %c0_i32 = arith.constant 0 : i32
    %c0_i32_0 = arith.constant 0 : i32
    %c0_i32_1 = arith.constant 0 : i32
    return %c0_i32, %c0_i32_0 : i32, i32
  }
  func.func @transform_2(%arg0: i32) -> (i32, i32) {
    %c0_i32 = arith.constant 0 : i32
    %c0_i32_0 = arith.constant 0 : i32
    %c0_i32_1 = arith.constant 0 : i32
    return %c0_i32, %c0_i32_0 : i32, i32
  }
  func.func @transform_3(%arg0: i32) -> (i32, i32) {
    %c0_i32 = arith.constant 0 : i32
    %c0_i32_0 = arith.constant 0 : i32
    %c0_i32_1 = arith.constant 0 : i32
    return %c0_i32, %c0_i32_0 : i32, i32
  }
  func.func @transform_4(%arg0: i32) -> (i32, i32) {
    %c0_i32 = arith.constant 0 : i32
    %c0_i32_0 = arith.constant 0 : i32
    %c0_i32_1 = arith.constant 0 : i32
    return %c0_i32, %c0_i32_0 : i32, i32
  }
  func.func @transform_5(%arg0: i32) -> (i32, i32) {
    %c0_i32 = arith.constant 0 : i32
    %c0_i32_0 = arith.constant 0 : i32
    %c0_i32_1 = arith.constant 0 : i32
    return %c0_i32, %c0_i32_0 : i32, i32
  }
  func.func @transform_6(%arg0: i32) -> (i32, i32) {
    %c0_i32 = arith.constant 0 : i32
    %c0_i32_0 = arith.constant 0 : i32
    %c0_i32_1 = arith.constant 0 : i32
    return %c0_i32, %c0_i32_0 : i32, i32
  }
  func.func @transform_7(%arg0: i32) -> (i32, i32, i32) {
    %c0_i32 = arith.constant 0 : i32
    %c0_i32_0 = arith.constant 0 : i32
    %c0_i32_1 = arith.constant 0 : i32
    return %c0_i32, %arg0, %c0_i32_0 : i32, i32, i32
  }
}

</mosaic_0001>

<llo_original>
// kernel: conv_listener_forward.7
$region0: #{conv_listener_forward.7}
  #allocation0 [shape = 'u32[]', space=smem, size = 0x4, offset = 0x4, fixed_abs, tag = 'smem constant byte address 0x4 - core index']
  #allocation1 [shape = 'u32[144,128]{1,0:T(1,128)}', space=vmem, size = 0x12000, scoped, tag = 'internal scratch']
  %s0 = inlined_call_operand.vmem [shape: f32[2,8,64], index: 0, kind: input, shape index: {}]
  %s1 = inlined_call_operand.vmem [shape: f32[64,32], index: 1, kind: input, shape index: {}]
  %s2 = inlined_call_operand.vmem [shape: f32[1,32], index: 2, kind: input, shape index: {}]
  %s3 = inlined_call_operand.vmem [shape: f32[2,8,32], index: 3, kind: output, shape index: {}]
  %s4 = sld [smem:[#allocation0]]
  $region45: #{conv_listener_forward.7} parent=0
    _
  %s6 = ssub.s32 1, %s4
  %s7 = scalar_select 0, %s6, %s4
  loop: start=0, step=1, limit=4
  $region2: #{conv_listener_forward.7} parent=0 // loop_pre_header
    _
  $region3: #{conv_listener_forward.7} parent=0 // loop_header
    %s9 = sphi 0, %s13
    %p10 = scmp.ge.s32.totalorder %s9, 4
    %s19 = sphi 0, %s21
    %s22 = sphi 0, %s19
    %s23 = sphi 0, %s22
    %s39 = sphi 0, %s23
    %s43 = sphi 0, %s43
    %s45 = sphi 0, %s43
    %s46 = sphi 0, %s45
    %s60 = sphi 0, %s46
    %s64 = sphi 0, %s64
    %s66 = sphi 0, %s64
    %s67 = sphi 0, %s66
    %s81 = sphi 0, %s67
    %s87 = sphi 0, %s89
    %s90 = sphi 0, %s87
    %s91 = sphi 0, %s90
    %s107 = sphi 0, %s91
  $region4: #{conv_listener_forward.7} parent=0 // loop_header_branch
    %12 = sbr.rel (%p10) target = $region8
  $region5: #{conv_listener_forward.7} parent=0 // loop_body
    %s14 = ssub.s32 %s9, 1
    %s15 = ssub.s32 %s9, 2
    %s16 = sadd.s32 %s9, 1
    %s17 = ssub.s32 %s9, %s16
    %p18 = scmp.eq.s32.totalorder %s17, 0
    %s20 = sadd.s32 %s19, 1
    %s21 = scalar_select %p18, %s19, %s20
    %p24 = pneg %p18
    %p25 = scmp.eq.s32.totalorder %s9, 1
    %p26 = por %p24, %p25
    %p27 = scmp.ne.s32.totalorder %s19, %s22
    %p28 = scmp.eq.s32.totalorder %s9, 0
    %p29 = por %p27, %p28
    %p30 = scmp.ne.s32.totalorder %s19, %s22
    %p31 = scmp.eq.s32.totalorder %s14, 1
    %p32 = por %p30, %p31
    %p33 = scmp.ne.s32.totalorder %s22, %s23
    %p34 = scmp.eq.s32.totalorder %s14, 0
    %p35 = por %p33, %p34
    %p36 = scmp.ne.s32.totalorder %s22, %s23
    %p37 = scmp.eq.s32.totalorder %s15, 1
    %p38 = por %p36, %p37
    %p40 = scmp.ne.s32.totalorder %s23, %s39
    %p41 = scmp.eq.s32.totalorder %s15, 0
    %p42 = por %p40, %p41
    %s44 = sadd.s32 %s43, 1
    %p47 = scmp.eq.s32.totalorder %s9, 1
    %p48 = scmp.ne.s32.totalorder %s43, %s45
    %p49 = scmp.eq.s32.totalorder %s9, 0
    %p50 = por %p48, %p49
    %p51 = scmp.ne.s32.totalorder %s43, %s45
    %p52 = scmp.eq.s32.totalorder %s14, 1
    %p53 = por %p51, %p52
    %p54 = scmp.ne.s32.totalorder %s45, %s46
    %p55 = scmp.eq.s32.totalorder %s14, 0
    %p56 = por %p54, %p55
    %p57 = scmp.ne.s32.totalorder %s45, %s46
    %p58 = scmp.eq.s32.totalorder %s15, 1
    %p59 = por %p57, %p58
    %p61 = scmp.ne.s32.totalorder %s46, %s60
    %p62 = scmp.eq.s32.totalorder %s15, 0
    %p63 = por %p61, %p62
    %s65 = sadd.s32 %s64, 1
    %p68 = scmp.eq.s32.totalorder %s9, 1
    %p69 = scmp.ne.s32.totalorder %s64, %s66
    %p70 = scmp.eq.s32.totalorder %s9, 0
    %p71 = por %p69, %p70
    %p72 = scmp.ne.s32.totalorder %s64, %s66
    %p73 = scmp.eq.s32.totalorder %s14, 1
    %p74 = por %p72, %p73
    %p75 = scmp.ne.s32.totalorder %s66, %s67
    %p76 = scmp.eq.s32.totalorder %s14, 0
    %p77 = por %p75, %p76
    %p78 = scmp.ne.s32.totalorder %s66, %s67
    %p79 = scmp.eq.s32.totalorder %s15, 1
    %p80 = por %p78, %p79
    %p82 = scmp.ne.s32.totalorder %s67, %s81
    %p83 = scmp.eq.s32.totalorder %s15, 0
    %p84 = por %p82, %p83
    %s85 = ssub.s32 %s9, %s16
    %p86 = scmp.eq.s32.totalorder %s85, 0
    %s88 = sadd.s32 %s87, 1
    %s89 = scalar_select %p86, %s87, %s88
    %p92 = pneg %p86
    %p93 = scmp.eq.s32.totalorder %s9, 1
    %p94 = por %p92, %p93
    %p95 = scmp.ne.s32.totalorder %s87, %s90
    %p96 = scmp.eq.s32.totalorder %s9, 0
    %p97 = por %p95, %p96
    %p98 = scmp.ne.s32.totalorder %s87, %s90
    %p99 = scmp.eq.s32.totalorder %s14, 1
    %p100 = por %p98, %p99
    %p101 = scmp.ne.s32.totalorder %s90, %s91
    %p102 = scmp.eq.s32.totalorder %s14, 0
    %p103 = por %p101, %p102
    %p104 = scmp.ne.s32.totalorder %s90, %s91
    %p105 = scmp.eq.s32.totalorder %s15, 1
    %p106 = por %p104, %p105
    %p108 = scmp.ne.s32.totalorder %s91, %s107
    %p109 = scmp.eq.s32.totalorder %s15, 0
    %p110 = por %p108, %p109
    %p111 = scmp.le.s32.totalorder 1, %s9
    %p112 = scmp.lt.s32.totalorder %s9, 3
    %p113 = pnand %p111, %p112
    %p114 = pneg %p113
    // Predicated region
    $region9: #{conv_listener_forward.7} parent=5 // pred_check
      _
    $region10: #{conv_listener_forward.7} parent=5 // pred_check_branch
      %116 = sbr.rel (%p113) target = $region12
    $region11: #{conv_listener_forward.7} parent=5 // pred_region
      %s117 = ssub.s32 %s9, 1
      // Predicated region
      $region13: #{conv_listener_forward.7} parent=11 // pred_check
        %p118 = pneg %p56
      $region14: #{conv_listener_forward.7} parent=11 // pred_check_branch
        %120 = sbr.rel (%p118) target = $region16
      $region15: #{conv_listener_forward.7} parent=11 // pred_region
        _
      $region16: #{conv_listener_forward.7} parent=11 // pred_fallthru
        _
      // Predicated region
      $region17: #{conv_listener_forward.7} parent=11 // pred_check
        %p121 = pneg %p77
      $region18: #{conv_listener_forward.7} parent=11 // pred_check_branch
        %123 = sbr.rel (%p121) target = $region20
      $region19: #{conv_listener_forward.7} parent=11 // pred_region
        _
      $region20: #{conv_listener_forward.7} parent=11 // pred_fallthru
        _
    $region12: #{conv_listener_forward.7} parent=5 // pred_fallthru
      _
    %p124 = scmp.lt.s32.totalorder %s9, 2
    // Predicated region
    $region21: #{conv_listener_forward.7} parent=5 // pred_check
      %p125 = pneg %p124
    $region22: #{conv_listener_forward.7} parent=5 // pred_check_branch
      %127 = sbr.rel (%p125) target = $region24
    $region23: #{conv_listener_forward.7} parent=5 // pred_region
      // Predicated region
      $region25: #{conv_listener_forward.7} parent=23 // pred_check
        %p128 = pneg %p29
      $region26: #{conv_listener_forward.7} parent=23 // pred_check_branch
        %130 = sbr.rel (%p128) target = $region28
      $region27: #{conv_listener_forward.7} parent=23 // pred_region
        %p131 = scmp.lt.s32.totalorder %s9, 1
        %s132 = scalar_select %p131, %s9, 1
        %s133 = smul.addr %s132, 8
        %s134 = scalar_lea.vmem %s0, %s133
      $region28: #{conv_listener_forward.7} parent=23 // pred_fallthru
        _
    $region24: #{conv_listener_forward.7} parent=5 // pred_fallthru
      _
    %p135 = scmp.le.s32.totalorder 1, %s9
    %p136 = scmp.lt.s32.totalorder %s9, 3
    %p137 = pnand %p135, %p136
    %p138 = pneg %p137
    // Predicated region
    $region29: #{conv_listener_forward.7} parent=5 // pred_check
      _
    $region30: #{conv_listener_forward.7} parent=5 // pred_check_branch
      %140 = sbr.rel (%p137) target = $region32
    $region31: #{conv_listener_forward.7} parent=5 // pred_region
      %s141 = ssub.s32 %s9, 1
      %p142 = scmp.lt.s32.totalorder %s14, 1
      %s143 = scalar_select %p142, %s14, 1
      %s144 = smul.addr %s143, 8
      %s145 = scalar_lea.vmem %s0, %s144
      %p146 = pneg %p35
      %p147 = pneg %p32
      %p148 = pneg %p56
      %p149 = pneg %p53
      %p150 = pneg %p77
      %p151 = pneg %p74
      %p152 = pneg %p103
      %p153 = pneg %p100
      %p154 = scmp.lt.s32.totalorder %s14, 1
      %s155 = scalar_select %p154, %s14, 1
      %s156 = smul.addr %s155, 8
      %s157 = scalar_lea.vmem %s3, %s156
      %p158 = scmp.lt.s32.totalorder %s14, 1
      %s159 = scalar_select %p158, %s14, 1
      %s160 = smul.addr %s159, 8
      %s161 = scalar_lea.vmem %s0, %s160
      %p162 = scmp.lt.s32.totalorder %s14, 1
      %s163 = scalar_select %p162, %s14, 1
      %s164 = smul.addr %s163, 8
      %s165 = scalar_lea.vmem %s3, %s164
      %v167 = vld [vmem:[%s161] sm:$0xff]
      %v168 = vld [vmem:[%s1] sm:$0xff]
      %v169 = vld [vmem:[%s1 + $0x8] sm:$0xff]
      %v170 = vld [vmem:[%s1 + $0x10] sm:$0xff]
      %v171 = vld [vmem:[%s1 + $0x18] sm:$0xff]
      %v172 = vld [vmem:[%s1 + $0x20] sm:$0xff]
      %v173 = vld [vmem:[%s1 + $0x28] sm:$0xff]
      %v174 = vld [vmem:[%s1 + $0x30] sm:$0xff]
      %v175 = vld [vmem:[%s1 + $0x38] sm:$0xff]
      %v176 = vpack.c.bf16 %v167, %v167
      %v177 = vpack.c.bf16 %v169, %v168
      %v178 = vpack.c.bf16 %v171, %v170
      %v179 = vpack.c.bf16 %v173, %v172
      %v180 = vpack.c.bf16 %v175, %v174
      %v181 = vld [vmem:[%s2] sm:$0x1]
      %v183 = vlaneseq
      %v184 = vshrl.u32 %v183, 7
      %v185 = vsub.s32 0, %v184
      %v186 = vrot.slane %v181, %v185
      %vm188 = vcmask 523264
      %v190 = vsel %vm188, %v176, 0
      %192 = vmatprep.subr.bf16.mxu0 0
      %193 = vmatpush1.bf16.msra.mxu0 %v177
      %194 = vmatprep.subr.bf16.mxu0 0
      %195 = vmatpush1.bf16.msra.mxu0 %v178
      %196 = vmatprep.subr.bf16.mxu0 0
      %197 = vmatpush1.bf16.msra.mxu0 %v179
      %198 = vmatprep.subr.bf16.mxu0 0
      %199 = vmatpush1.bf16.msra.mxu0 %v180
      %200 = vmatprep.subr.bf16.mxu0 0
      %201 = vmatpush1.bf16.msra.mxu0 0
      %202 = vmatprep.subr.bf16.mxu0 0
      %203 = vmatpush1.bf16.msra.mxu0 0
      %204 = vmatprep.subr.bf16.mxu0 0
      %205 = vmatpush1.bf16.msra.mxu0 0
      %206 = vmatprep.subr.bf16.mxu0 0
      %207 = vmatpush1.bf16.msra.mxu0 0
      %208 = vmatprep.subr.bf16.mxu0 0
      %209 = vmatpush1.bf16.msra.mxu0 0
      %210 = vmatprep.subr.bf16.mxu0 0
      %211 = vmatpush1.bf16.msra.mxu0 0
      %212 = vmatprep.subr.bf16.mxu0 0
      %213 = vmatpush1.bf16.msra.mxu0 0
      %214 = vmatprep.subr.bf16.mxu0 0
      %215 = vmatpush1.bf16.msra.mxu0 0
      %216 = vmatprep.subr.bf16.mxu0 0
      %217 = vmatpush1.bf16.msra.mxu0 0
      %218 = vmatprep.subr.bf16.mxu0 0
      %219 = vmatpush1.bf16.msra.mxu0 0
      %220 = vmatprep.subr.bf16.mxu0 0
      %221 = vmatpush1.bf16.msra.mxu0 0
      %222 = vmatprep.subr.bf16.mxu0 0
      %223 = vmatpush1.bf16.msra.mxu0 0
      %224 = vmatprep.mubr.bf16.mxu0 0
      %225 = vmatmul.mubr.bf16.gmra.mrb[0].mxu0 %v190
      %v226 = vpop.f32.mrb[0].mxu0
      %v227 = vadd.f32 %v186, %v226
      %v228 = vpop.f32.mrb[0].mxu0
      %v229 = vpop.f32.mrb[0].mxu0
      %v230 = vpop.f32.mrb[0].mxu0
      %231 = vdwg.mxu0
      %vm232 = vcmask 261120
      %233 = vst.msk [vmem:[%s165] sm:$0xff] %vm232, %v227
      %p234 = scmp.lt.s32.totalorder %s14, 1
      %s235 = scalar_select %p234, %s14, 1
      %s236 = smul.addr %s235, 8
      %s237 = scalar_lea.vmem %s3, %s236
      // Predicated region
      $region33: #{conv_listener_forward.7} parent=31 // pred_check
        %p238 = pneg %p100
      $region34: #{conv_listener_forward.7} parent=31 // pred_check_branch
        %240 = sbr.rel (%p238) target = $region36
      $region35: #{conv_listener_forward.7} parent=31 // pred_region
        _
      $region36: #{conv_listener_forward.7} parent=31 // pred_fallthru
        _
    $region32: #{conv_listener_forward.7} parent=5 // pred_fallthru
      _
    %p241 = scmp.le.s32.totalorder 2, %s9
    // Predicated region
    $region37: #{conv_listener_forward.7} parent=5 // pred_check
      %p242 = pneg %p241
    $region38: #{conv_listener_forward.7} parent=5 // pred_check_branch
      %244 = sbr.rel (%p242) target = $region40
    $region39: #{conv_listener_forward.7} parent=5 // pred_region
      %s245 = ssub.s32 %s9, 2
      // Predicated region
      $region41: #{conv_listener_forward.7} parent=39 // pred_check
        %p246 = pneg %p106
      $region42: #{conv_listener_forward.7} parent=39 // pred_check_branch
        %248 = sbr.rel (%p246) target = $region44
      $region43: #{conv_listener_forward.7} parent=39 // pred_region
        %p249 = scmp.lt.s32.totalorder %s15, 1
        %s250 = scalar_select %p249, %s15, 1
        %s251 = smul.addr %s250, 8
        %s252 = scalar_lea.vmem %s3, %s251
      $region44: #{conv_listener_forward.7} parent=39 // pred_fallthru
        _
    $region40: #{conv_listener_forward.7} parent=5 // pred_fallthru
      _
  $region6: #{conv_listener_forward.7} parent=0 // loop_footer
    %s13 = sadd.s32 1, %s9
  $region7: #{conv_listener_forward.7} parent=0 // loop_footer_branch
    %8 = sbr.rel target = $region3
  $region8: #{conv_listener_forward.7} parent=0 // loop_exit
    _

// kernel: conv_listener_forward.5
$region0: #{conv_listener_forward.5}
  #allocation0 [shape = 'u32[]', space=smem, size = 0x4, offset = 0x4, fixed_abs, tag = 'smem constant byte address 0x4 - core index']
  #allocation1 [shape = 'u32[144,128]{1,0:T(1,128)}', space=vmem, size = 0x12000, scoped, tag = 'internal scratch']
  %s0 = inlined_call_operand.vmem [shape: f32[2,8,231], index: 0, kind: input, shape index: {}]
  %s1 = inlined_call_operand.vmem [shape: f32[231,64], index: 1, kind: input, shape index: {}]
  %s2 = inlined_call_operand.vmem [shape: f32[1,64], index: 2, kind: input, shape index: {}]
  %s3 = inlined_call_operand.vmem [shape: f32[2,8,64], index: 3, kind: output, shape index: {}]
  %s4 = sld [smem:[#allocation0]]
  $region45: #{conv_listener_forward.5} parent=0
    _
  %s6 = ssub.s32 1, %s4
  %s7 = scalar_select 0, %s6, %s4
  loop: start=0, step=1, limit=4
  $region2: #{conv_listener_forward.5} parent=0 // loop_pre_header
    _
  $region3: #{conv_listener_forward.5} parent=0 // loop_header
    %s9 = sphi 0, %s13
    %p10 = scmp.ge.s32.totalorder %s9, 4
    %s19 = sphi 0, %s21
    %s22 = sphi 0, %s19
    %s23 = sphi 0, %s22
    %s39 = sphi 0, %s23
    %s43 = sphi 0, %s43
    %s45 = sphi 0, %s43
    %s46 = sphi 0, %s45
    %s60 = sphi 0, %s46
    %s64 = sphi 0, %s64
    %s66 = sphi 0, %s64
    %s67 = sphi 0, %s66
    %s81 = sphi 0, %s67
    %s87 = sphi 0, %s89
    %s90 = sphi 0, %s87
    %s91 = sphi 0, %s90
    %s107 = sphi 0, %s91
  $region4: #{conv_listener_forward.5} parent=0 // loop_header_branch
    %12 = sbr.rel (%p10) target = $region8
  $region5: #{conv_listener_forward.5} parent=0 // loop_body
    %s14 = ssub.s32 %s9, 1
    %s15 = ssub.s32 %s9, 2
    %s16 = sadd.s32 %s9, 1
    %s17 = ssub.s32 %s9, %s16
    %p18 = scmp.eq.s32.totalorder %s17, 0
    %s20 = sadd.s32 %s19, 1
    %s21 = scalar_select %p18, %s19, %s20
    %p24 = pneg %p18
    %p25 = scmp.eq.s32.totalorder %s9, 1
    %p26 = por %p24, %p25
    %p27 = scmp.ne.s32.totalorder %s19, %s22
    %p28 = scmp.eq.s32.totalorder %s9, 0
    %p29 = por %p27, %p28
    %p30 = scmp.ne.s32.totalorder %s19, %s22
    %p31 = scmp.eq.s32.totalorder %s14, 1
    %p32 = por %p30, %p31
    %p33 = scmp.ne.s32.totalorder %s22, %s23
    %p34 = scmp.eq.s32.totalorder %s14, 0
    %p35 = por %p33, %p34
    %p36 = scmp.ne.s32.totalorder %s22, %s23
    %p37 = scmp.eq.s32.totalorder %s15, 1
    %p38 = por %p36, %p37
    %p40 = scmp.ne.s32.totalorder %s23, %s39
    %p41 = scmp.eq.s32.totalorder %s15, 0
    %p42 = por %p40, %p41
    %s44 = sadd.s32 %s43, 1
    %p47 = scmp.eq.s32.totalorder %s9, 1
    %p48 = scmp.ne.s32.totalorder %s43, %s45
    %p49 = scmp.eq.s32.totalorder %s9, 0
    %p50 = por %p48, %p49
    %p51 = scmp.ne.s32.totalorder %s43, %s45
    %p52 = scmp.eq.s32.totalorder %s14, 1
    %p53 = por %p51, %p52
    %p54 = scmp.ne.s32.totalorder %s45, %s46
    %p55 = scmp.eq.s32.totalorder %s14, 0
    %p56 = por %p54, %p55
    %p57 = scmp.ne.s32.totalorder %s45, %s46
    %p58 = scmp.eq.s32.totalorder %s15, 1
    %p59 = por %p57, %p58
    %p61 = scmp.ne.s32.totalorder %s46, %s60
    %p62 = scmp.eq.s32.totalorder %s15, 0
    %p63 = por %p61, %p62
    %s65 = sadd.s32 %s64, 1
    %p68 = scmp.eq.s32.totalorder %s9, 1
    %p69 = scmp.ne.s32.totalorder %s64, %s66
    %p70 = scmp.eq.s32.totalorder %s9, 0
    %p71 = por %p69, %p70
    %p72 = scmp.ne.s32.totalorder %s64, %s66
    %p73 = scmp.eq.s32.totalorder %s14, 1
    %p74 = por %p72, %p73
    %p75 = scmp.ne.s32.totalorder %s66, %s67
    %p76 = scmp.eq.s32.totalorder %s14, 0
    %p77 = por %p75, %p76
    %p78 = scmp.ne.s32.totalorder %s66, %s67
    %p79 = scmp.eq.s32.totalorder %s15, 1
    %p80 = por %p78, %p79
    %p82 = scmp.ne.s32.totalorder %s67, %s81
    %p83 = scmp.eq.s32.totalorder %s15, 0
    %p84 = por %p82, %p83
    %s85 = ssub.s32 %s9, %s16
    %p86 = scmp.eq.s32.totalorder %s85, 0
    %s88 = sadd.s32 %s87, 1
    %s89 = scalar_select %p86, %s87, %s88
    %p92 = pneg %p86
    %p93 = scmp.eq.s32.totalorder %s9, 1
    %p94 = por %p92, %p93
    %p95 = scmp.ne.s32.totalorder %s87, %s90
    %p96 = scmp.eq.s32.totalorder %s9, 0
    %p97 = por %p95, %p96
    %p98 = scmp.ne.s32.totalorder %s87, %s90
    %p99 = scmp.eq.s32.totalorder %s14, 1
    %p100 = por %p98, %p99
    %p101 = scmp.ne.s32.totalorder %s90, %s91
    %p102 = scmp.eq.s32.totalorder %s14, 0
    %p103 = por %p101, %p102
    %p104 = scmp.ne.s32.totalorder %s90, %s91
    %p105 = scmp.eq.s32.totalorder %s15, 1
    %p106 = por %p104, %p105
    %p108 = scmp.ne.s32.totalorder %s91, %s107
    %p109 = scmp.eq.s32.totalorder %s15, 0
    %p110 = por %p108, %p109
    %p111 = scmp.le.s32.totalorder 1, %s9
    %p112 = scmp.lt.s32.totalorder %s9, 3
    %p113 = pnand %p111, %p112
    %p114 = pneg %p113
    // Predicated region
    $region9: #{conv_listener_forward.5} parent=5 // pred_check
      _
    $region10: #{conv_listener_forward.5} parent=5 // pred_check_branch
      %116 = sbr.rel (%p113) target = $region12
    $region11: #{conv_listener_forward.5} parent=5 // pred_region
      %s117 = ssub.s32 %s9, 1
      // Predicated region
      $region13: #{conv_listener_forward.5} parent=11 // pred_check
        %p118 = pneg %p56
      $region14: #{conv_listener_forward.5} parent=11 // pred_check_branch
        %120 = sbr.rel (%p118) target = $region16
      $region15: #{conv_listener_forward.5} parent=11 // pred_region
        _
      $region16: #{conv_listener_forward.5} parent=11 // pred_fallthru
        _
      // Predicated region
      $region17: #{conv_listener_forward.5} parent=11 // pred_check
        %p121 = pneg %p77
      $region18: #{conv_listener_forward.5} parent=11 // pred_check_branch
        %123 = sbr.rel (%p121) target = $region20
      $region19: #{conv_listener_forward.5} parent=11 // pred_region
        _
      $region20: #{conv_listener_forward.5} parent=11 // pred_fallthru
        _
    $region12: #{conv_listener_forward.5} parent=5 // pred_fallthru
      _
    %p124 = scmp.lt.s32.totalorder %s9, 2
    // Predicated region
    $region21: #{conv_listener_forward.5} parent=5 // pred_check
      %p125 = pneg %p124
    $region22: #{conv_listener_forward.5} parent=5 // pred_check_branch
      %127 = sbr.rel (%p125) target = $region24
    $region23: #{conv_listener_forward.5} parent=5 // pred_region
      // Predicated region
      $region25: #{conv_listener_forward.5} parent=23 // pred_check
        %p128 = pneg %p29
      $region26: #{conv_listener_forward.5} parent=23 // pred_check_branch
        %130 = sbr.rel (%p128) target = $region28
      $region27: #{conv_listener_forward.5} parent=23 // pred_region
        %p131 = scmp.lt.s32.totalorder %s9, 1
        %s132 = scalar_select %p131, %s9, 1
        %s133 = smul.addr %s132, 2
        %s134 = smul.addr %s133, 8
        %s135 = scalar_lea.vmem %s0, %s134
      $region28: #{conv_listener_forward.5} parent=23 // pred_fallthru
        _
    $region24: #{conv_listener_forward.5} parent=5 // pred_fallthru
      _
    %p136 = scmp.le.s32.totalorder 1, %s9
    %p137 = scmp.lt.s32.totalorder %s9, 3
    %p138 = pnand %p136, %p137
    %p139 = pneg %p138
    // Predicated region
    $region29: #{conv_listener_forward.5} parent=5 // pred_check
      _
    $region30: #{conv_listener_forward.5} parent=5 // pred_check_branch
      %141 = sbr.rel (%p138) target = $region32
    $region31: #{conv_listener_forward.5} parent=5 // pred_region
      %s142 = ssub.s32 %s9, 1
      %p143 = scmp.lt.s32.totalorder %s14, 1
      %s144 = scalar_select %p143, %s14, 1
      %s145 = smul.addr %s144, 2
      %s146 = smul.addr %s145, 8
      %s147 = scalar_lea.vmem %s0, %s146
      %p148 = pneg %p35
      %p149 = pneg %p32
      %p150 = pneg %p56
      %p151 = pneg %p53
      %p152 = pneg %p77
      %p153 = pneg %p74
      %p154 = pneg %p103
      %p155 = pneg %p100
      %p156 = scmp.lt.s32.totalorder %s14, 1
      %s157 = scalar_select %p156, %s14, 1
      %s158 = smul.addr %s157, 8
      %s159 = scalar_lea.vmem %s3, %s158
      %p160 = scmp.lt.s32.totalorder %s14, 1
      %s161 = scalar_select %p160, %s14, 1
      %s162 = smul.addr %s161, 2
      %s163 = smul.addr %s162, 8
      %s164 = scalar_lea.vmem %s0, %s163
      %p165 = scmp.lt.s32.totalorder %s14, 1
      %s166 = scalar_select %p165, %s14, 1
      %s167 = smul.addr %s166, 8
      %s168 = scalar_lea.vmem %s3, %s167
      %v170 = vld [vmem:[%s164] sm:$0xff]
      %v171 = vld [vmem:[%s164 + $0x8] sm:$0xff]
      %v172 = vld [vmem:[%s1] sm:$0xff]
      %v173 = vld [vmem:[%s1 + $0x8] sm:$0xff]
      %v174 = vld [vmem:[%s1 + $0x10] sm:$0xff]
      %v175 = vld [vmem:[%s1 + $0x18] sm:$0xff]
      %v176 = vld [vmem:[%s1 + $0x20] sm:$0xff]
      %v177 = vld [vmem:[%s1 + $0x28] sm:$0xff]
      %v178 = vld [vmem:[%s1 + $0x30] sm:$0xff]
      %v179 = vld [vmem:[%s1 + $0x38] sm:$0xff]
      %v180 = vld [vmem:[%s1 + $0x40] sm:$0xff]
      %v181 = vld [vmem:[%s1 + $0x48] sm:$0xff]
      %v182 = vld [vmem:[%s1 + $0x50] sm:$0xff]
      %v183 = vld [vmem:[%s1 + $0x58] sm:$0xff]
      %v184 = vld [vmem:[%s1 + $0x60] sm:$0xff]
      %v185 = vld [vmem:[%s1 + $0x68] sm:$0xff]
      %v186 = vld [vmem:[%s1 + $0x70] sm:$0xff]
      %v187 = vld [vmem:[%s1 + $0x78] sm:$0xff]
      %v188 = vld [vmem:[%s1 + $0x80] sm:$0xff]
      %v189 = vld [vmem:[%s1 + $0x88] sm:$0xff]
      %v190 = vld [vmem:[%s1 + $0x90] sm:$0xff]
      %v191 = vld [vmem:[%s1 + $0x98] sm:$0xff]
      %v192 = vld [vmem:[%s1 + $0xa0] sm:$0xff]
      %v193 = vld [vmem:[%s1 + $0xa8] sm:$0xff]
      %v194 = vld [vmem:[%s1 + $0xb0] sm:$0xff]
      %v195 = vld [vmem:[%s1 + $0xb8] sm:$0xff]
      %v196 = vld [vmem:[%s1 + $0xc0] sm:$0xff]
      %v197 = vld [vmem:[%s1 + $0xc8] sm:$0xff]
      %v198 = vld [vmem:[%s1 + $0xd0] sm:$0xff]
      %v199 = vld [vmem:[%s1 + $0xd8] sm:$0xff]
      %v200 = vld [vmem:[%s1 + $0xe0] sm:$0x7f]
      %v201 = vpack.c.bf16 %v170, %v170
      %v202 = vpack.c.bf16 %v171, %v171
      %v203 = vpack.c.bf16 %v173, %v172
      %v204 = vpack.c.bf16 %v175, %v174
      %v205 = vpack.c.bf16 %v177, %v176
      %v206 = vpack.c.bf16 %v179, %v178
      %v207 = vpack.c.bf16 %v181, %v180
      %v208 = vpack.c.bf16 %v183, %v182
      %v209 = vpack.c.bf16 %v185, %v184
      %v210 = vpack.c.bf16 %v187, %v186
      %v211 = vpack.c.bf16 %v189, %v188
      %v212 = vpack.c.bf16 %v191, %v190
      %v213 = vpack.c.bf16 %v193, %v192
      %v214 = vpack.c.bf16 %v195, %v194
      %v215 = vpack.c.bf16 %v197, %v196
      %v216 = vpack.c.bf16 %v199, %v198
      %v217 = vpack.c.bf16 %v200, %v200
      %v218 = vld [vmem:[%s2] sm:$0x1]
      %v220 = vlaneseq
      %v221 = vshrl.u32 %v220, 7
      %v222 = vsub.s32 0, %v221
      %v223 = vrot.slane %v218, %v222
      %vm225 = vcmask 842752
      %v227 = vsel %vm225, %v202, 0
      %vm229 = vcmask 1042432
      %vm230 = vcmask 1043456
      %v231 = vsel %vm229, 4294967295, 65535
      %v232 = vsel %vm230, %v231, 0
      %v234 = vand.u32 %v217, %v232
      %236 = vmatprep.subr.bf16.mxu0 0
      %237 = vmatpush1.bf16.msra.mxu0 %v203
      %238 = vmatprep.subr.bf16.mxu0 0
      %239 = vmatpush1.bf16.msra.mxu0 %v204
      %240 = vmatprep.subr.bf16.mxu0 0
      %241 = vmatpush1.bf16.msra.mxu0 %v205
      %242 = vmatprep.subr.bf16.mxu0 0
      %243 = vmatpush1.bf16.msra.mxu0 %v206
      %244 = vmatprep.subr.bf16.mxu0 0
      %245 = vmatpush1.bf16.msra.mxu0 %v207
      %246 = vmatprep.subr.bf16.mxu0 0
      %247 = vmatpush1.bf16.msra.mxu0 %v208
      %248 = vmatprep.subr.bf16.mxu0 0
      %249 = vmatpush1.bf16.msra.mxu0 %v209
      %250 = vmatprep.subr.bf16.mxu0 0
      %251 = vmatpush1.bf16.msra.mxu0 %v210
      %252 = vmatprep.subr.bf16.mxu0 0
      %253 = vmatpush1.bf16.msra.mxu0 %v211
      %254 = vmatprep.subr.bf16.mxu0 0
      %255 = vmatpush1.bf16.msra.mxu0 %v212
      %256 = vmatprep.subr.bf16.mxu0 0
      %257 = vmatpush1.bf16.msra.mxu0 %v213
      %258 = vmatprep.subr.bf16.mxu0 0
      %259 = vmatpush1.bf16.msra.mxu0 %v214
      %260 = vmatprep.subr.bf16.mxu0 0
      %261 = vmatpush1.bf16.msra.mxu0 %v215
      %262 = vmatprep.subr.bf16.mxu0 0
      %263 = vmatpush1.bf16.msra.mxu0 %v216
      %264 = vmatprep.subr.bf16.mxu0 0
      %265 = vmatpush1.bf16.msra.mxu0 %v234
      %266 = vmatprep.subr.bf16.mxu0 0
      %267 = vmatpush1.bf16.msra.mxu0 0
      %268 = vmatprep.mubr.bf16.mxu0 %v227
      %269 = vmatmul.mubr.bf16.gmra.mrb[0].mxu0 %v201
      %v270 = vpop.f32.mrb[0].mxu0
      %v271 = vadd.f32 %v223, %v270
      %v272 = vpop.f32.mrb[0].mxu0
      %v273 = vpop.f32.mrb[0].mxu0
      %v274 = vpop.f32.mrb[0].mxu0
      %275 = vdwg.mxu0
      %vm276 = vcmask 523264
      %277 = vst.msk [vmem:[%s168] sm:$0xff] %vm276, %v271
      %p278 = scmp.lt.s32.totalorder %s14, 1
      %s279 = scalar_select %p278, %s14, 1
      %s280 = smul.addr %s279, 8
      %s281 = scalar_lea.vmem %s3, %s280
      // Predicated region
      $region33: #{conv_listener_forward.5} parent=31 // pred_check
        %p282 = pneg %p100
      $region34: #{conv_listener_forward.5} parent=31 // pred_check_branch
        %284 = sbr.rel (%p282) target = $region36
      $region35: #{conv_listener_forward.5} parent=31 // pred_region
        _
      $region36: #{conv_listener_forward.5} parent=31 // pred_fallthru
        _
    $region32: #{conv_listener_forward.5} parent=5 // pred_fallthru
      _
    %p285 = scmp.le.s32.totalorder 2, %s9
    // Predicated region
    $region37: #{conv_listener_forward.5} parent=5 // pred_check
      %p286 = pneg %p285
    $region38: #{conv_listener_forward.5} parent=5 // pred_check_branch
      %288 = sbr.rel (%p286) target = $region40
    $region39: #{conv_listener_forward.5} parent=5 // pred_region
      %s289 = ssub.s32 %s9, 2
      // Predicated region
      $region41: #{conv_listener_forward.5} parent=39 // pred_check
        %p290 = pneg %p106
      $region42: #{conv_listener_forward.5} parent=39 // pred_check_branch
        %292 = sbr.rel (%p290) target = $region44
      $region43: #{conv_listener_forward.5} parent=39 // pred_region
        %p293 = scmp.lt.s32.totalorder %s15, 1
        %s294 = scalar_select %p293, %s15, 1
        %s295 = smul.addr %s294, 8
        %s296 = scalar_lea.vmem %s3, %s295
      $region44: #{conv_listener_forward.5} parent=39 // pred_fallthru
        _
    $region40: #{conv_listener_forward.5} parent=5 // pred_fallthru
      _
  $region6: #{conv_listener_forward.5} parent=0 // loop_footer
    %s13 = sadd.s32 1, %s9
  $region7: #{conv_listener_forward.5} parent=0 // loop_footer_branch
    %8 = sbr.rel target = $region3
  $region8: #{conv_listener_forward.5} parent=0 // loop_exit
    _

// kernel: conv_listener_forward.6
$region0: #{conv_listener_forward.6}
  #allocation0 [shape = 'u32[]', space=smem, size = 0x4, offset = 0x4, fixed_abs, tag = 'smem constant byte address 0x4 - core index']
  #allocation1 [shape = 'u32[144,128]{1,0:T(1,128)}', space=vmem, size = 0x12000, scoped, tag = 'internal scratch']
  #allocation2 [shape = 'f32[1,10,64]{2,1,0:T(8,128)}', space=vmem, size = 0x2000, scoped, tag = 'scratch operand']
  %s0 = inlined_call_operand.vmem [shape: f32[2,8,64], index: 0, kind: input, shape index: {}]
  %s1 = inlined_call_operand.vmem [shape: f32[1,64], index: 1, kind: input, shape index: {}]
  %s2 = inlined_call_operand.vmem [shape: f32[1,64], index: 2, kind: input, shape index: {}]
  %s3 = inlined_call_operand.vmem [shape: f32[192,64], index: 3, kind: input, shape index: {}]
  %s4 = inlined_call_operand.vmem [shape: f32[1,64], index: 4, kind: input, shape index: {}]
  %s5 = inlined_call_operand.vmem [shape: f32[1,64], index: 5, kind: input, shape index: {}]
  %s6 = inlined_call_operand.vmem [shape: f32[1,64], index: 6, kind: input, shape index: {}]
  %s7 = inlined_call_operand.vmem [shape: f32[192,64], index: 7, kind: input, shape index: {}]
  %s8 = inlined_call_operand.vmem [shape: f32[1,64], index: 8, kind: input, shape index: {}]
  %s9 = inlined_call_operand.vmem [shape: f32[2,8,64], index: 9, kind: output, shape index: {}]
  %s10 = sld [smem:[#allocation0]]
  $region69: #{conv_listener_forward.6} parent=0
    _
  %s12 = ssub.s32 1, %s10
  %s13 = scalar_select 0, %s12, %s10
  loop: start=0, step=1, limit=4
  $region2: #{conv_listener_forward.6} parent=0 // loop_pre_header
    _
  $region3: #{conv_listener_forward.6} parent=0 // loop_header
    %s15 = sphi 0, %s19
    %p16 = scmp.ge.s32.totalorder %s15, 4
    %s25 = sphi 0, %s27
    %s28 = sphi 0, %s25
    %s29 = sphi 0, %s28
    %s45 = sphi 0, %s29
    %s49 = sphi 0, %s49
    %s51 = sphi 0, %s49
    %s52 = sphi 0, %s51
    %s66 = sphi 0, %s52
    %s70 = sphi 0, %s70
    %s72 = sphi 0, %s70
    %s73 = sphi 0, %s72
    %s87 = sphi 0, %s73
    %s91 = sphi 0, %s91
    %s93 = sphi 0, %s91
    %s94 = sphi 0, %s93
    %s108 = sphi 0, %s94
    %s112 = sphi 0, %s112
    %s114 = sphi 0, %s112
    %s115 = sphi 0, %s114
    %s129 = sphi 0, %s115
    %s133 = sphi 0, %s133
    %s135 = sphi 0, %s133
    %s136 = sphi 0, %s135
    %s150 = sphi 0, %s136
    %s154 = sphi 0, %s154
    %s156 = sphi 0, %s154
    %s157 = sphi 0, %s156
    %s171 = sphi 0, %s157
    %s175 = sphi 0, %s175
    %s177 = sphi 0, %s175
    %s178 = sphi 0, %s177
    %s192 = sphi 0, %s178
    %s196 = sphi 0, %s196
    %s198 = sphi 0, %s196
    %s199 = sphi 0, %s198
    %s213 = sphi 0, %s199
    %s219 = sphi 0, %s221
    %s222 = sphi 0, %s219
    %s223 = sphi 0, %s222
    %s239 = sphi 0, %s223
  $region4: #{conv_listener_forward.6} parent=0 // loop_header_branch
    %18 = sbr.rel (%p16) target = $region8
  $region5: #{conv_listener_forward.6} parent=0 // loop_body
    %s20 = ssub.s32 %s15, 1
    %s21 = ssub.s32 %s15, 2
    %s22 = sadd.s32 %s15, 1
    %s23 = ssub.s32 %s15, %s22
    %p24 = scmp.eq.s32.totalorder %s23, 0
    %s26 = sadd.s32 %s25, 1
    %s27 = scalar_select %p24, %s25, %s26
    %p30 = pneg %p24
    %p31 = scmp.eq.s32.totalorder %s15, 1
    %p32 = por %p30, %p31
    %p33 = scmp.ne.s32.totalorder %s25, %s28
    %p34 = scmp.eq.s32.totalorder %s15, 0
    %p35 = por %p33, %p34
    %p36 = scmp.ne.s32.totalorder %s25, %s28
    %p37 = scmp.eq.s32.totalorder %s20, 1
    %p38 = por %p36, %p37
    %p39 = scmp.ne.s32.totalorder %s28, %s29
    %p40 = scmp.eq.s32.totalorder %s20, 0
    %p41 = por %p39, %p40
    %p42 = scmp.ne.s32.totalorder %s28, %s29
    %p43 = scmp.eq.s32.totalorder %s21, 1
    %p44 = por %p42, %p43
    %p46 = scmp.ne.s32.totalorder %s29, %s45
    %p47 = scmp.eq.s32.totalorder %s21, 0
    %p48 = por %p46, %p47
    %s50 = sadd.s32 %s49, 1
    %p53 = scmp.eq.s32.totalorder %s15, 1
    %p54 = scmp.ne.s32.totalorder %s49, %s51
    %p55 = scmp.eq.s32.totalorder %s15, 0
    %p56 = por %p54, %p55
    %p57 = scmp.ne.s32.totalorder %s49, %s51
    %p58 = scmp.eq.s32.totalorder %s20, 1
    %p59 = por %p57, %p58
    %p60 = scmp.ne.s32.totalorder %s51, %s52
    %p61 = scmp.eq.s32.totalorder %s20, 0
    %p62 = por %p60, %p61
    %p63 = scmp.ne.s32.totalorder %s51, %s52
    %p64 = scmp.eq.s32.totalorder %s21, 1
    %p65 = por %p63, %p64
    %p67 = scmp.ne.s32.totalorder %s52, %s66
    %p68 = scmp.eq.s32.totalorder %s21, 0
    %p69 = por %p67, %p68
    %s71 = sadd.s32 %s70, 1
    %p74 = scmp.eq.s32.totalorder %s15, 1
    %p75 = scmp.ne.s32.totalorder %s70, %s72
    %p76 = scmp.eq.s32.totalorder %s15, 0
    %p77 = por %p75, %p76
    %p78 = scmp.ne.s32.totalorder %s70, %s72
    %p79 = scmp.eq.s32.totalorder %s20, 1
    %p80 = por %p78, %p79
    %p81 = scmp.ne.s32.totalorder %s72, %s73
    %p82 = scmp.eq.s32.totalorder %s20, 0
    %p83 = por %p81, %p82
    %p84 = scmp.ne.s32.totalorder %s72, %s73
    %p85 = scmp.eq.s32.totalorder %s21, 1
    %p86 = por %p84, %p85
    %p88 = scmp.ne.s32.totalorder %s73, %s87
    %p89 = scmp.eq.s32.totalorder %s21, 0
    %p90 = por %p88, %p89
    %s92 = sadd.s32 %s91, 1
    %p95 = scmp.eq.s32.totalorder %s15, 1
    %p96 = scmp.ne.s32.totalorder %s91, %s93
    %p97 = scmp.eq.s32.totalorder %s15, 0
    %p98 = por %p96, %p97
    %p99 = scmp.ne.s32.totalorder %s91, %s93
    %p100 = scmp.eq.s32.totalorder %s20, 1
    %p101 = por %p99, %p100
    %p102 = scmp.ne.s32.totalorder %s93, %s94
    %p103 = scmp.eq.s32.totalorder %s20, 0
    %p104 = por %p102, %p103
    %p105 = scmp.ne.s32.totalorder %s93, %s94
    %p106 = scmp.eq.s32.totalorder %s21, 1
    %p107 = por %p105, %p106
    %p109 = scmp.ne.s32.totalorder %s94, %s108
    %p110 = scmp.eq.s32.totalorder %s21, 0
    %p111 = por %p109, %p110
    %s113 = sadd.s32 %s112, 1
    %p116 = scmp.eq.s32.totalorder %s15, 1
    %p117 = scmp.ne.s32.totalorder %s112, %s114
    %p118 = scmp.eq.s32.totalorder %s15, 0
    %p119 = por %p117, %p118
    %p120 = scmp.ne.s32.totalorder %s112, %s114
    %p121 = scmp.eq.s32.totalorder %s20, 1
    %p122 = por %p120, %p121
    %p123 = scmp.ne.s32.totalorder %s114, %s115
    %p124 = scmp.eq.s32.totalorder %s20, 0
    %p125 = por %p123, %p124
    %p126 = scmp.ne.s32.totalorder %s114, %s115
    %p127 = scmp.eq.s32.totalorder %s21, 1
    %p128 = por %p126, %p127
    %p130 = scmp.ne.s32.totalorder %s115, %s129
    %p131 = scmp.eq.s32.totalorder %s21, 0
    %p132 = por %p130, %p131
    %s134 = sadd.s32 %s133, 1
    %p137 = scmp.eq.s32.totalorder %s15, 1
    %p138 = scmp.ne.s32.totalorder %s133, %s135
    %p139 = scmp.eq.s32.totalorder %s15, 0
    %p140 = por %p138, %p139
    %p141 = scmp.ne.s32.totalorder %s133, %s135
    %p142 = scmp.eq.s32.totalorder %s20, 1
    %p143 = por %p141, %p142
    %p144 = scmp.ne.s32.totalorder %s135, %s136
    %p145 = scmp.eq.s32.totalorder %s20, 0
    %p146 = por %p144, %p145
    %p147 = scmp.ne.s32.totalorder %s135, %s136
    %p148 = scmp.eq.s32.totalorder %s21, 1
    %p149 = por %p147, %p148
    %p151 = scmp.ne.s32.totalorder %s136, %s150
    %p152 = scmp.eq.s32.totalorder %s21, 0
    %p153 = por %p151, %p152
    %s155 = sadd.s32 %s154, 1
    %p158 = scmp.eq.s32.totalorder %s15, 1
    %p159 = scmp.ne.s32.totalorder %s154, %s156
    %p160 = scmp.eq.s32.totalorder %s15, 0
    %p161 = por %p159, %p160
    %p162 = scmp.ne.s32.totalorder %s154, %s156
    %p163 = scmp.eq.s32.totalorder %s20, 1
    %p164 = por %p162, %p163
    %p165 = scmp.ne.s32.totalorder %s156, %s157
    %p166 = scmp.eq.s32.totalorder %s20, 0
    %p167 = por %p165, %p166
    %p168 = scmp.ne.s32.totalorder %s156, %s157
    %p169 = scmp.eq.s32.totalorder %s21, 1
    %p170 = por %p168, %p169
    %p172 = scmp.ne.s32.totalorder %s157, %s171
    %p173 = scmp.eq.s32.totalorder %s21, 0
    %p174 = por %p172, %p173
    %s176 = sadd.s32 %s175, 1
    %p179 = scmp.eq.s32.totalorder %s15, 1
    %p180 = scmp.ne.s32.totalorder %s175, %s177
    %p181 = scmp.eq.s32.totalorder %s15, 0
    %p182 = por %p180, %p181
    %p183 = scmp.ne.s32.totalorder %s175, %s177
    %p184 = scmp.eq.s32.totalorder %s20, 1
    %p185 = por %p183, %p184
    %p186 = scmp.ne.s32.totalorder %s177, %s178
    %p187 = scmp.eq.s32.totalorder %s20, 0
    %p188 = por %p186, %p187
    %p189 = scmp.ne.s32.totalorder %s177, %s178
    %p190 = scmp.eq.s32.totalorder %s21, 1
    %p191 = por %p189, %p190
    %p193 = scmp.ne.s32.totalorder %s178, %s192
    %p194 = scmp.eq.s32.totalorder %s21, 0
    %p195 = por %p193, %p194
    %s197 = sadd.s32 %s196, 1
    %p200 = scmp.eq.s32.totalorder %s15, 1
    %p201 = scmp.ne.s32.totalorder %s196, %s198
    %p202 = scmp.eq.s32.totalorder %s15, 0
    %p203 = por %p201, %p202
    %p204 = scmp.ne.s32.totalorder %s196, %s198
    %p205 = scmp.eq.s32.totalorder %s20, 1
    %p206 = por %p204, %p205
    %p207 = scmp.ne.s32.totalorder %s198, %s199
    %p208 = scmp.eq.s32.totalorder %s20, 0
    %p209 = por %p207, %p208
    %p210 = scmp.ne.s32.totalorder %s198, %s199
    %p211 = scmp.eq.s32.totalorder %s21, 1
    %p212 = por %p210, %p211
    %p214 = scmp.ne.s32.totalorder %s199, %s213
    %p215 = scmp.eq.s32.totalorder %s21, 0
    %p216 = por %p214, %p215
    %s217 = ssub.s32 %s15, %s22
    %p218 = scmp.eq.s32.totalorder %s217, 0
    %s220 = sadd.s32 %s219, 1
    %s221 = scalar_select %p218, %s219, %s220
    %p224 = pneg %p218
    %p225 = scmp.eq.s32.totalorder %s15, 1
    %p226 = por %p224, %p225
    %p227 = scmp.ne.s32.totalorder %s219, %s222
    %p228 = scmp.eq.s32.totalorder %s15, 0
    %p229 = por %p227, %p228
    %p230 = scmp.ne.s32.totalorder %s219, %s222
    %p231 = scmp.eq.s32.totalorder %s20, 1
    %p232 = por %p230, %p231
    %p233 = scmp.ne.s32.totalorder %s222, %s223
    %p234 = scmp.eq.s32.totalorder %s20, 0
    %p235 = por %p233, %p234
    %p236 = scmp.ne.s32.totalorder %s222, %s223
    %p237 = scmp.eq.s32.totalorder %s21, 1
    %p238 = por %p236, %p237
    %p240 = scmp.ne.s32.totalorder %s223, %s239
    %p241 = scmp.eq.s32.totalorder %s21, 0
    %p242 = por %p240, %p241
    %p243 = scmp.le.s32.totalorder 1, %s15
    %p244 = scmp.lt.s32.totalorder %s15, 3
    %p245 = pnand %p243, %p244
    %p246 = pneg %p245
    // Predicated region
    $region9: #{conv_listener_forward.6} parent=5 // pred_check
      _
    $region10: #{conv_listener_forward.6} parent=5 // pred_check_branch
      %248 = sbr.rel (%p245) target = $region12
    $region11: #{conv_listener_forward.6} parent=5 // pred_region
      %s249 = ssub.s32 %s15, 1
      // Predicated region
      $region13: #{conv_listener_forward.6} parent=11 // pred_check
        %p250 = pneg %p62
      $region14: #{conv_listener_forward.6} parent=11 // pred_check_branch
        %252 = sbr.rel (%p250) target = $region16
      $region15: #{conv_listener_forward.6} parent=11 // pred_region
        _
      $region16: #{conv_listener_forward.6} parent=11 // pred_fallthru
        _
      // Predicated region
      $region17: #{conv_listener_forward.6} parent=11 // pred_check
        %p253 = pneg %p83
      $region18: #{conv_listener_forward.6} parent=11 // pred_check_branch
        %255 = sbr.rel (%p253) target = $region20
      $region19: #{conv_listener_forward.6} parent=11 // pred_region
        _
      $region20: #{conv_listener_forward.6} parent=11 // pred_fallthru
        _
      // Predicated region
      $region21: #{conv_listener_forward.6} parent=11 // pred_check
        %p256 = pneg %p104
      $region22: #{conv_listener_forward.6} parent=11 // pred_check_branch
        %258 = sbr.rel (%p256) target = $region24
      $region23: #{conv_listener_forward.6} parent=11 // pred_region
        _
      $region24: #{conv_listener_forward.6} parent=11 // pred_fallthru
        _
      // Predicated region
      $region25: #{conv_listener_forward.6} parent=11 // pred_check
        %p259 = pneg %p125
      $region26: #{conv_listener_forward.6} parent=11 // pred_check_branch
        %261 = sbr.rel (%p259) target = $region28
      $region27: #{conv_listener_forward.6} parent=11 // pred_region
        _
      $region28: #{conv_listener_forward.6} parent=11 // pred_fallthru
        _
      // Predicated region
      $region29: #{conv_listener_forward.6} parent=11 // pred_check
        %p262 = pneg %p146
      $region30: #{conv_listener_forward.6} parent=11 // pred_check_branch
        %264 = sbr.rel (%p262) target = $region32
      $region31: #{conv_listener_forward.6} parent=11 // pred_region
        _
      $region32: #{conv_listener_forward.6} parent=11 // pred_fallthru
        _
      // Predicated region
      $region33: #{conv_listener_forward.6} parent=11 // pred_check
        %p265 = pneg %p167
      $region34: #{conv_listener_forward.6} parent=11 // pred_check_branch
        %267 = sbr.rel (%p265) target = $region36
      $region35: #{conv_listener_forward.6} parent=11 // pred_region
        _
      $region36: #{conv_listener_forward.6} parent=11 // pred_fallthru
        _
      // Predicated region
      $region37: #{conv_listener_forward.6} parent=11 // pred_check
        %p268 = pneg %p188
      $region38: #{conv_listener_forward.6} parent=11 // pred_check_branch
        %270 = sbr.rel (%p268) target = $region40
      $region39: #{conv_listener_forward.6} parent=11 // pred_region
        _
      $region40: #{conv_listener_forward.6} parent=11 // pred_fallthru
        _
      // Predicated region
      $region41: #{conv_listener_forward.6} parent=11 // pred_check
        %p271 = pneg %p209
      $region42: #{conv_listener_forward.6} parent=11 // pred_check_branch
        %273 = sbr.rel (%p271) target = $region44
      $region43: #{conv_listener_forward.6} parent=11 // pred_region
        _
      $region44: #{conv_listener_forward.6} parent=11 // pred_fallthru
        _
    $region12: #{conv_listener_forward.6} parent=5 // pred_fallthru
      _
    %p274 = scmp.lt.s32.totalorder %s15, 2
    // Predicated region
    $region45: #{conv_listener_forward.6} parent=5 // pred_check
      %p275 = pneg %p274
    $region46: #{conv_listener_forward.6} parent=5 // pred_check_branch
      %277 = sbr.rel (%p275) target = $region48
    $region47: #{conv_listener_forward.6} parent=5 // pred_region
      // Predicated region
      $region49: #{conv_listener_forward.6} parent=47 // pred_check
        %p278 = pneg %p35
      $region50: #{conv_listener_forward.6} parent=47 // pred_check_branch
        %280 = sbr.rel (%p278) target = $region52
      $region51: #{conv_listener_forward.6} parent=47 // pred_region
        %p281 = scmp.lt.s32.totalorder %s15, 1
        %s282 = scalar_select %p281, %s15, 1
        %s283 = smul.addr %s282, 8
        %s284 = scalar_lea.vmem %s0, %s283
      $region52: #{conv_listener_forward.6} parent=47 // pred_fallthru
        _
    $region48: #{conv_listener_forward.6} parent=5 // pred_fallthru
      _
    %p285 = scmp.le.s32.totalorder 1, %s15
    %p286 = scmp.lt.s32.totalorder %s15, 3
    %p287 = pnand %p285, %p286
    %p288 = pneg %p287
    // Predicated region
    $region53: #{conv_listener_forward.6} parent=5 // pred_check
      _
    $region54: #{conv_listener_forward.6} parent=5 // pred_check_branch
      %290 = sbr.rel (%p287) target = $region56
    $region55: #{conv_listener_forward.6} parent=5 // pred_region
      %s291 = ssub.s32 %s15, 1
      %p292 = scmp.lt.s32.totalorder %s20, 1
      %s293 = scalar_select %p292, %s20, 1
      %s294 = smul.addr %s293, 8
      %s295 = scalar_lea.vmem %s0, %s294
      %p296 = pneg %p41
      %p297 = pneg %p38
      %p298 = pneg %p62
      %p299 = pneg %p59
      %p300 = pneg %p83
      %p301 = pneg %p80
      %p302 = pneg %p104
      %p303 = pneg %p101
      %p304 = pneg %p125
      %p305 = pneg %p122
      %p306 = pneg %p146
      %p307 = pneg %p143
      %p308 = pneg %p167
      %p309 = pneg %p164
      %p310 = pneg %p188
      %p311 = pneg %p185
      %p312 = pneg %p209
      %p313 = pneg %p206
      %p314 = pneg %p235
      %p315 = pneg %p232
      %p316 = scmp.lt.s32.totalorder %s20, 1
      %s317 = scalar_select %p316, %s20, 1
      %s318 = smul.addr %s317, 8
      %s319 = scalar_lea.vmem %s9, %s318
      %p320 = scmp.lt.s32.totalorder %s20, 1
      %s321 = scalar_select %p320, %s20, 1
      %s322 = smul.addr %s321, 8
      %s323 = scalar_lea.vmem %s0, %s322
      %p324 = scmp.lt.s32.totalorder %s20, 1
      %s325 = scalar_select %p324, %s20, 1
      %s326 = smul.addr %s325, 8
      %s327 = scalar_lea.vmem %s9, %s326
      %vm329 = vcmask 523264
      %330 = vst.msk [vmem:[#allocation2] sm:$0xff] %vm329, 0.0
      %vm331 = vcmask 517120
      %332 = vst.msk [vmem:[#allocation2 + $0x8] sm:$0x3] %vm331, 0.0
      %v333 = vld [vmem:[%s323] sm:$0xff]
      %v334 = vld [vmem:[%s1] sm:$0x1]
      %v335 = vld [vmem:[%s2] sm:$0x1]
      %v336 = vsel %vm329, %v333, 0.0
      %337 = vadd.xlane.f32.xlu0 %v336
      %v338 = vpop.xlane.xlu0 %337
      %v339 = vrcp.pop 64.0
      %v340 = vmul.f32 %v338, %v339
      %v341 = vsub.f32 %v333, %v340
      %v342 = vmul.f32 %v341, %v341
      %v343 = vsel %vm329, %v342, 0.0
      %344 = vadd.xlane.f32.xlu0 %v343
      %v345 = vpop.xlane.xlu0 %344
      %v346 = vmul.f32 %v345, %v339
      %v347 = vadd.f32 %v346, 1e-05
      %v348 = vrsqrt.pop %v347
      %v349 = vmul.f32 %v341, %v348
      %v351 = vlaneseq
      %v352 = vshrl.u32 %v351, 7
      %v353 = vsub.s32 0, %v352
      %v354 = vrot.slane %v334, %v353
      %v356 = vmul.f32 %v349, %v354
      %v358 = vlaneseq
      %v359 = vshrl.u32 %v358, 7
      %v360 = vsub.s32 0, %v359
      %v361 = vrot.slane %v335, %v360
      %v363 = vadd.f32 %v356, %v361
      %v364 = vmul.f32 %v363, 0.5
      %v365 = vmul.f32 %v363, 0.70710677
      %v366 = verf.f32.pop %v365
      %v367 = vadd.f32 %v366, 1.0
      %v368 = vmul.f32 %v364, %v367
      %369 = vst.msk [vmem:[#allocation2 + $0x1] sm:$0xff] %vm329, %v368
      %v370 = vld [vmem:[#allocation2] sm:$0xff]
      %v371 = vld [vmem:[#allocation2 + $0x1] sm:$0xff]
      %v372 = vld [vmem:[#allocation2 + $0x2] sm:$0xff]
      %374 = vrot.lane.b32.xlu0 %v371, 64
      %v375 = vpop.permute.xlu0 %374
      %v377 = vsel %vm329, %v370, %v375
      %v378 = vld [vmem:[%s3] sm:$0xff]
      %v379 = vld [vmem:[%s3 + $0x8] sm:$0xff]
      %v380 = vld [vmem:[%s3 + $0x10] sm:$0xff]
      %v381 = vld [vmem:[%s3 + $0x18] sm:$0xff]
      %v382 = vld [vmem:[%s3 + $0x20] sm:$0xff]
      %v383 = vld [vmem:[%s3 + $0x28] sm:$0xff]
      %v384 = vld [vmem:[%s3 + $0x30] sm:$0xff]
      %v385 = vld [vmem:[%s3 + $0x38] sm:$0xff]
      %v386 = vld [vmem:[%s3 + $0x40] sm:$0xff]
      %v387 = vld [vmem:[%s3 + $0x48] sm:$0xff]
      %v388 = vld [vmem:[%s3 + $0x50] sm:$0xff]
      %v389 = vld [vmem:[%s3 + $0x58] sm:$0xff]
      %v390 = vld [vmem:[%s3 + $0x60] sm:$0xff]
      %v391 = vld [vmem:[%s3 + $0x68] sm:$0xff]
      %v392 = vld [vmem:[%s3 + $0x70] sm:$0xff]
      %v393 = vld [vmem:[%s3 + $0x78] sm:$0xff]
      %v394 = vld [vmem:[%s3 + $0x80] sm:$0xff]
      %v395 = vld [vmem:[%s3 + $0x88] sm:$0xff]
      %v396 = vld [vmem:[%s3 + $0x90] sm:$0xff]
      %v397 = vld [vmem:[%s3 + $0x98] sm:$0xff]
      %v398 = vld [vmem:[%s3 + $0xa0] sm:$0xff]
      %v399 = vld [vmem:[%s3 + $0xa8] sm:$0xff]
      %v400 = vld [vmem:[%s3 + $0xb0] sm:$0xff]
      %v401 = vld [vmem:[%s3 + $0xb8] sm:$0xff]
      %v402 = vpack.c.bf16 %v377, %v377
      %v403 = vpack.c.bf16 %v372, %v372
      %v404 = vpack.c.bf16 %v379, %v378
      %v405 = vpack.c.bf16 %v381, %v380
      %v406 = vpack.c.bf16 %v383, %v382
      %v407 = vpack.c.bf16 %v385, %v384
      %v408 = vpack.c.bf16 %v387, %v386
      %v409 = vpack.c.bf16 %v389, %v388
      %v410 = vpack.c.bf16 %v391, %v390
      %v411 = vpack.c.bf16 %v393, %v392
      %v412 = vpack.c.bf16 %v395, %v394
      %v413 = vpack.c.bf16 %v397, %v396
      %v414 = vpack.c.bf16 %v399, %v398
      %v415 = vpack.c.bf16 %v401, %v400
      %v416 = vld [vmem:[%s4] sm:$0x1]
      %v418 = vlaneseq
      %v419 = vshrl.u32 %v418, 7
      %v420 = vsub.s32 0, %v419
      %v421 = vrot.slane %v416, %v420
      %v424 = vsel %vm329, %v403, 0
      %426 = vmatprep.subr.bf16.mxu0 0
      %427 = vmatpush1.bf16.msra.mxu0 %v404
      %428 = vmatprep.subr.bf16.mxu0 0
      %429 = vmatpush1.bf16.msra.mxu0 %v405
      %430 = vmatprep.subr.bf16.mxu0 0
      %431 = vmatpush1.bf16.msra.mxu0 %v406
      %432 = vmatprep.subr.bf16.mxu0 0
      %433 = vmatpush1.bf16.msra.mxu0 %v407
      %434 = vmatprep.subr.bf16.mxu0 0
      %435 = vmatpush1.bf16.msra.mxu0 %v408
      %436 = vmatprep.subr.bf16.mxu0 0
      %437 = vmatpush1.bf16.msra.mxu0 %v409
      %438 = vmatprep.subr.bf16.mxu0 0
      %439 = vmatpush1.bf16.msra.mxu0 %v410
      %440 = vmatprep.subr.bf16.mxu0 0
      %441 = vmatpush1.bf16.msra.mxu0 %v411
      %442 = vmatprep.subr.bf16.mxu0 0
      %443 = vmatpush1.bf16.msra.mxu0 %v412
      %444 = vmatprep.subr.bf16.mxu0 0
      %445 = vmatpush1.bf16.msra.mxu0 %v413
      %446 = vmatprep.subr.bf16.mxu0 0
      %447 = vmatpush1.bf16.msra.mxu0 %v414
      %448 = vmatprep.subr.bf16.mxu0 0
      %449 = vmatpush1.bf16.msra.mxu0 %v415
      %450 = vmatprep.subr.bf16.mxu0 0
      %451 = vmatpush1.bf16.msra.mxu0 0
      %452 = vmatprep.subr.bf16.mxu0 0
      %453 = vmatpush1.bf16.msra.mxu0 0
      %454 = vmatprep.subr.bf16.mxu0 0
      %455 = vmatpush1.bf16.msra.mxu0 0
      %456 = vmatprep.subr.bf16.mxu0 0
      %457 = vmatpush1.bf16.msra.mxu0 0
      %458 = vmatprep.mubr.bf16.mxu0 %v424
      %459 = vmatmul.mubr.bf16.gmra.mrb[0].mxu0 %v402
      %v460 = vpop.f32.mrb[0].mxu0
      %v461 = vadd.f32 %v421, %v460
      %v462 = vpop.f32.mrb[0].mxu0
      %v463 = vpop.f32.mrb[0].mxu0
      %v464 = vpop.f32.mrb[0].mxu0
      %465 = vdwg.mxu0
      %v466 = vld [vmem:[%s5] sm:$0x1]
      %v467 = vld [vmem:[%s6] sm:$0x1]
      %v468 = vsel %vm329, %v461, 0.0
      %469 = vadd.xlane.f32.xlu0 %v468
      %v470 = vpop.xlane.xlu0 %469
      %v471 = vmul.f32 %v470, %v339
      %v472 = vsub.f32 %v461, %v471
      %v473 = vmul.f32 %v472, %v472
      %v474 = vsel %vm329, %v473, 0.0
      %475 = vadd.xlane.f32.xlu0 %v474
      %v476 = vpop.xlane.xlu0 %475
      %v477 = vmul.f32 %v476, %v339
      %v478 = vadd.f32 %v477, 1e-05
      %v479 = vrsqrt.pop %v478
      %v480 = vmul.f32 %v472, %v479
      %v482 = vlaneseq
      %v483 = vshrl.u32 %v482, 7
      %v484 = vsub.s32 0, %v483
      %v485 = vrot.slane %v466, %v484
      %v487 = vmul.f32 %v480, %v485
      %v489 = vlaneseq
      %v490 = vshrl.u32 %v489, 7
      %v491 = vsub.s32 0, %v490
      %v492 = vrot.slane %v467, %v491
      %v494 = vadd.f32 %v487, %v492
      %v495 = vmul.f32 %v494, 0.5
      %v496 = vmul.f32 %v494, 0.70710677
      %v497 = verf.f32.pop %v496
      %v498 = vadd.f32 %v497, 1.0
      %v499 = vmul.f32 %v495, %v498
      %500 = vst.msk [vmem:[#allocation2 + $0x1] sm:$0xff] %vm329, %v499
      %v501 = vld [vmem:[#allocation2] sm:$0xff]
      %v502 = vld [vmem:[#allocation2 + $0x1] sm:$0xff]
      %v503 = vld [vmem:[#allocation2 + $0x2] sm:$0xff]
      %505 = vrot.lane.b32.xlu0 %v502, 64
      %v506 = vpop.permute.xlu0 %505
      %v508 = vsel %vm329, %v501, %v506
      %v509 = vld [vmem:[%s7] sm:$0xff]
      %v510 = vld [vmem:[%s7 + $0x8] sm:$0xff]
      %v511 = vld [vmem:[%s7 + $0x10] sm:$0xff]
      %v512 = vld [vmem:[%s7 + $0x18] sm:$0xff]
      %v513 = vld [vmem:[%s7 + $0x20] sm:$0xff]
      %v514 = vld [vmem:[%s7 + $0x28] sm:$0xff]
      %v515 = vld [vmem:[%s7 + $0x30] sm:$0xff]
      %v516 = vld [vmem:[%s7 + $0x38] sm:$0xff]
      %v517 = vld [vmem:[%s7 + $0x40] sm:$0xff]
      %v518 = vld [vmem:[%s7 + $0x48] sm:$0xff]
      %v519 = vld [vmem:[%s7 + $0x50] sm:$0xff]
      %v520 = vld [vmem:[%s7 + $0x58] sm:$0xff]
      %v521 = vld [vmem:[%s7 + $0x60] sm:$0xff]
      %v522 = vld [vmem:[%s7 + $0x68] sm:$0xff]
      %v523 = vld [vmem:[%s7 + $0x70] sm:$0xff]
      %v524 = vld [vmem:[%s7 + $0x78] sm:$0xff]
      %v525 = vld [vmem:[%s7 + $0x80] sm:$0xff]
      %v526 = vld [vmem:[%s7 + $0x88] sm:$0xff]
      %v527 = vld [vmem:[%s7 + $0x90] sm:$0xff]
      %v528 = vld [vmem:[%s7 + $0x98] sm:$0xff]
      %v529 = vld [vmem:[%s7 + $0xa0] sm:$0xff]
      %v530 = vld [vmem:[%s7 + $0xa8] sm:$0xff]
      %v531 = vld [vmem:[%s7 + $0xb0] sm:$0xff]
      %v532 = vld [vmem:[%s7 + $0xb8] sm:$0xff]
      %v533 = vpack.c.bf16 %v508, %v508
      %v534 = vpack.c.bf16 %v503, %v503
      %v535 = vpack.c.bf16 %v510, %v509
      %v536 = vpack.c.bf16 %v512, %v511
      %v537 = vpack.c.bf16 %v514, %v513
      %v538 = vpack.c.bf16 %v516, %v515
      %v539 = vpack.c.bf16 %v518, %v517
      %v540 = vpack.c.bf16 %v520, %v519
      %v541 = vpack.c.bf16 %v522, %v521
      %v542 = vpack.c.bf16 %v524, %v523
      %v543 = vpack.c.bf16 %v526, %v525
      %v544 = vpack.c.bf16 %v528, %v527
      %v545 = vpack.c.bf16 %v530, %v529
      %v546 = vpack.c.bf16 %v532, %v531
      %v547 = vld [vmem:[%s8] sm:$0x1]
      %v549 = vlaneseq
      %v550 = vshrl.u32 %v549, 7
      %v551 = vsub.s32 0, %v550
      %v552 = vrot.slane %v547, %v551
      %v555 = vsel %vm329, %v534, 0
      %557 = vmatprep.subr.bf16.mxu0 0
      %558 = vmatpush1.bf16.msra.mxu0 %v535
      %559 = vmatprep.subr.bf16.mxu0 0
      %560 = vmatpush1.bf16.msra.mxu0 %v536
      %561 = vmatprep.subr.bf16.mxu0 0
      %562 = vmatpush1.bf16.msra.mxu0 %v537
      %563 = vmatprep.subr.bf16.mxu0 0
      %564 = vmatpush1.bf16.msra.mxu0 %v538
      %565 = vmatprep.subr.bf16.mxu0 0
      %566 = vmatpush1.bf16.msra.mxu0 %v539
      %567 = vmatprep.subr.bf16.mxu0 0
      %568 = vmatpush1.bf16.msra.mxu0 %v540
      %569 = vmatprep.subr.bf16.mxu0 0
      %570 = vmatpush1.bf16.msra.mxu0 %v541
      %571 = vmatprep.subr.bf16.mxu0 0
      %572 = vmatpush1.bf16.msra.mxu0 %v542
      %573 = vmatprep.subr.bf16.mxu0 0
      %574 = vmatpush1.bf16.msra.mxu0 %v543
      %575 = vmatprep.subr.bf16.mxu0 0
      %576 = vmatpush1.bf16.msra.mxu0 %v544
      %577 = vmatprep.subr.bf16.mxu0 0
      %578 = vmatpush1.bf16.msra.mxu0 %v545
      %579 = vmatprep.subr.bf16.mxu0 0
      %580 = vmatpush1.bf16.msra.mxu0 %v546
      %581 = vmatprep.subr.bf16.mxu0 0
      %582 = vmatpush1.bf16.msra.mxu0 0
      %583 = vmatprep.subr.bf16.mxu0 0
      %584 = vmatpush1.bf16.msra.mxu0 0
      %585 = vmatprep.subr.bf16.mxu0 0
      %586 = vmatpush1.bf16.msra.mxu0 0
      %587 = vmatprep.subr.bf16.mxu0 0
      %588 = vmatpush1.bf16.msra.mxu0 0
      %589 = vmatprep.mubr.bf16.mxu0 %v555
      %590 = vmatmul.mubr.bf16.gmra.mrb[0].mxu0 %v533
      %v591 = vpop.f32.mrb[0].mxu0
      %v592 = vadd.f32 %v552, %v591
      %v593 = vpop.f32.mrb[0].mxu0
      %v594 = vpop.f32.mrb[0].mxu0
      %v595 = vpop.f32.mrb[0].mxu0
      %596 = vdwg.mxu0
      %v597 = vadd.f32 %v592, %v333
      %598 = vst.msk [vmem:[%s327] sm:$0xff] %vm329, %v597
      %p599 = scmp.lt.s32.totalorder %s20, 1
      %s600 = scalar_select %p599, %s20, 1
      %s601 = smul.addr %s600, 8
      %s602 = scalar_lea.vmem %s9, %s601
      // Predicated region
      $region57: #{conv_listener_forward.6} parent=55 // pred_check
        %p603 = pneg %p232
      $region58: #{conv_listener_forward.6} parent=55 // pred_check_branch
        %605 = sbr.rel (%p603) target = $region60
      $region59: #{conv_listener_forward.6} parent=55 // pred_region
        _
      $region60: #{conv_listener_forward.6} parent=55 // pred_fallthru
        _
    $region56: #{conv_listener_forward.6} parent=5 // pred_fallthru
      _
    %p606 = scmp.le.s32.totalorder 2, %s15
    // Predicated region
    $region61: #{conv_listener_forward.6} parent=5 // pred_check
      %p607 = pneg %p606
    $region62: #{conv_listener_forward.6} parent=5 // pred_check_branch
      %609 = sbr.rel (%p607) target = $region64
    $region63: #{conv_listener_forward.6} parent=5 // pred_region
      %s610 = ssub.s32 %s15, 2
      // Predicated region
      $region65: #{conv_listener_forward.6} parent=63 // pred_check
        %p611 = pneg %p238
      $region66: #{conv_listener_forward.6} parent=63 // pred_check_branch
        %613 = sbr.rel (%p611) target = $region68
      $region67: #{conv_listener_forward.6} parent=63 // pred_region
        %p614 = scmp.lt.s32.totalorder %s21, 1
        %s615 = scalar_select %p614, %s21, 1
        %s616 = smul.addr %s615, 8
        %s617 = scalar_lea.vmem %s9, %s616
      $region68: #{conv_listener_forward.6} parent=63 // pred_fallthru
        _
    $region64: #{conv_listener_forward.6} parent=5 // pred_fallthru
      _
  $region6: #{conv_listener_forward.6} parent=0 // loop_footer
    %s19 = sadd.s32 1, %s15
  $region7: #{conv_listener_forward.6} parent=0 // loop_footer_branch
    %14 = sbr.rel target = $region3
  $region8: #{conv_listener_forward.6} parent=0 // loop_exit
    _

// kernel: conv_listener_forward.9
$region0: #{conv_listener_forward.9}
  #allocation0 [shape = 'u32[]', space=smem, size = 0x4, offset = 0x4, fixed_abs, tag = 'smem constant byte address 0x4 - core index']
  #allocation1 [shape = 'u32[144,128]{1,0:T(1,128)}', space=vmem, size = 0x12000, scoped, tag = 'internal scratch']
  #allocation2 [shape = 'f32[2,8,96]{2,1,0:T(8,128)}', space=vmem, size = 0x2000, scoped, tag = 'scratch operand']
  #allocation3 [shape = 'f32[2,8,96]{2,1,0:T(8,128)}', space=vmem, size = 0x2000, scoped, tag = 'scratch operand']
  %s0 = inlined_call_operand.vmem [shape: f32[2,8,64], index: 0, kind: input, shape index: {}]
  %s1 = inlined_call_operand.vmem [shape: f32[1,64], index: 1, kind: input, shape index: {}]
  %s2 = inlined_call_operand.vmem [shape: f32[1,64], index: 2, kind: input, shape index: {}]
  %s3 = inlined_call_operand.vmem [shape: f32[64,192], index: 3, kind: input, shape index: {}]
  %s4 = inlined_call_operand.vmem [shape: f32[1,192], index: 4, kind: input, shape index: {}]
  %s5 = inlined_call_operand.vmem [shape: f32[64,192], index: 5, kind: input, shape index: {}]
  %s6 = inlined_call_operand.vmem [shape: f32[1,192], index: 6, kind: input, shape index: {}]
  %s7 = inlined_call_operand.hbm [shape: f32[2,8,64], index: 7, kind: output, shape index: {}]
  %s8 = sld [smem:[#allocation0]]
  $region38: #{conv_listener_forward.9} parent=0
    _
  %s10 = ssub.s32 1, %s8
  %s11 = scalar_select 0, %s10, %s8
  $region1: #{conv_listener_forward.9} parent=0
    #allocation4 [shape = 'u8[8192]{0}', space=vmem, size = 0x2000, scoped, tag = 'output window, operand 0, single buffered']
    #allocation5 [shape = 's32[1]{0}', space=sflag, size = 0x4, scoped, tag = 'scoped memory for conv_listener_forward.9']
    %12 = vsyncpa [#allocation5], 0
    // Predicated region
    $region2: #{conv_listener_forward.9} parent=1 // pred_check
      _
    $region3: #{conv_listener_forward.9} parent=1 // pred_check_branch
      %14 = sbr.rel (0) target = $region5
    $region4: #{conv_listener_forward.9} parent=1 // pred_region
      _
    $region5: #{conv_listener_forward.9} parent=1 // pred_fallthru
      _
    // Predicated region
    $region6: #{conv_listener_forward.9} parent=1 // pred_check
      _
    $region7: #{conv_listener_forward.9} parent=1 // pred_check_branch
      %16 = sbr.rel (0) target = $region9
    $region8: #{conv_listener_forward.9} parent=1 // pred_region
      _
    $region9: #{conv_listener_forward.9} parent=1 // pred_fallthru
      _
    // Predicated region
    $region10: #{conv_listener_forward.9} parent=1 // pred_check
      _
    $region11: #{conv_listener_forward.9} parent=1 // pred_check_branch
      %18 = sbr.rel (0) target = $region13
    $region12: #{conv_listener_forward.9} parent=1 // pred_region
      _
    $region13: #{conv_listener_forward.9} parent=1 // pred_fallthru
      _
    // Predicated region
    $region14: #{conv_listener_forward.9} parent=1 // pred_check
      _
    $region15: #{conv_listener_forward.9} parent=1 // pred_check_branch
      %20 = sbr.rel (0) target = $region17
    $region16: #{conv_listener_forward.9} parent=1 // pred_region
      _
    $region17: #{conv_listener_forward.9} parent=1 // pred_fallthru
      _
    // Predicated region
    $region18: #{conv_listener_forward.9} parent=1 // pred_check
      _
    $region19: #{conv_listener_forward.9} parent=1 // pred_check_branch
      %22 = sbr.rel (0) target = $region21
    $region20: #{conv_listener_forward.9} parent=1 // pred_region
      _
    $region21: #{conv_listener_forward.9} parent=1 // pred_fallthru
      _
    // Predicated region
    $region22: #{conv_listener_forward.9} parent=1 // pred_check
      _
    $region23: #{conv_listener_forward.9} parent=1 // pred_check_branch
      %24 = sbr.rel (0) target = $region25
    $region24: #{conv_listener_forward.9} parent=1 // pred_region
      _
    $region25: #{conv_listener_forward.9} parent=1 // pred_fallthru
      _
    // Predicated region
    $region26: #{conv_listener_forward.9} parent=1 // pred_check
      _
    $region27: #{conv_listener_forward.9} parent=1 // pred_check_branch
      %26 = sbr.rel (0) target = $region29
    $region28: #{conv_listener_forward.9} parent=1 // pred_region
      _
    $region29: #{conv_listener_forward.9} parent=1 // pred_fallthru
      _
    %v28 = vld [vmem:[%s0] sm:$0xff]
    %v29 = vld [vmem:[%s0 + $0x8] sm:$0xff]
    %v30 = vld [vmem:[%s1] sm:$0x1]
    %v31 = vld [vmem:[%s2] sm:$0x1]
    %vm32 = vcmask 523264
    %v33 = vsel %vm32, %v28, 0.0
    %34 = vadd.xlane.f32.xlu0 %v33
    %v35 = vpop.xlane.xlu0 %34
    %v36 = vsel %vm32, %v29, 0.0
    %37 = vadd.xlane.f32.xlu0 %v36
    %v38 = vpop.xlane.xlu0 %37
    %v39 = vrcp.pop 64.0
    %v40 = vmul.f32 %v35, %v39
    %v41 = vmul.f32 %v38, %v39
    %v42 = vsub.f32 %v28, %v40
    %v43 = vsub.f32 %v29, %v41
    %v44 = vmul.f32 %v42, %v42
    %v45 = vmul.f32 %v43, %v43
    %v46 = vsel %vm32, %v44, 0.0
    %47 = vadd.xlane.f32.xlu0 %v46
    %v48 = vpop.xlane.xlu0 %47
    %v49 = vsel %vm32, %v45, 0.0
    %50 = vadd.xlane.f32.xlu0 %v49
    %v51 = vpop.xlane.xlu0 %50
    %v52 = vmul.f32 %v48, %v39
    %v53 = vmul.f32 %v51, %v39
    %v54 = vadd.f32 %v52, 1e-05
    %v55 = vadd.f32 %v53, 1e-05
    %v56 = vrsqrt.pop %v54
    %v57 = vrsqrt.pop %v55
    %v58 = vmul.f32 %v42, %v56
    %v59 = vmul.f32 %v43, %v57
    %v61 = vlaneseq
    %v62 = vshrl.u32 %v61, 7
    %v63 = vsub.s32 0, %v62
    %v64 = vrot.slane %v30, %v63
    %v66 = vmul.f32 %v58, %v64
    %v67 = vmul.f32 %v59, %v64
    %v69 = vlaneseq
    %v70 = vshrl.u32 %v69, 7
    %v71 = vsub.s32 0, %v70
    %v72 = vrot.slane %v31, %v71
    %v74 = vadd.f32 %v66, %v72
    %v75 = vadd.f32 %v67, %v72
    %v76 = vmul.f32 %v74, 0.5
    %v77 = vmul.f32 %v75, 0.5
    %v78 = vmul.f32 %v74, 0.70710677
    %v79 = vmul.f32 %v75, 0.70710677
    %v80 = verf.f32.pop %v78
    %v81 = verf.f32.pop %v79
    %v82 = vadd.f32 %v80, 1.0
    %v83 = vadd.f32 %v81, 1.0
    %v84 = vmul.f32 %v76, %v82
    %v85 = vmul.f32 %v77, %v83
    %v86 = vld [vmem:[%s3] sm:$0xff]
    %v87 = vld [vmem:[%s3 + $0x8] sm:$0xff]
    %v88 = vld [vmem:[%s3 + $0x10] sm:$0xff]
    %v89 = vld [vmem:[%s3 + $0x18] sm:$0xff]
    %v90 = vld [vmem:[%s3 + $0x20] sm:$0xff]
    %v91 = vld [vmem:[%s3 + $0x28] sm:$0xff]
    %v92 = vld [vmem:[%s3 + $0x30] sm:$0xff]
    %v93 = vld [vmem:[%s3 + $0x38] sm:$0xff]
    %v94 = vld [vmem:[%s3 + $0x40] sm:$0xff]
    %v95 = vld [vmem:[%s3 + $0x48] sm:$0xff]
    %v96 = vld [vmem:[%s3 + $0x50] sm:$0xff]
    %v97 = vld [vmem:[%s3 + $0x58] sm:$0xff]
    %v98 = vld [vmem:[%s3 + $0x60] sm:$0xff]
    %v99 = vld [vmem:[%s3 + $0x68] sm:$0xff]
    %v100 = vld [vmem:[%s3 + $0x70] sm:$0xff]
    %v101 = vld [vmem:[%s3 + $0x78] sm:$0xff]
    %v102 = vpack.c.bf16 %v85, %v84
    %v103 = vpack.c.bf16 %v88, %v86
    %v104 = vpack.c.bf16 %v89, %v87
    %v105 = vpack.c.bf16 %v92, %v90
    %v106 = vpack.c.bf16 %v93, %v91
    %v107 = vpack.c.bf16 %v96, %v94
    %v108 = vpack.c.bf16 %v97, %v95
    %v109 = vpack.c.bf16 %v100, %v98
    %v110 = vpack.c.bf16 %v101, %v99
    %v111 = vld [vmem:[%s4] sm:$0x3]
    %v113 = vlaneseq
    %v114 = vshrl.u32 %v113, 7
    %v115 = vsub.s32 0, %v114
    %v116 = vrot.slane %v111, %v115
    %v117 = vlaneseq
    %v118 = vshrl.u32 %v117, 7
    %v119 = vsub.s32 1, %v118
    %v120 = vrot.slane %v111, %v119
    %v124 = vsel %vm32, %v102, 0
    %126 = vmatprep.subr.bf16.mxu0 %v104
    %127 = vmatpush1.bf16.msra.mxu0 %v103
    %128 = vmatprep.subr.bf16.mxu0 %v106
    %129 = vmatpush1.bf16.msra.mxu0 %v105
    %130 = vmatprep.subr.bf16.mxu0 %v108
    %131 = vmatpush1.bf16.msra.mxu0 %v107
    %132 = vmatprep.subr.bf16.mxu0 %v110
    %133 = vmatpush1.bf16.msra.mxu0 %v109
    %134 = vmatprep.subr.bf16.mxu0 0
    %135 = vmatpush1.bf16.msra.mxu0 0
    %136 = vmatprep.subr.bf16.mxu0 0
    %137 = vmatpush1.bf16.msra.mxu0 0
    %138 = vmatprep.subr.bf16.mxu0 0
    %139 = vmatpush1.bf16.msra.mxu0 0
    %140 = vmatprep.subr.bf16.mxu0 0
    %141 = vmatpush1.bf16.msra.mxu0 0
    %142 = vmatprep.subr.bf16.mxu0 0
    %143 = vmatpush1.bf16.msra.mxu0 0
    %144 = vmatprep.subr.bf16.mxu0 0
    %145 = vmatpush1.bf16.msra.mxu0 0
    %146 = vmatprep.subr.bf16.mxu0 0
    %147 = vmatpush1.bf16.msra.mxu0 0
    %148 = vmatprep.subr.bf16.mxu0 0
    %149 = vmatpush1.bf16.msra.mxu0 0
    %150 = vmatprep.subr.bf16.mxu0 0
    %151 = vmatpush1.bf16.msra.mxu0 0
    %152 = vmatprep.subr.bf16.mxu0 0
    %153 = vmatpush1.bf16.msra.mxu0 0
    %154 = vmatprep.subr.bf16.mxu0 0
    %155 = vmatpush1.bf16.msra.mxu0 0
    %156 = vmatprep.subr.bf16.mxu0 0
    %157 = vmatpush1.bf16.msra.mxu0 0
    %158 = vmatprep.mubr.bf16.mxu0 0
    %159 = vmatmul.mubr.bf16.gmra.mrb[0].mxu0 %v124
    %v160 = vpop.f32.mrb[0].mxu0
    %v161 = vadd.f32 %v116, %v160
    %v162 = vpop.f32.mrb[0].mxu0
    %v163 = vadd.f32 %v120, %v162
    %v164 = vpop.f32.mrb[0].mxu0
    %v165 = vadd.f32 %v116, %v164
    %v166 = vpop.f32.mrb[0].mxu0
    %v167 = vadd.f32 %v120, %v166
    %168 = vdwg.mxu0
    %vm169 = vcmask 785408
    %170 = vst.msk [vmem:[#allocation2] sm:$0xff] %vm169, %v161
    %171 = vst.msk [vmem:[#allocation2 + $0x8] sm:$0xff] %vm169, %v165
    %176 = vrot.lane.b32.xlu0 %v161, 32
    %v177 = vpop.permute.xlu0 %176
    %178 = vrot.lane.b32.xlu0 %v163, 32
    %v179 = vpop.permute.xlu0 %178
    %180 = vrot.lane.b32.xlu0 %v165, 32
    %v181 = vpop.permute.xlu0 %180
    %182 = vrot.lane.b32.xlu0 %v167, 32
    %v183 = vpop.permute.xlu0 %182
    %vm184 = vcmask 261120
    %v185 = vsel %vm184, %v177, %v179
    %v186 = vsel %vm184, %v181, %v183
    %189 = vst.msk [vmem:[#allocation3] sm:$0xff] %vm169, %v185
    %190 = vst.msk [vmem:[#allocation3 + $0x8] sm:$0xff] %vm169, %v186
    %v191 = vld [vmem:[%s5] sm:$0xff]
    %v192 = vld [vmem:[%s5 + $0x8] sm:$0xff]
    %v193 = vld [vmem:[%s5 + $0x10] sm:$0xff]
    %v194 = vld [vmem:[%s5 + $0x18] sm:$0xff]
    %v195 = vld [vmem:[%s5 + $0x20] sm:$0xff]
    %v196 = vld [vmem:[%s5 + $0x28] sm:$0xff]
    %v197 = vld [vmem:[%s5 + $0x30] sm:$0xff]
    %v198 = vld [vmem:[%s5 + $0x38] sm:$0xff]
    %v199 = vld [vmem:[%s5 + $0x40] sm:$0xff]
    %v200 = vld [vmem:[%s5 + $0x48] sm:$0xff]
    %v201 = vld [vmem:[%s5 + $0x50] sm:$0xff]
    %v202 = vld [vmem:[%s5 + $0x58] sm:$0xff]
    %v203 = vld [vmem:[%s5 + $0x60] sm:$0xff]
    %v204 = vld [vmem:[%s5 + $0x68] sm:$0xff]
    %v205 = vld [vmem:[%s5 + $0x70] sm:$0xff]
    %v206 = vld [vmem:[%s5 + $0x78] sm:$0xff]
    %v207 = vpack.c.bf16 %v193, %v191
    %v208 = vpack.c.bf16 %v194, %v192
    %v209 = vpack.c.bf16 %v197, %v195
    %v210 = vpack.c.bf16 %v198, %v196
    %v211 = vpack.c.bf16 %v201, %v199
    %v212 = vpack.c.bf16 %v202, %v200
    %v213 = vpack.c.bf16 %v205, %v203
    %v214 = vpack.c.bf16 %v206, %v204
    %v215 = vld [vmem:[%s6] sm:$0x3]
    %v216 = vld [vmem:[#allocation2] sm:$0xff]
    %s217 = scalar_lea.vmem [#allocation3], 8
    %v218 = vld [vmem:[%s217] sm:$0xff]
    %v219 = vpack.c.bf16 0.0, 0.0
    %v221 = vlaneseq
    %v222 = vshrl.u32 %v221, 7
    %v223 = vsub.s32 0, %v222
    %v224 = vrot.slane %v215, %v223
    %v225 = vlaneseq
    %v226 = vshrl.u32 %v225, 7
    %v227 = vsub.s32 1, %v226
    %v228 = vrot.slane %v215, %v227
    %v232 = vsel %vm32, %v219, 0
    %234 = vmatprep.subr.bf16.mxu0 %v208
    %235 = vmatpush1.bf16.msra.mxu0 %v207
    %236 = vmatprep.subr.bf16.mxu0 %v210
    %237 = vmatpush1.bf16.msra.mxu0 %v209
    %238 = vmatprep.subr.bf16.mxu0 %v212
    %239 = vmatpush1.bf16.msra.mxu0 %v211
    %240 = vmatprep.subr.bf16.mxu0 %v214
    %241 = vmatpush1.bf16.msra.mxu0 %v213
    %242 = vmatprep.subr.bf16.mxu0 0
    %243 = vmatpush1.bf16.msra.mxu0 0
    %244 = vmatprep.subr.bf16.mxu0 0
    %245 = vmatpush1.bf16.msra.mxu0 0
    %246 = vmatprep.subr.bf16.mxu0 0
    %247 = vmatpush1.bf16.msra.mxu0 0
    %248 = vmatprep.subr.bf16.mxu0 0
    %249 = vmatpush1.bf16.msra.mxu0 0
    %250 = vmatprep.subr.bf16.mxu0 0
    %251 = vmatpush1.bf16.msra.mxu0 0
    %252 = vmatprep.subr.bf16.mxu0 0
    %253 = vmatpush1.bf16.msra.mxu0 0
    %254 = vmatprep.subr.bf16.mxu0 0
    %255 = vmatpush1.bf16.msra.mxu0 0
    %256 = vmatprep.subr.bf16.mxu0 0
    %257 = vmatpush1.bf16.msra.mxu0 0
    %258 = vmatprep.subr.bf16.mxu0 0
    %259 = vmatpush1.bf16.msra.mxu0 0
    %260 = vmatprep.subr.bf16.mxu0 0
    %261 = vmatpush1.bf16.msra.mxu0 0
    %262 = vmatprep.subr.bf16.mxu0 0
    %263 = vmatpush1.bf16.msra.mxu0 0
    %264 = vmatprep.subr.bf16.mxu0 0
    %265 = vmatpush1.bf16.msra.mxu0 0
    %266 = vmatprep.mubr.bf16.mxu0 0
    %267 = vmatmul.mubr.bf16.gmra.mrb[0].mxu0 %v232
    %v268 = vpop.f32.mrb[0].mxu0
    %v269 = vadd.f32 %v224, %v268
    %v270 = vpop.f32.mrb[0].mxu0
    %v271 = vadd.f32 %v228, %v270
    %v272 = vpop.f32.mrb[0].mxu0
    %v273 = vpop.f32.mrb[0].mxu0
    %274 = vdwg.mxu0
    %v275 = vadd.f32 %v216, %v269
    %v276 = vxor.u32 %v275, 2147483648
    %v277 = vmul.f32 %v276, 1.442695
    %v278 = vpow.pop %v277
    %v279 = vadd.f32 %v278, 1.0
    %v280 = vrcp.pop %v279
    %v281 = vmul.f32 1.0, %v280
    %283 = vrot.lane.b32.xlu0 %v269, 64
    %v284 = vpop.permute.xlu0 %283
    %v286 = vmul.f32 %v281, %v284
    %288 = vrot.lane.b32.xlu0 %v286, 64
    %v289 = vpop.permute.xlu0 %288
    %v291 = vadd.f32 %v216, %v289
    %v292 = vtanh.pop %v291
    %v293 = vsub.f32 1.0, %v281
    %295 = vrot.lane.b32.xlu0 %v292, 96
    %v296 = vpop.permute.xlu0 %295
    %v298 = vmul.f32 %v293, %v296
    %v299 = vmul.f32 %v281, 0.0
    %v300 = vadd.f32 %v298, %v299
    %301 = vrot.lane.b32.xlu0 %v269, 32
    %v302 = vpop.permute.xlu0 %301
    %v304 = vadd.f32 %v218, %v302
    %v305 = vxor.u32 %v304, 2147483648
    %v306 = vmul.f32 %v305, 1.442695
    %v307 = vpow.pop %v306
    %v308 = vadd.f32 %v307, 1.0
    %v309 = vrcp.pop %v308
    %v310 = vmul.f32 1.0, %v309
    %312 = vrot.lane.b32.xlu0 %v271, 32
    %v313 = vpop.permute.xlu0 %312
    %v315 = vadd.f32 %v218, %v313
    %v316 = vxor.u32 %v315, 2147483648
    %v317 = vmul.f32 %v316, 1.442695
    %v318 = vpow.pop %v317
    %v319 = vadd.f32 %v318, 1.0
    %v320 = vrcp.pop %v319
    %v321 = vmul.f32 1.0, %v320
    %322 = vrot.lane.b32.xlu0 %v271, 96
    %v323 = vpop.permute.xlu0 %322
    %v325 = vmul.f32 %v310, %v323
    %327 = vrot.lane.b32.xlu0 %v325, 64
    %v328 = vpop.permute.xlu0 %327
    %v330 = vadd.f32 %v218, %v328
    %v331 = vtanh.pop %v330
    %v332 = vsub.f32 1.0, %v321
    %334 = vrot.lane.b32.xlu0 %v331, 96
    %v335 = vpop.permute.xlu0 %334
    %v337 = vmul.f32 %v332, %v335
    %v338 = vmul.f32 %v321, 0.0
    %v339 = vadd.f32 %v337, %v338
    %341 = vrot.lane.b32.xlu0 %v300, 96
    %v342 = vpop.permute.xlu0 %341
    %344 = vst.msk [vmem:[#allocation4] sm:$0xff] %vm184, %v342
    %s345 = scalar_lea.vmem [#allocation4], 8
    %vm346 = vcmask 523520
    %347 = vst.msk [vmem:[%s345] sm:$0xff] %vm346, %v339
    %s348 = scalar_lea.vmem [#allocation2], 8
    %v349 = vld [vmem:[%s348] sm:$0xff]
    %v350 = vld [vmem:[#allocation3] sm:$0xff]
    %v351 = vsel %vm184, %v342, %v339
    %v352 = vpack.c.bf16 %v351, %v351
    %v354 = vsel %vm32, %v352, 0
    %356 = vmatprep.subr.bf16.mxu0 %v208
    %357 = vmatpush1.bf16.msra.mxu0 %v207
    %358 = vmatprep.subr.bf16.mxu0 %v210
    %359 = vmatpush1.bf16.msra.mxu0 %v209
    %360 = vmatprep.subr.bf16.mxu0 %v212
    %361 = vmatpush1.bf16.msra.mxu0 %v211
    %362 = vmatprep.subr.bf16.mxu0 %v214
    %363 = vmatpush1.bf16.msra.mxu0 %v213
    %364 = vmatprep.subr.bf16.mxu0 0
    %365 = vmatpush1.bf16.msra.mxu0 0
    %366 = vmatprep.subr.bf16.mxu0 0
    %367 = vmatpush1.bf16.msra.mxu0 0
    %368 = vmatprep.subr.bf16.mxu0 0
    %369 = vmatpush1.bf16.msra.mxu0 0
    %370 = vmatprep.subr.bf16.mxu0 0
    %371 = vmatpush1.bf16.msra.mxu0 0
    %372 = vmatprep.subr.bf16.mxu0 0
    %373 = vmatpush1.bf16.msra.mxu0 0
    %374 = vmatprep.subr.bf16.mxu0 0
    %375 = vmatpush1.bf16.msra.mxu0 0
    %376 = vmatprep.subr.bf16.mxu0 0
    %377 = vmatpush1.bf16.msra.mxu0 0
    %378 = vmatprep.subr.bf16.mxu0 0
    %379 = vmatpush1.bf16.msra.mxu0 0
    %380 = vmatprep.subr.bf16.mxu0 0
    %381 = vmatpush1.bf16.msra.mxu0 0
    %382 = vmatprep.subr.bf16.mxu0 0
    %383 = vmatpush1.bf16.msra.mxu0 0
    %384 = vmatprep.subr.bf16.mxu0 0
    %385 = vmatpush1.bf16.msra.mxu0 0
    %386 = vmatprep.subr.bf16.mxu0 0
    %387 = vmatpush1.bf16.msra.mxu0 0
    %388 = vmatprep.mubr.bf16.mxu0 0
    %389 = vmatmul.mubr.bf16.gmra.mrb[0].mxu0 %v354
    %v390 = vpop.f32.mrb[0].mxu0
    %v391 = vadd.f32 %v224, %v390
    %v392 = vpop.f32.mrb[0].mxu0
    %v393 = vadd.f32 %v228, %v392
    %v394 = vpop.f32.mrb[0].mxu0
    %v395 = vpop.f32.mrb[0].mxu0
    %396 = vdwg.mxu0
    %v397 = vadd.f32 %v349, %v391
    %v398 = vxor.u32 %v397, 2147483648
    %v399 = vmul.f32 %v398, 1.442695
    %v400 = vpow.pop %v399
    %v401 = vadd.f32 %v400, 1.0
    %v402 = vrcp.pop %v401
    %v403 = vmul.f32 1.0, %v402
    %405 = vrot.lane.b32.xlu0 %v391, 64
    %v406 = vpop.permute.xlu0 %405
    %v408 = vmul.f32 %v403, %v406
    %410 = vrot.lane.b32.xlu0 %v408, 64
    %v411 = vpop.permute.xlu0 %410
    %v413 = vadd.f32 %v349, %v411
    %v414 = vtanh.pop %v413
    %v415 = vsub.f32 1.0, %v403
    %417 = vrot.lane.b32.xlu0 %v414, 96
    %v418 = vpop.permute.xlu0 %417
    %v420 = vmul.f32 %v415, %v418
    %v421 = vmul.f32 %v403, %v300
    %v422 = vadd.f32 %v420, %v421
    %423 = vrot.lane.b32.xlu0 %v391, 32
    %v424 = vpop.permute.xlu0 %423
    %v426 = vadd.f32 %v350, %v424
    %v427 = vxor.u32 %v426, 2147483648
    %v428 = vmul.f32 %v427, 1.442695
    %v429 = vpow.pop %v428
    %v430 = vadd.f32 %v429, 1.0
    %v431 = vrcp.pop %v430
    %v432 = vmul.f32 1.0, %v431
    %434 = vrot.lane.b32.xlu0 %v393, 32
    %v435 = vpop.permute.xlu0 %434
    %v437 = vadd.f32 %v350, %v435
    %v438 = vxor.u32 %v437, 2147483648
    %v439 = vmul.f32 %v438, 1.442695
    %v440 = vpow.pop %v439
    %v441 = vadd.f32 %v440, 1.0
    %v442 = vrcp.pop %v441
    %v443 = vmul.f32 1.0, %v442
    %444 = vrot.lane.b32.xlu0 %v393, 96
    %v445 = vpop.permute.xlu0 %444
    %v447 = vmul.f32 %v432, %v445
    %449 = vrot.lane.b32.xlu0 %v447, 64
    %v450 = vpop.permute.xlu0 %449
    %v452 = vadd.f32 %v350, %v450
    %v453 = vtanh.pop %v452
    %v454 = vsub.f32 1.0, %v443
    %456 = vrot.lane.b32.xlu0 %v453, 96
    %v457 = vpop.permute.xlu0 %456
    %v459 = vmul.f32 %v454, %v457
    %v460 = vmul.f32 %v443, %v339
    %v461 = vadd.f32 %v459, %v460
    %463 = vrot.lane.b32.xlu0 %v422, 96
    %v464 = vpop.permute.xlu0 %463
    %466 = vst.msk [vmem:[%s345] sm:$0xff] %vm184, %v464
    %467 = vst.msk [vmem:[#allocation4] sm:$0xff] %vm346, %v461
    // Predicated region
    $region30: #{conv_listener_forward.9} parent=1 // pred_check
      _
    $region31: #{conv_listener_forward.9} parent=1 // pred_check_branch
      %469 = sbr.rel (0) target = $region33
    $region32: #{conv_listener_forward.9} parent=1 // pred_region
      %s471 = ssub.s32 256, 256
      %472 = vsyncadd [#allocation5], %s471
      %s473 = sshll.u32 [#allocation4], 4
      %s474 = int_to_ptr.vmem [resolvable:$true] %s473
      %479 = dma.vmem_to_hbm [thread:$0]  %s474, 256, %s7, [#allocation5], 128, 128, 8
    $region33: #{conv_listener_forward.9} parent=1 // pred_fallthru
      _
    // Predicated region
    $region34: #{conv_listener_forward.9} parent=1 // pred_check
      _
    $region35: #{conv_listener_forward.9} parent=1 // pred_check_branch
      %481 = sbr.rel (0) target = $region37
    $region36: #{conv_listener_forward.9} parent=1 // pred_region
      %482 = dma.done [#allocation5], 256
    $region37: #{conv_listener_forward.9} parent=1 // pred_fallthru
      _
    %483 = vsyncpa [#allocation5], 1

// kernel: conv_listener_forward.8
$region0: #{conv_listener_forward.8}
  #allocation0 [shape = 'u32[]', space=smem, size = 0x4, offset = 0x4, fixed_abs, tag = 'smem constant byte address 0x4 - core index']
  #allocation1 [shape = 'u32[144,128]{1,0:T(1,128)}', space=vmem, size = 0x12000, scoped, tag = 'internal scratch']
  #allocation2 [shape = 'f32[8,8,96]{2,1,0:T(8,128)}', space=vmem, size = 0x8000, scoped, tag = 'scratch operand']
  #allocation3 [shape = 'f32[8,8,96]{2,1,0:T(8,128)}', space=vmem, size = 0x8000, scoped, tag = 'scratch operand']
  %s0 = inlined_call_operand.vmem [shape: f32[8,8,32], index: 0, kind: input, shape index: {}]
  %s1 = inlined_call_operand.vmem [shape: f32[1,32], index: 1, kind: input, shape index: {}]
  %s2 = inlined_call_operand.vmem [shape: f32[1,32], index: 2, kind: input, shape index: {}]
  %s3 = inlined_call_operand.vmem [shape: f32[32,192], index: 3, kind: input, shape index: {}]
  %s4 = inlined_call_operand.vmem [shape: f32[1,192], index: 4, kind: input, shape index: {}]
  %s5 = inlined_call_operand.vmem [shape: f32[64,192], index: 5, kind: input, shape index: {}]
  %s6 = inlined_call_operand.vmem [shape: f32[1,192], index: 6, kind: input, shape index: {}]
  %s7 = inlined_call_operand.vmem [shape: f32[8,8,64], index: 7, kind: output, shape index: {}]
  %s8 = sld [smem:[#allocation0]]
  $region38: #{conv_listener_forward.8} parent=0
    _
  %s10 = ssub.s32 1, %s8
  %s11 = scalar_select 0, %s10, %s8
  // Predicated region
  $region2: #{conv_listener_forward.8} parent=0 // pred_check
    _
  $region3: #{conv_listener_forward.8} parent=0 // pred_check_branch
    %13 = sbr.rel (0) target = $region5
  $region4: #{conv_listener_forward.8} parent=0 // pred_region
    _
  $region5: #{conv_listener_forward.8} parent=0 // pred_fallthru
    _
  // Predicated region
  $region6: #{conv_listener_forward.8} parent=0 // pred_check
    _
  $region7: #{conv_listener_forward.8} parent=0 // pred_check_branch
    %15 = sbr.rel (0) target = $region9
  $region8: #{conv_listener_forward.8} parent=0 // pred_region
    _
  $region9: #{conv_listener_forward.8} parent=0 // pred_fallthru
    _
  // Predicated region
  $region10: #{conv_listener_forward.8} parent=0 // pred_check
    _
  $region11: #{conv_listener_forward.8} parent=0 // pred_check_branch
    %17 = sbr.rel (0) target = $region13
  $region12: #{conv_listener_forward.8} parent=0 // pred_region
    _
  $region13: #{conv_listener_forward.8} parent=0 // pred_fallthru
    _
  // Predicated region
  $region14: #{conv_listener_forward.8} parent=0 // pred_check
    _
  $region15: #{conv_listener_forward.8} parent=0 // pred_check_branch
    %19 = sbr.rel (0) target = $region17
  $region16: #{conv_listener_forward.8} parent=0 // pred_region
    _
  $region17: #{conv_listener_forward.8} parent=0 // pred_fallthru
    _
  // Predicated region
  $region18: #{conv_listener_forward.8} parent=0 // pred_check
    _
  $region19: #{conv_listener_forward.8} parent=0 // pred_check_branch
    %21 = sbr.rel (0) target = $region21
  $region20: #{conv_listener_forward.8} parent=0 // pred_region
    _
  $region21: #{conv_listener_forward.8} parent=0 // pred_fallthru
    _
  // Predicated region
  $region22: #{conv_listener_forward.8} parent=0 // pred_check
    _
  $region23: #{conv_listener_forward.8} parent=0 // pred_check_branch
    %23 = sbr.rel (0) target = $region25
  $region24: #{conv_listener_forward.8} parent=0 // pred_region
    _
  $region25: #{conv_listener_forward.8} parent=0 // pred_fallthru
    _
  // Predicated region
  $region26: #{conv_listener_forward.8} parent=0 // pred_check
    _
  $region27: #{conv_listener_forward.8} parent=0 // pred_check_branch
    %25 = sbr.rel (0) target = $region29
  $region28: #{conv_listener_forward.8} parent=0 // pred_region
    _
  $region29: #{conv_listener_forward.8} parent=0 // pred_fallthru
    _
  %v27 = vld [vmem:[%s0] sm:$0xff]
  %v28 = vld [vmem:[%s0 + $0x8] sm:$0xff]
  %v29 = vld [vmem:[%s0 + $0x10] sm:$0xff]
  %v30 = vld [vmem:[%s0 + $0x18] sm:$0xff]
  %v31 = vld [vmem:[%s0 + $0x20] sm:$0xff]
  %v32 = vld [vmem:[%s0 + $0x28] sm:$0xff]
  %v33 = vld [vmem:[%s0 + $0x30] sm:$0xff]
  %v34 = vld [vmem:[%s0 + $0x38] sm:$0xff]
  %v35 = vld [vmem:[%s1] sm:$0x1]
  %v36 = vld [vmem:[%s2] sm:$0x1]
  %vm37 = vcmask 261120
  %v38 = vsel %vm37, %v27, 0.0
  %39 = vadd.xlane.f32.xlu0 %v38
  %v40 = vpop.xlane.xlu0 %39
  %v41 = vsel %vm37, %v28, 0.0
  %42 = vadd.xlane.f32.xlu0 %v41
  %v43 = vpop.xlane.xlu0 %42
  %v44 = vsel %vm37, %v29, 0.0
  %45 = vadd.xlane.f32.xlu0 %v44
  %v46 = vpop.xlane.xlu0 %45
  %v47 = vsel %vm37, %v30, 0.0
  %48 = vadd.xlane.f32.xlu0 %v47
  %v49 = vpop.xlane.xlu0 %48
  %v50 = vsel %vm37, %v31, 0.0
  %51 = vadd.xlane.f32.xlu0 %v50
  %v52 = vpop.xlane.xlu0 %51
  %v53 = vsel %vm37, %v32, 0.0
  %54 = vadd.xlane.f32.xlu0 %v53
  %v55 = vpop.xlane.xlu0 %54
  %v56 = vsel %vm37, %v33, 0.0
  %57 = vadd.xlane.f32.xlu0 %v56
  %v58 = vpop.xlane.xlu0 %57
  %v59 = vsel %vm37, %v34, 0.0
  %60 = vadd.xlane.f32.xlu0 %v59
  %v61 = vpop.xlane.xlu0 %60
  %v62 = vrcp.pop 32.0
  %v63 = vmul.f32 %v40, %v62
  %v64 = vmul.f32 %v43, %v62
  %v65 = vmul.f32 %v46, %v62
  %v66 = vmul.f32 %v49, %v62
  %v67 = vmul.f32 %v52, %v62
  %v68 = vmul.f32 %v55, %v62
  %v69 = vmul.f32 %v58, %v62
  %v70 = vmul.f32 %v61, %v62
  %v71 = vsub.f32 %v27, %v63
  %v72 = vsub.f32 %v28, %v64
  %v73 = vsub.f32 %v29, %v65
  %v74 = vsub.f32 %v30, %v66
  %v75 = vsub.f32 %v31, %v67
  %v76 = vsub.f32 %v32, %v68
  %v77 = vsub.f32 %v33, %v69
  %v78 = vsub.f32 %v34, %v70
  %v79 = vmul.f32 %v71, %v71
  %v80 = vmul.f32 %v72, %v72
  %v81 = vmul.f32 %v73, %v73
  %v82 = vmul.f32 %v74, %v74
  %v83 = vmul.f32 %v75, %v75
  %v84 = vmul.f32 %v76, %v76
  %v85 = vmul.f32 %v77, %v77
  %v86 = vmul.f32 %v78, %v78
  %v87 = vsel %vm37, %v79, 0.0
  %88 = vadd.xlane.f32.xlu0 %v87
  %v89 = vpop.xlane.xlu0 %88
  %v90 = vsel %vm37, %v80, 0.0
  %91 = vadd.xlane.f32.xlu0 %v90
  %v92 = vpop.xlane.xlu0 %91
  %v93 = vsel %vm37, %v81, 0.0
  %94 = vadd.xlane.f32.xlu0 %v93
  %v95 = vpop.xlane.xlu0 %94
  %v96 = vsel %vm37, %v82, 0.0
  %97 = vadd.xlane.f32.xlu0 %v96
  %v98 = vpop.xlane.xlu0 %97
  %v99 = vsel %vm37, %v83, 0.0
  %100 = vadd.xlane.f32.xlu0 %v99
  %v101 = vpop.xlane.xlu0 %100
  %v102 = vsel %vm37, %v84, 0.0
  %103 = vadd.xlane.f32.xlu0 %v102
  %v104 = vpop.xlane.xlu0 %103
  %v105 = vsel %vm37, %v85, 0.0
  %106 = vadd.xlane.f32.xlu0 %v105
  %v107 = vpop.xlane.xlu0 %106
  %v108 = vsel %vm37, %v86, 0.0
  %109 = vadd.xlane.f32.xlu0 %v108
  %v110 = vpop.xlane.xlu0 %109
  %v111 = vmul.f32 %v89, %v62
  %v112 = vmul.f32 %v92, %v62
  %v113 = vmul.f32 %v95, %v62
  %v114 = vmul.f32 %v98, %v62
  %v115 = vmul.f32 %v101, %v62
  %v116 = vmul.f32 %v104, %v62
  %v117 = vmul.f32 %v107, %v62
  %v118 = vmul.f32 %v110, %v62
  %v119 = vadd.f32 %v111, 1e-05
  %v120 = vadd.f32 %v112, 1e-05
  %v121 = vadd.f32 %v113, 1e-05
  %v122 = vadd.f32 %v114, 1e-05
  %v123 = vadd.f32 %v115, 1e-05
  %v124 = vadd.f32 %v116, 1e-05
  %v125 = vadd.f32 %v117, 1e-05
  %v126 = vadd.f32 %v118, 1e-05
  %v127 = vrsqrt.pop %v119
  %v128 = vrsqrt.pop %v120
  %v129 = vrsqrt.pop %v121
  %v130 = vrsqrt.pop %v122
  %v131 = vrsqrt.pop %v123
  %v132 = vrsqrt.pop %v124
  %v133 = vrsqrt.pop %v125
  %v134 = vrsqrt.pop %v126
  %v135 = vmul.f32 %v71, %v127
  %v136 = vmul.f32 %v72, %v128
  %v137 = vmul.f32 %v73, %v129
  %v138 = vmul.f32 %v74, %v130
  %v139 = vmul.f32 %v75, %v131
  %v140 = vmul.f32 %v76, %v132
  %v141 = vmul.f32 %v77, %v133
  %v142 = vmul.f32 %v78, %v134
  %v144 = vlaneseq
  %v145 = vshrl.u32 %v144, 7
  %v146 = vsub.s32 0, %v145
  %v147 = vrot.slane %v35, %v146
  %v149 = vmul.f32 %v135, %v147
  %v150 = vmul.f32 %v136, %v147
  %v151 = vmul.f32 %v137, %v147
  %v152 = vmul.f32 %v138, %v147
  %v153 = vmul.f32 %v139, %v147
  %v154 = vmul.f32 %v140, %v147
  %v155 = vmul.f32 %v141, %v147
  %v156 = vmul.f32 %v142, %v147
  %v158 = vlaneseq
  %v159 = vshrl.u32 %v158, 7
  %v160 = vsub.s32 0, %v159
  %v161 = vrot.slane %v36, %v160
  %v163 = vadd.f32 %v149, %v161
  %v164 = vadd.f32 %v150, %v161
  %v165 = vadd.f32 %v151, %v161
  %v166 = vadd.f32 %v152, %v161
  %v167 = vadd.f32 %v153, %v161
  %v168 = vadd.f32 %v154, %v161
  %v169 = vadd.f32 %v155, %v161
  %v170 = vadd.f32 %v156, %v161
  %v171 = vmul.f32 %v163, 0.5
  %v172 = vmul.f32 %v164, 0.5
  %v173 = vmul.f32 %v165, 0.5
  %v174 = vmul.f32 %v166, 0.5
  %v175 = vmul.f32 %v167, 0.5
  %v176 = vmul.f32 %v168, 0.5
  %v177 = vmul.f32 %v169, 0.5
  %v178 = vmul.f32 %v170, 0.5
  %v179 = vmul.f32 %v163, 0.70710677
  %v180 = vmul.f32 %v164, 0.70710677
  %v181 = vmul.f32 %v165, 0.70710677
  %v182 = vmul.f32 %v166, 0.70710677
  %v183 = vmul.f32 %v167, 0.70710677
  %v184 = vmul.f32 %v168, 0.70710677
  %v185 = vmul.f32 %v169, 0.70710677
  %v186 = vmul.f32 %v170, 0.70710677
  %v187 = verf.f32.pop %v179
  %v188 = verf.f32.pop %v180
  %v189 = verf.f32.pop %v181
  %v190 = verf.f32.pop %v182
  %v191 = verf.f32.pop %v183
  %v192 = verf.f32.pop %v184
  %v193 = verf.f32.pop %v185
  %v194 = verf.f32.pop %v186
  %v195 = vadd.f32 %v187, 1.0
  %v196 = vadd.f32 %v188, 1.0
  %v197 = vadd.f32 %v189, 1.0
  %v198 = vadd.f32 %v190, 1.0
  %v199 = vadd.f32 %v191, 1.0
  %v200 = vadd.f32 %v192, 1.0
  %v201 = vadd.f32 %v193, 1.0
  %v202 = vadd.f32 %v194, 1.0
  %v203 = vmul.f32 %v171, %v195
  %v204 = vmul.f32 %v172, %v196
  %v205 = vmul.f32 %v173, %v197
  %v206 = vmul.f32 %v174, %v198
  %v207 = vmul.f32 %v175, %v199
  %v208 = vmul.f32 %v176, %v200
  %v209 = vmul.f32 %v177, %v201
  %v210 = vmul.f32 %v178, %v202
  %v211 = vld [vmem:[%s3] sm:$0xff]
  %v212 = vld [vmem:[%s3 + $0x8] sm:$0xff]
  %v213 = vld [vmem:[%s3 + $0x10] sm:$0xff]
  %v214 = vld [vmem:[%s3 + $0x18] sm:$0xff]
  %v215 = vld [vmem:[%s3 + $0x20] sm:$0xff]
  %v216 = vld [vmem:[%s3 + $0x28] sm:$0xff]
  %v217 = vld [vmem:[%s3 + $0x30] sm:$0xff]
  %v218 = vld [vmem:[%s3 + $0x38] sm:$0xff]
  %v219 = vpack.c.bf16 %v204, %v203
  %v220 = vpack.c.bf16 %v206, %v205
  %v221 = vpack.c.bf16 %v208, %v207
  %v222 = vpack.c.bf16 %v210, %v209
  %v223 = vpack.c.bf16 %v213, %v211
  %v224 = vpack.c.bf16 %v214, %v212
  %v225 = vpack.c.bf16 %v217, %v215
  %v226 = vpack.c.bf16 %v218, %v216
  %v227 = vld [vmem:[%s4] sm:$0x3]
  %v229 = vlaneseq
  %v230 = vshrl.u32 %v229, 7
  %v231 = vsub.s32 0, %v230
  %v232 = vrot.slane %v227, %v231
  %v233 = vlaneseq
  %v234 = vshrl.u32 %v233, 7
  %v235 = vsub.s32 1, %v234
  %v236 = vrot.slane %v227, %v235
  %v240 = vsel %vm37, %v219, 0
  %v243 = vsel %vm37, %v220, 0
  %v246 = vsel %vm37, %v221, 0
  %v249 = vsel %vm37, %v222, 0
  %251 = vmatprep.subr.bf16.mxu0 %v224
  %252 = vmatpush1.bf16.msra.mxu0 %v223
  %253 = vmatprep.subr.bf16.mxu0 %v226
  %254 = vmatpush1.bf16.msra.mxu0 %v225
  %255 = vmatprep.subr.bf16.mxu0 0
  %256 = vmatpush1.bf16.msra.mxu0 0
  %257 = vmatprep.subr.bf16.mxu0 0
  %258 = vmatpush1.bf16.msra.mxu0 0
  %259 = vmatprep.subr.bf16.mxu0 0
  %260 = vmatpush1.bf16.msra.mxu0 0
  %261 = vmatprep.subr.bf16.mxu0 0
  %262 = vmatpush1.bf16.msra.mxu0 0
  %263 = vmatprep.subr.bf16.mxu0 0
  %264 = vmatpush1.bf16.msra.mxu0 0
  %265 = vmatprep.subr.bf16.mxu0 0
  %266 = vmatpush1.bf16.msra.mxu0 0
  %267 = vmatprep.subr.bf16.mxu0 0
  %268 = vmatpush1.bf16.msra.mxu0 0
  %269 = vmatprep.subr.bf16.mxu0 0
  %270 = vmatpush1.bf16.msra.mxu0 0
  %271 = vmatprep.subr.bf16.mxu0 0
  %272 = vmatpush1.bf16.msra.mxu0 0
  %273 = vmatprep.subr.bf16.mxu0 0
  %274 = vmatpush1.bf16.msra.mxu0 0
  %275 = vmatprep.subr.bf16.mxu0 0
  %276 = vmatpush1.bf16.msra.mxu0 0
  %277 = vmatprep.subr.bf16.mxu0 0
  %278 = vmatpush1.bf16.msra.mxu0 0
  %279 = vmatprep.subr.bf16.mxu0 0
  %280 = vmatpush1.bf16.msra.mxu0 0
  %281 = vmatprep.subr.bf16.mxu0 0
  %282 = vmatpush1.bf16.msra.mxu0 0
  %283 = vmatprep.mubr.bf16.mxu0 0
  %284 = vmatmul.mubr.bf16.gmra.mrb[0].mxu0 %v240
  %v285 = vpop.f32.mrb[0].mxu0
  %v286 = vadd.f32 %v232, %v285
  %v287 = vpop.f32.mrb[0].mxu0
  %v288 = vadd.f32 %v236, %v287
  %v289 = vpop.f32.mrb[0].mxu0
  %v290 = vadd.f32 %v232, %v289
  %v291 = vpop.f32.mrb[0].mxu0
  %v292 = vadd.f32 %v236, %v291
  %293 = vmatprep.mubr.bf16.mxu0 0
  %294 = vmatmul.mubr.bf16.gmra.mrb[0].mxu0 %v243
  %v295 = vpop.f32.mrb[0].mxu0
  %v296 = vadd.f32 %v232, %v295
  %v297 = vpop.f32.mrb[0].mxu0
  %v298 = vadd.f32 %v236, %v297
  %v299 = vpop.f32.mrb[0].mxu0
  %v300 = vadd.f32 %v232, %v299
  %v301 = vpop.f32.mrb[0].mxu0
  %v302 = vadd.f32 %v236, %v301
  %303 = vmatprep.mubr.bf16.mxu0 0
  %304 = vmatmul.mubr.bf16.gmra.mrb[0].mxu0 %v246
  %v305 = vpop.f32.mrb[0].mxu0
  %v306 = vadd.f32 %v232, %v305
  %v307 = vpop.f32.mrb[0].mxu0
  %v308 = vadd.f32 %v236, %v307
  %v309 = vpop.f32.mrb[0].mxu0
  %v310 = vadd.f32 %v232, %v309
  %v311 = vpop.f32.mrb[0].mxu0
  %v312 = vadd.f32 %v236, %v311
  %313 = vmatprep.mubr.bf16.mxu0 0
  %314 = vmatmul.mubr.bf16.gmra.mrb[0].mxu0 %v249
  %v315 = vpop.f32.mrb[0].mxu0
  %v316 = vadd.f32 %v232, %v315
  %v317 = vpop.f32.mrb[0].mxu0
  %v318 = vadd.f32 %v236, %v317
  %v319 = vpop.f32.mrb[0].mxu0
  %v320 = vadd.f32 %v232, %v319
  %v321 = vpop.f32.mrb[0].mxu0
  %v322 = vadd.f32 %v236, %v321
  %323 = vdwg.mxu0
  %vm324 = vcmask 785408
  %325 = vst.msk [vmem:[#allocation2] sm:$0xff] %vm324, %v286
  %326 = vst.msk [vmem:[#allocation2 + $0x8] sm:$0xff] %vm324, %v290
  %327 = vst.msk [vmem:[#allocation2 + $0x10] sm:$0xff] %vm324, %v296
  %328 = vst.msk [vmem:[#allocation2 + $0x18] sm:$0xff] %vm324, %v300
  %329 = vst.msk [vmem:[#allocation2 + $0x20] sm:$0xff] %vm324, %v306
  %330 = vst.msk [vmem:[#allocation2 + $0x28] sm:$0xff] %vm324, %v310
  %331 = vst.msk [vmem:[#allocation2 + $0x30] sm:$0xff] %vm324, %v316
  %332 = vst.msk [vmem:[#allocation2 + $0x38] sm:$0xff] %vm324, %v320
  %349 = vrot.lane.b32.xlu0 %v286, 32
  %v350 = vpop.permute.xlu0 %349
  %351 = vrot.lane.b32.xlu0 %v288, 32
  %v352 = vpop.permute.xlu0 %351
  %353 = vrot.lane.b32.xlu0 %v290, 32
  %v354 = vpop.permute.xlu0 %353
  %355 = vrot.lane.b32.xlu0 %v292, 32
  %v356 = vpop.permute.xlu0 %355
  %357 = vrot.lane.b32.xlu0 %v296, 32
  %v358 = vpop.permute.xlu0 %357
  %359 = vrot.lane.b32.xlu0 %v298, 32
  %v360 = vpop.permute.xlu0 %359
  %361 = vrot.lane.b32.xlu0 %v300, 32
  %v362 = vpop.permute.xlu0 %361
  %363 = vrot.lane.b32.xlu0 %v302, 32
  %v364 = vpop.permute.xlu0 %363
  %365 = vrot.lane.b32.xlu0 %v306, 32
  %v366 = vpop.permute.xlu0 %365
  %367 = vrot.lane.b32.xlu0 %v308, 32
  %v368 = vpop.permute.xlu0 %367
  %369 = vrot.lane.b32.xlu0 %v310, 32
  %v370 = vpop.permute.xlu0 %369
  %371 = vrot.lane.b32.xlu0 %v312, 32
  %v372 = vpop.permute.xlu0 %371
  %373 = vrot.lane.b32.xlu0 %v316, 32
  %v374 = vpop.permute.xlu0 %373
  %375 = vrot.lane.b32.xlu0 %v318, 32
  %v376 = vpop.permute.xlu0 %375
  %377 = vrot.lane.b32.xlu0 %v320, 32
  %v378 = vpop.permute.xlu0 %377
  %379 = vrot.lane.b32.xlu0 %v322, 32
  %v380 = vpop.permute.xlu0 %379
  %v381 = vsel %vm37, %v350, %v352
  %v382 = vsel %vm37, %v354, %v356
  %v383 = vsel %vm37, %v358, %v360
  %v384 = vsel %vm37, %v362, %v364
  %v385 = vsel %vm37, %v366, %v368
  %v386 = vsel %vm37, %v370, %v372
  %v387 = vsel %vm37, %v374, %v376
  %v388 = vsel %vm37, %v378, %v380
  %397 = vst.msk [vmem:[#allocation3] sm:$0xff] %vm324, %v381
  %398 = vst.msk [vmem:[#allocation3 + $0x8] sm:$0xff] %vm324, %v382
  %399 = vst.msk [vmem:[#allocation3 + $0x10] sm:$0xff] %vm324, %v383
  %400 = vst.msk [vmem:[#allocation3 + $0x18] sm:$0xff] %vm324, %v384
  %401 = vst.msk [vmem:[#allocation3 + $0x20] sm:$0xff] %vm324, %v385
  %402 = vst.msk [vmem:[#allocation3 + $0x28] sm:$0xff] %vm324, %v386
  %403 = vst.msk [vmem:[#allocation3 + $0x30] sm:$0xff] %vm324, %v387
  %404 = vst.msk [vmem:[#allocation3 + $0x38] sm:$0xff] %vm324, %v388
  %v405 = vld [vmem:[%s5] sm:$0xff]
  %v406 = vld [vmem:[%s5 + $0x8] sm:$0xff]
  %v407 = vld [vmem:[%s5 + $0x10] sm:$0xff]
  %v408 = vld [vmem:[%s5 + $0x18] sm:$0xff]
  %v409 = vld [vmem:[%s5 + $0x20] sm:$0xff]
  %v410 = vld [vmem:[%s5 + $0x28] sm:$0xff]
  %v411 = vld [vmem:[%s5 + $0x30] sm:$0xff]
  %v412 = vld [vmem:[%s5 + $0x38] sm:$0xff]
  %v413 = vld [vmem:[%s5 + $0x40] sm:$0xff]
  %v414 = vld [vmem:[%s5 + $0x48] sm:$0xff]
  %v415 = vld [vmem:[%s5 + $0x50] sm:$0xff]
  %v416 = vld [vmem:[%s5 + $0x58] sm:$0xff]
  %v417 = vld [vmem:[%s5 + $0x60] sm:$0xff]
  %v418 = vld [vmem:[%s5 + $0x68] sm:$0xff]
  %v419 = vld [vmem:[%s5 + $0x70] sm:$0xff]
  %v420 = vld [vmem:[%s5 + $0x78] sm:$0xff]
  %v421 = vpack.c.bf16 %v407, %v405
  %v422 = vpack.c.bf16 %v408, %v406
  %v423 = vpack.c.bf16 %v411, %v409
  %v424 = vpack.c.bf16 %v412, %v410
  %v425 = vpack.c.bf16 %v415, %v413
  %v426 = vpack.c.bf16 %v416, %v414
  %v427 = vpack.c.bf16 %v419, %v417
  %v428 = vpack.c.bf16 %v420, %v418
  %v429 = vld [vmem:[%s6] sm:$0x3]
  %v430 = vld [vmem:[#allocation2] sm:$0xff]
  %s431 = scalar_lea.vmem [#allocation3], 56
  %v432 = vld [vmem:[%s431] sm:$0xff]
  %v433 = vpack.c.bf16 0.0, 0.0
  %v435 = vlaneseq
  %v436 = vshrl.u32 %v435, 7
  %v437 = vsub.s32 0, %v436
  %v438 = vrot.slane %v429, %v437
  %v439 = vlaneseq
  %v440 = vshrl.u32 %v439, 7
  %v441 = vsub.s32 1, %v440
  %v442 = vrot.slane %v429, %v441
  %vm445 = vcmask 523264
  %v447 = vsel %vm445, %v433, 0
  %449 = vmatprep.subr.bf16.mxu0 %v422
  %450 = vmatpush1.bf16.msra.mxu0 %v421
  %451 = vmatprep.subr.bf16.mxu0 %v424
  %452 = vmatpush1.bf16.msra.mxu0 %v423
  %453 = vmatprep.subr.bf16.mxu0 %v426
  %454 = vmatpush1.bf16.msra.mxu0 %v425
  %455 = vmatprep.subr.bf16.mxu0 %v428
  %456 = vmatpush1.bf16.msra.mxu0 %v427
  %457 = vmatprep.subr.bf16.mxu0 0
  %458 = vmatpush1.bf16.msra.mxu0 0
  %459 = vmatprep.subr.bf16.mxu0 0
  %460 = vmatpush1.bf16.msra.mxu0 0
  %461 = vmatprep.subr.bf16.mxu0 0
  %462 = vmatpush1.bf16.msra.mxu0 0
  %463 = vmatprep.subr.bf16.mxu0 0
  %464 = vmatpush1.bf16.msra.mxu0 0
  %465 = vmatprep.subr.bf16.mxu0 0
  %466 = vmatpush1.bf16.msra.mxu0 0
  %467 = vmatprep.subr.bf16.mxu0 0
  %468 = vmatpush1.bf16.msra.mxu0 0
  %469 = vmatprep.subr.bf16.mxu0 0
  %470 = vmatpush1.bf16.msra.mxu0 0
  %471 = vmatprep.subr.bf16.mxu0 0
  %472 = vmatpush1.bf16.msra.mxu0 0
  %473 = vmatprep.subr.bf16.mxu0 0
  %474 = vmatpush1.bf16.msra.mxu0 0
  %475 = vmatprep.subr.bf16.mxu0 0
  %476 = vmatpush1.bf16.msra.mxu0 0
  %477 = vmatprep.subr.bf16.mxu0 0
  %478 = vmatpush1.bf16.msra.mxu0 0
  %479 = vmatprep.subr.bf16.mxu0 0
  %480 = vmatpush1.bf16.msra.mxu0 0
  %481 = vmatprep.mubr.bf16.mxu0 0
  %482 = vmatmul.mubr.bf16.gmra.mrb[0].mxu0 %v447
  %v483 = vpop.f32.mrb[0].mxu0
  %v484 = vadd.f32 %v438, %v483
  %v485 = vpop.f32.mrb[0].mxu0
  %v486 = vadd.f32 %v442, %v485
  %v487 = vpop.f32.mrb[0].mxu0
  %v488 = vpop.f32.mrb[0].mxu0
  %489 = vdwg.mxu0
  %v490 = vadd.f32 %v430, %v484
  %v491 = vxor.u32 %v490, 2147483648
  %v492 = vmul.f32 %v491, 1.442695
  %v493 = vpow.pop %v492
  %v494 = vadd.f32 %v493, 1.0
  %v495 = vrcp.pop %v494
  %v496 = vmul.f32 1.0, %v495
  %498 = vrot.lane.b32.xlu0 %v484, 64
  %v499 = vpop.permute.xlu0 %498
  %v501 = vmul.f32 %v496, %v499
  %503 = vrot.lane.b32.xlu0 %v501, 64
  %v504 = vpop.permute.xlu0 %503
  %v506 = vadd.f32 %v430, %v504
  %v507 = vtanh.pop %v506
  %v508 = vsub.f32 1.0, %v496
  %510 = vrot.lane.b32.xlu0 %v507, 96
  %v511 = vpop.permute.xlu0 %510
  %v513 = vmul.f32 %v508, %v511
  %v514 = vmul.f32 %v496, 0.0
  %v515 = vadd.f32 %v513, %v514
  %516 = vrot.lane.b32.xlu0 %v484, 32
  %v517 = vpop.permute.xlu0 %516
  %v519 = vadd.f32 %v432, %v517
  %v520 = vxor.u32 %v519, 2147483648
  %v521 = vmul.f32 %v520, 1.442695
  %v522 = vpow.pop %v521
  %v523 = vadd.f32 %v522, 1.0
  %v524 = vrcp.pop %v523
  %v525 = vmul.f32 1.0, %v524
  %527 = vrot.lane.b32.xlu0 %v486, 32
  %v528 = vpop.permute.xlu0 %527
  %v530 = vadd.f32 %v432, %v528
  %v531 = vxor.u32 %v530, 2147483648
  %v532 = vmul.f32 %v531, 1.442695
  %v533 = vpow.pop %v532
  %v534 = vadd.f32 %v533, 1.0
  %v535 = vrcp.pop %v534
  %v536 = vmul.f32 1.0, %v535
  %537 = vrot.lane.b32.xlu0 %v486, 96
  %v538 = vpop.permute.xlu0 %537
  %v540 = vmul.f32 %v525, %v538
  %542 = vrot.lane.b32.xlu0 %v540, 64
  %v543 = vpop.permute.xlu0 %542
  %v545 = vadd.f32 %v432, %v543
  %v546 = vtanh.pop %v545
  %v547 = vsub.f32 1.0, %v536
  %549 = vrot.lane.b32.xlu0 %v546, 96
  %v550 = vpop.permute.xlu0 %549
  %v552 = vmul.f32 %v547, %v550
  %v553 = vmul.f32 %v536, 0.0
  %v554 = vadd.f32 %v552, %v553
  %556 = vrot.lane.b32.xlu0 %v515, 96
  %v557 = vpop.permute.xlu0 %556
  %559 = vst.msk [vmem:[%s7] sm:$0xff] %vm37, %v557
  %s560 = scalar_lea.vmem %s7, 56
  %vm561 = vcmask 523520
  %562 = vst.msk [vmem:[%s560] sm:$0xff] %vm561, %v554
  %s563 = scalar_lea.vmem [#allocation2], 8
  %v564 = vld [vmem:[%s563] sm:$0xff]
  %s565 = scalar_lea.vmem [#allocation3], 48
  %v566 = vld [vmem:[%s565] sm:$0xff]
  %v567 = vsel %vm37, %v557, %v554
  %v568 = vpack.c.bf16 %v567, %v567
  %v570 = vsel %vm445, %v568, 0
  %572 = vmatprep.subr.bf16.mxu0 %v422
  %573 = vmatpush1.bf16.msra.mxu0 %v421
  %574 = vmatprep.subr.bf16.mxu0 %v424
  %575 = vmatpush1.bf16.msra.mxu0 %v423
  %576 = vmatprep.subr.bf16.mxu0 %v426
  %577 = vmatpush1.bf16.msra.mxu0 %v425
  %578 = vmatprep.subr.bf16.mxu0 %v428
  %579 = vmatpush1.bf16.msra.mxu0 %v427
  %580 = vmatprep.subr.bf16.mxu0 0
  %581 = vmatpush1.bf16.msra.mxu0 0
  %582 = vmatprep.subr.bf16.mxu0 0
  %583 = vmatpush1.bf16.msra.mxu0 0
  %584 = vmatprep.subr.bf16.mxu0 0
  %585 = vmatpush1.bf16.msra.mxu0 0
  %586 = vmatprep.subr.bf16.mxu0 0
  %587 = vmatpush1.bf16.msra.mxu0 0
  %588 = vmatprep.subr.bf16.mxu0 0
  %589 = vmatpush1.bf16.msra.mxu0 0
  %590 = vmatprep.subr.bf16.mxu0 0
  %591 = vmatpush1.bf16.msra.mxu0 0
  %592 = vmatprep.subr.bf16.mxu0 0
  %593 = vmatpush1.bf16.msra.mxu0 0
  %594 = vmatprep.subr.bf16.mxu0 0
  %595 = vmatpush1.bf16.msra.mxu0 0
  %596 = vmatprep.subr.bf16.mxu0 0
  %597 = vmatpush1.bf16.msra.mxu0 0
  %598 = vmatprep.subr.bf16.mxu0 0
  %599 = vmatpush1.bf16.msra.mxu0 0
  %600 = vmatprep.subr.bf16.mxu0 0
  %601 = vmatpush1.bf16.msra.mxu0 0
  %602 = vmatprep.subr.bf16.mxu0 0
  %603 = vmatpush1.bf16.msra.mxu0 0
  %604 = vmatprep.mubr.bf16.mxu0 0
  %605 = vmatmul.mubr.bf16.gmra.mrb[0].mxu0 %v570
  %v606 = vpop.f32.mrb[0].mxu0
  %v607 = vadd.f32 %v438, %v606
  %v608 = vpop.f32.mrb[0].mxu0
  %v609 = vadd.f32 %v442, %v608
  %v610 = vpop.f32.mrb[0].mxu0
  %v611 = vpop.f32.mrb[0].mxu0
  %612 = vdwg.mxu0
  %v613 = vadd.f32 %v564, %v607
  %v614 = vxor.u32 %v613, 2147483648
  %v615 = vmul.f32 %v614, 1.442695
  %v616 = vpow.pop %v615
  %v617 = vadd.f32 %v616, 1.0
  %v618 = vrcp.pop %v617
  %v619 = vmul.f32 1.0, %v618
  %621 = vrot.lane.b32.xlu0 %v607, 64
  %v622 = vpop.permute.xlu0 %621
  %v624 = vmul.f32 %v619, %v622
  %626 = vrot.lane.b32.xlu0 %v624, 64
  %v627 = vpop.permute.xlu0 %626
  %v629 = vadd.f32 %v564, %v627
  %v630 = vtanh.pop %v629
  %v631 = vsub.f32 1.0, %v619
  %633 = vrot.lane.b32.xlu0 %v630, 96
  %v634 = vpop.permute.xlu0 %633
  %v636 = vmul.f32 %v631, %v634
  %v637 = vmul.f32 %v619, %v515
  %v638 = vadd.f32 %v636, %v637
  %639 = vrot.lane.b32.xlu0 %v607, 32
  %v640 = vpop.permute.xlu0 %639
  %v642 = vadd.f32 %v566, %v640
  %v643 = vxor.u32 %v642, 2147483648
  %v644 = vmul.f32 %v643, 1.442695
  %v645 = vpow.pop %v644
  %v646 = vadd.f32 %v645, 1.0
  %v647 = vrcp.pop %v646
  %v648 = vmul.f32 1.0, %v647
  %650 = vrot.lane.b32.xlu0 %v609, 32
  %v651 = vpop.permute.xlu0 %650
  %v653 = vadd.f32 %v566, %v651
  %v654 = vxor.u32 %v653, 2147483648
  %v655 = vmul.f32 %v654, 1.442695
  %v656 = vpow.pop %v655
  %v657 = vadd.f32 %v656, 1.0
  %v658 = vrcp.pop %v657
  %v659 = vmul.f32 1.0, %v658
  %660 = vrot.lane.b32.xlu0 %v609, 96
  %v661 = vpop.permute.xlu0 %660
  %v663 = vmul.f32 %v648, %v661
  %665 = vrot.lane.b32.xlu0 %v663, 64
  %v666 = vpop.permute.xlu0 %665
  %v668 = vadd.f32 %v566, %v666
  %v669 = vtanh.pop %v668
  %v670 = vsub.f32 1.0, %v659
  %672 = vrot.lane.b32.xlu0 %v669, 96
  %v673 = vpop.permute.xlu0 %672
  %v675 = vmul.f32 %v670, %v673
  %v676 = vmul.f32 %v659, %v554
  %v677 = vadd.f32 %v675, %v676
  %679 = vrot.lane.b32.xlu0 %v638, 96
  %v680 = vpop.permute.xlu0 %679
  %s682 = scalar_lea.vmem %s7, 8
  %683 = vst.msk [vmem:[%s682] sm:$0xff] %vm37, %v680
  %s684 = scalar_lea.vmem %s7, 48
  %685 = vst.msk [vmem:[%s684] sm:$0xff] %vm561, %v677
  %s686 = scalar_lea.vmem [#allocation2], 16
  %v687 = vld [vmem:[%s686] sm:$0xff]
  %s688 = scalar_lea.vmem [#allocation3], 40
  %v689 = vld [vmem:[%s688] sm:$0xff]
  %v690 = vsel %vm37, %v680, %v677
  %v691 = vpack.c.bf16 %v690, %v690
  %v693 = vsel %vm445, %v691, 0
  %695 = vmatprep.subr.bf16.mxu0 %v422
  %696 = vmatpush1.bf16.msra.mxu0 %v421
  %697 = vmatprep.subr.bf16.mxu0 %v424
  %698 = vmatpush1.bf16.msra.mxu0 %v423
  %699 = vmatprep.subr.bf16.mxu0 %v426
  %700 = vmatpush1.bf16.msra.mxu0 %v425
  %701 = vmatprep.subr.bf16.mxu0 %v428
  %702 = vmatpush1.bf16.msra.mxu0 %v427
  %703 = vmatprep.subr.bf16.mxu0 0
  %704 = vmatpush1.bf16.msra.mxu0 0
  %705 = vmatprep.subr.bf16.mxu0 0
  %706 = vmatpush1.bf16.msra.mxu0 0
  %707 = vmatprep.subr.bf16.mxu0 0
  %708 = vmatpush1.bf16.msra.mxu0 0
  %709 = vmatprep.subr.bf16.mxu0 0
  %710 = vmatpush1.bf16.msra.mxu0 0
  %711 = vmatprep.subr.bf16.mxu0 0
  %712 = vmatpush1.bf16.msra.mxu0 0
  %713 = vmatprep.subr.bf16.mxu0 0
  %714 = vmatpush1.bf16.msra.mxu0 0
  %715 = vmatprep.subr.bf16.mxu0 0
  %716 = vmatpush1.bf16.msra.mxu0 0
  %717 = vmatprep.subr.bf16.mxu0 0
  %718 = vmatpush1.bf16.msra.mxu0 0
  %719 = vmatprep.subr.bf16.mxu0 0
  %720 = vmatpush1.bf16.msra.mxu0 0
  %721 = vmatprep.subr.bf16.mxu0 0
  %722 = vmatpush1.bf16.msra.mxu0 0
  %723 = vmatprep.subr.bf16.mxu0 0
  %724 = vmatpush1.bf16.msra.mxu0 0
  %725 = vmatprep.subr.bf16.mxu0 0
  %726 = vmatpush1.bf16.msra.mxu0 0
  %727 = vmatprep.mubr.bf16.mxu0 0
  %728 = vmatmul.mubr.bf16.gmra.mrb[0].mxu0 %v693
  %v729 = vpop.f32.mrb[0].mxu0
  %v730 = vadd.f32 %v438, %v729
  %v731 = vpop.f32.mrb[0].mxu0
  %v732 = vadd.f32 %v442, %v731
  %v733 = vpop.f32.mrb[0].mxu0
  %v734 = vpop.f32.mrb[0].mxu0
  %735 = vdwg.mxu0
  %v736 = vadd.f32 %v687, %v730
  %v737 = vxor.u32 %v736, 2147483648
  %v738 = vmul.f32 %v737, 1.442695
  %v739 = vpow.pop %v738
  %v740 = vadd.f32 %v739, 1.0
  %v741 = vrcp.pop %v740
  %v742 = vmul.f32 1.0, %v741
  %744 = vrot.lane.b32.xlu0 %v730, 64
  %v745 = vpop.permute.xlu0 %744
  %v747 = vmul.f32 %v742, %v745
  %749 = vrot.lane.b32.xlu0 %v747, 64
  %v750 = vpop.permute.xlu0 %749
  %v752 = vadd.f32 %v687, %v750
  %v753 = vtanh.pop %v752
  %v754 = vsub.f32 1.0, %v742
  %756 = vrot.lane.b32.xlu0 %v753, 96
  %v757 = vpop.permute.xlu0 %756
  %v759 = vmul.f32 %v754, %v757
  %v760 = vmul.f32 %v742, %v638
  %v761 = vadd.f32 %v759, %v760
  %762 = vrot.lane.b32.xlu0 %v730, 32
  %v763 = vpop.permute.xlu0 %762
  %v765 = vadd.f32 %v689, %v763
  %v766 = vxor.u32 %v765, 2147483648
  %v767 = vmul.f32 %v766, 1.442695
  %v768 = vpow.pop %v767
  %v769 = vadd.f32 %v768, 1.0
  %v770 = vrcp.pop %v769
  %v771 = vmul.f32 1.0, %v770
  %773 = vrot.lane.b32.xlu0 %v732, 32
  %v774 = vpop.permute.xlu0 %773
  %v776 = vadd.f32 %v689, %v774
  %v777 = vxor.u32 %v776, 2147483648
  %v778 = vmul.f32 %v777, 1.442695
  %v779 = vpow.pop %v778
  %v780 = vadd.f32 %v779, 1.0
  %v781 = vrcp.pop %v780
  %v782 = vmul.f32 1.0, %v781
  %783 = vrot.lane.b32.xlu0 %v732, 96
  %v784 = vpop.permute.xlu0 %783
  %v786 = vmul.f32 %v771, %v784
  %788 = vrot.lane.b32.xlu0 %v786, 64
  %v789 = vpop.permute.xlu0 %788
  %v791 = vadd.f32 %v689, %v789
  %v792 = vtanh.pop %v791
  %v793 = vsub.f32 1.0, %v782
  %795 = vrot.lane.b32.xlu0 %v792, 96
  %v796 = vpop.permute.xlu0 %795
  %v798 = vmul.f32 %v793, %v796
  %v799 = vmul.f32 %v782, %v677
  %v800 = vadd.f32 %v798, %v799
  %802 = vrot.lane.b32.xlu0 %v761, 96
  %v803 = vpop.permute.xlu0 %802
  %s805 = scalar_lea.vmem %s7, 16
  %806 = vst.msk [vmem:[%s805] sm:$0xff] %vm37, %v803
  %s807 = scalar_lea.vmem %s7, 40
  %808 = vst.msk [vmem:[%s807] sm:$0xff] %vm561, %v800
  %s809 = scalar_lea.vmem [#allocation2], 24
  %v810 = vld [vmem:[%s809] sm:$0xff]
  %s811 = scalar_lea.vmem [#allocation3], 32
  %v812 = vld [vmem:[%s811] sm:$0xff]
  %v813 = vsel %vm37, %v803, %v800
  %v814 = vpack.c.bf16 %v813, %v813
  %v816 = vsel %vm445, %v814, 0
  %818 = vmatprep.subr.bf16.mxu0 %v422
  %819 = vmatpush1.bf16.msra.mxu0 %v421
  %820 = vmatprep.subr.bf16.mxu0 %v424
  %821 = vmatpush1.bf16.msra.mxu0 %v423
  %822 = vmatprep.subr.bf16.mxu0 %v426
  %823 = vmatpush1.bf16.msra.mxu0 %v425
  %824 = vmatprep.subr.bf16.mxu0 %v428
  %825 = vmatpush1.bf16.msra.mxu0 %v427
  %826 = vmatprep.subr.bf16.mxu0 0
  %827 = vmatpush1.bf16.msra.mxu0 0
  %828 = vmatprep.subr.bf16.mxu0 0
  %829 = vmatpush1.bf16.msra.mxu0 0
  %830 = vmatprep.subr.bf16.mxu0 0
  %831 = vmatpush1.bf16.msra.mxu0 0
  %832 = vmatprep.subr.bf16.mxu0 0
  %833 = vmatpush1.bf16.msra.mxu0 0
  %834 = vmatprep.subr.bf16.mxu0 0
  %835 = vmatpush1.bf16.msra.mxu0 0
  %836 = vmatprep.subr.bf16.mxu0 0
  %837 = vmatpush1.bf16.msra.mxu0 0
  %838 = vmatprep.subr.bf16.mxu0 0
  %839 = vmatpush1.bf16.msra.mxu0 0
  %840 = vmatprep.subr.bf16.mxu0 0
  %841 = vmatpush1.bf16.msra.mxu0 0
  %842 = vmatprep.subr.bf16.mxu0 0
  %843 = vmatpush1.bf16.msra.mxu0 0
  %844 = vmatprep.subr.bf16.mxu0 0
  %845 = vmatpush1.bf16.msra.mxu0 0
  %846 = vmatprep.subr.bf16.mxu0 0
  %847 = vmatpush1.bf16.msra.mxu0 0
  %848 = vmatprep.subr.bf16.mxu0 0
  %849 = vmatpush1.bf16.msra.mxu0 0
  %850 = vmatprep.mubr.bf16.mxu0 0
  %851 = vmatmul.mubr.bf16.gmra.mrb[0].mxu0 %v816
  %v852 = vpop.f32.mrb[0].mxu0
  %v853 = vadd.f32 %v438, %v852
  %v854 = vpop.f32.mrb[0].mxu0
  %v855 = vadd.f32 %v442, %v854
  %v856 = vpop.f32.mrb[0].mxu0
  %v857 = vpop.f32.mrb[0].mxu0
  %858 = vdwg.mxu0
  %v859 = vadd.f32 %v810, %v853
  %v860 = vxor.u32 %v859, 2147483648
  %v861 = vmul.f32 %v860, 1.442695
  %v862 = vpow.pop %v861
  %v863 = vadd.f32 %v862, 1.0
  %v864 = vrcp.pop %v863
  %v865 = vmul.f32 1.0, %v864
  %867 = vrot.lane.b32.xlu0 %v853, 64
  %v868 = vpop.permute.xlu0 %867
  %v870 = vmul.f32 %v865, %v868
  %872 = vrot.lane.b32.xlu0 %v870, 64
  %v873 = vpop.permute.xlu0 %872
  %v875 = vadd.f32 %v810, %v873
  %v876 = vtanh.pop %v875
  %v877 = vsub.f32 1.0, %v865
  %879 = vrot.lane.b32.xlu0 %v876, 96
  %v880 = vpop.permute.xlu0 %879
  %v882 = vmul.f32 %v877, %v880
  %v883 = vmul.f32 %v865, %v761
  %v884 = vadd.f32 %v882, %v883
  %885 = vrot.lane.b32.xlu0 %v853, 32
  %v886 = vpop.permute.xlu0 %885
  %v888 = vadd.f32 %v812, %v886
  %v889 = vxor.u32 %v888, 2147483648
  %v890 = vmul.f32 %v889, 1.442695
  %v891 = vpow.pop %v890
  %v892 = vadd.f32 %v891, 1.0
  %v893 = vrcp.pop %v892
  %v894 = vmul.f32 1.0, %v893
  %896 = vrot.lane.b32.xlu0 %v855, 32
  %v897 = vpop.permute.xlu0 %896
  %v899 = vadd.f32 %v812, %v897
  %v900 = vxor.u32 %v899, 2147483648
  %v901 = vmul.f32 %v900, 1.442695
  %v902 = vpow.pop %v901
  %v903 = vadd.f32 %v902, 1.0
  %v904 = vrcp.pop %v903
  %v905 = vmul.f32 1.0, %v904
  %906 = vrot.lane.b32.xlu0 %v855, 96
  %v907 = vpop.permute.xlu0 %906
  %v909 = vmul.f32 %v894, %v907
  %911 = vrot.lane.b32.xlu0 %v909, 64
  %v912 = vpop.permute.xlu0 %911
  %v914 = vadd.f32 %v812, %v912
  %v915 = vtanh.pop %v914
  %v916 = vsub.f32 1.0, %v905
  %918 = vrot.lane.b32.xlu0 %v915, 96
  %v919 = vpop.permute.xlu0 %918
  %v921 = vmul.f32 %v916, %v919
  %v922 = vmul.f32 %v905, %v800
  %v923 = vadd.f32 %v921, %v922
  %925 = vrot.lane.b32.xlu0 %v884, 96
  %v926 = vpop.permute.xlu0 %925
  %s928 = scalar_lea.vmem %s7, 24
  %929 = vst.msk [vmem:[%s928] sm:$0xff] %vm37, %v926
  %s930 = scalar_lea.vmem %s7, 32
  %931 = vst.msk [vmem:[%s930] sm:$0xff] %vm561, %v923
  %s932 = scalar_lea.vmem [#allocation2], 32
  %v933 = vld [vmem:[%s932] sm:$0xff]
  %s934 = scalar_lea.vmem [#allocation3], 24
  %v935 = vld [vmem:[%s934] sm:$0xff]
  %v936 = vsel %vm37, %v926, %v923
  %v937 = vpack.c.bf16 %v936, %v936
  %v939 = vsel %vm445, %v937, 0
  %941 = vmatprep.subr.bf16.mxu0 %v422
  %942 = vmatpush1.bf16.msra.mxu0 %v421
  %943 = vmatprep.subr.bf16.mxu0 %v424
  %944 = vmatpush1.bf16.msra.mxu0 %v423
  %945 = vmatprep.subr.bf16.mxu0 %v426
  %946 = vmatpush1.bf16.msra.mxu0 %v425
  %947 = vmatprep.subr.bf16.mxu0 %v428
  %948 = vmatpush1.bf16.msra.mxu0 %v427
  %949 = vmatprep.subr.bf16.mxu0 0
  %950 = vmatpush1.bf16.msra.mxu0 0
  %951 = vmatprep.subr.bf16.mxu0 0
  %952 = vmatpush1.bf16.msra.mxu0 0
  %953 = vmatprep.subr.bf16.mxu0 0
  %954 = vmatpush1.bf16.msra.mxu0 0
  %955 = vmatprep.subr.bf16.mxu0 0
  %956 = vmatpush1.bf16.msra.mxu0 0
  %957 = vmatprep.subr.bf16.mxu0 0
  %958 = vmatpush1.bf16.msra.mxu0 0
  %959 = vmatprep.subr.bf16.mxu0 0
  %960 = vmatpush1.bf16.msra.mxu0 0
  %961 = vmatprep.subr.bf16.mxu0 0
  %962 = vmatpush1.bf16.msra.mxu0 0
  %963 = vmatprep.subr.bf16.mxu0 0
  %964 = vmatpush1.bf16.msra.mxu0 0
  %965 = vmatprep.subr.bf16.mxu0 0
  %966 = vmatpush1.bf16.msra.mxu0 0
  %967 = vmatprep.subr.bf16.mxu0 0
  %968 = vmatpush1.bf16.msra.mxu0 0
  %969 = vmatprep.subr.bf16.mxu0 0
  %970 = vmatpush1.bf16.msra.mxu0 0
  %971 = vmatprep.subr.bf16.mxu0 0
  %972 = vmatpush1.bf16.msra.mxu0 0
  %973 = vmatprep.mubr.bf16.mxu0 0
  %974 = vmatmul.mubr.bf16.gmra.mrb[0].mxu0 %v939
  %v975 = vpop.f32.mrb[0].mxu0
  %v976 = vadd.f32 %v438, %v975
  %v977 = vpop.f32.mrb[0].mxu0
  %v978 = vadd.f32 %v442, %v977
  %v979 = vpop.f32.mrb[0].mxu0
  %v980 = vpop.f32.mrb[0].mxu0
  %981 = vdwg.mxu0
  %v982 = vadd.f32 %v933, %v976
  %v983 = vxor.u32 %v982, 2147483648
  %v984 = vmul.f32 %v983, 1.442695
  %v985 = vpow.pop %v984
  %v986 = vadd.f32 %v985, 1.0
  %v987 = vrcp.pop %v986
  %v988 = vmul.f32 1.0, %v987
  %990 = vrot.lane.b32.xlu0 %v976, 64
  %v991 = vpop.permute.xlu0 %990
  %v993 = vmul.f32 %v988, %v991
  %995 = vrot.lane.b32.xlu0 %v993, 64
  %v996 = vpop.permute.xlu0 %995
  %v998 = vadd.f32 %v933, %v996
  %v999 = vtanh.pop %v998
  %v1000 = vsub.f32 1.0, %v988
  %1002 = vrot.lane.b32.xlu0 %v999, 96
  %v1003 = vpop.permute.xlu0 %1002
  %v1005 = vmul.f32 %v1000, %v1003
  %v1006 = vmul.f32 %v988, %v884
  %v1007 = vadd.f32 %v1005, %v1006
  %1008 = vrot.lane.b32.xlu0 %v976, 32
  %v1009 = vpop.permute.xlu0 %1008
  %v1011 = vadd.f32 %v935, %v1009
  %v1012 = vxor.u32 %v1011, 2147483648
  %v1013 = vmul.f32 %v1012, 1.442695
  %v1014 = vpow.pop %v1013
  %v1015 = vadd.f32 %v1014, 1.0
  %v1016 = vrcp.pop %v1015
  %v1017 = vmul.f32 1.0, %v1016
  %1019 = vrot.lane.b32.xlu0 %v978, 32
  %v1020 = vpop.permute.xlu0 %1019
  %v1022 = vadd.f32 %v935, %v1020
  %v1023 = vxor.u32 %v1022, 2147483648
  %v1024 = vmul.f32 %v1023, 1.442695
  %v1025 = vpow.pop %v1024
  %v1026 = vadd.f32 %v1025, 1.0
  %v1027 = vrcp.pop %v1026
  %v1028 = vmul.f32 1.0, %v1027
  %1029 = vrot.lane.b32.xlu0 %v978, 96
  %v1030 = vpop.permute.xlu0 %1029
  %v1032 = vmul.f32 %v1017, %v1030
  %1034 = vrot.lane.b32.xlu0 %v1032, 64
  %v1035 = vpop.permute.xlu0 %1034
  %v1037 = vadd.f32 %v935, %v1035
  %v1038 = vtanh.pop %v1037
  %v1039 = vsub.f32 1.0, %v1028
  %1041 = vrot.lane.b32.xlu0 %v1038, 96
  %v1042 = vpop.permute.xlu0 %1041
  %v1044 = vmul.f32 %v1039, %v1042
  %v1045 = vmul.f32 %v1028, %v923
  %v1046 = vadd.f32 %v1044, %v1045
  %1048 = vrot.lane.b32.xlu0 %v1007, 96
  %v1049 = vpop.permute.xlu0 %1048
  %1051 = vst.msk [vmem:[%s930] sm:$0xff] %vm37, %v1049
  %1052 = vst.msk [vmem:[%s928] sm:$0xff] %vm561, %v1046
  %s1053 = scalar_lea.vmem [#allocation2], 40
  %v1054 = vld [vmem:[%s1053] sm:$0xff]
  %s1055 = scalar_lea.vmem [#allocation3], 16
  %v1056 = vld [vmem:[%s1055] sm:$0xff]
  %v1057 = vsel %vm37, %v1049, %v1046
  %v1058 = vpack.c.bf16 %v1057, %v1057
  %v1060 = vsel %vm445, %v1058, 0
  %1062 = vmatprep.subr.bf16.mxu0 %v422
  %1063 = vmatpush1.bf16.msra.mxu0 %v421
  %1064 = vmatprep.subr.bf16.mxu0 %v424
  %1065 = vmatpush1.bf16.msra.mxu0 %v423
  %1066 = vmatprep.subr.bf16.mxu0 %v426
  %1067 = vmatpush1.bf16.msra.mxu0 %v425
  %1068 = vmatprep.subr.bf16.mxu0 %v428
  %1069 = vmatpush1.bf16.msra.mxu0 %v427
  %1070 = vmatprep.subr.bf16.mxu0 0
  %1071 = vmatpush1.bf16.msra.mxu0 0
  %1072 = vmatprep.subr.bf16.mxu0 0
  %1073 = vmatpush1.bf16.msra.mxu0 0
  %1074 = vmatprep.subr.bf16.mxu0 0
  %1075 = vmatpush1.bf16.msra.mxu0 0
  %1076 = vmatprep.subr.bf16.mxu0 0
  %1077 = vmatpush1.bf16.msra.mxu0 0
  %1078 = vmatprep.subr.bf16.mxu0 0
  %1079 = vmatpush1.bf16.msra.mxu0 0
  %1080 = vmatprep.subr.bf16.mxu0 0
  %1081 = vmatpush1.bf16.msra.mxu0 0
  %1082 = vmatprep.subr.bf16.mxu0 0
  %1083 = vmatpush1.bf16.msra.mxu0 0
  %1084 = vmatprep.subr.bf16.mxu0 0
  %1085 = vmatpush1.bf16.msra.mxu0 0
  %1086 = vmatprep.subr.bf16.mxu0 0
  %1087 = vmatpush1.bf16.msra.mxu0 0
  %1088 = vmatprep.subr.bf16.mxu0 0
  %1089 = vmatpush1.bf16.msra.mxu0 0
  %1090 = vmatprep.subr.bf16.mxu0 0
  %1091 = vmatpush1.bf16.msra.mxu0 0
  %1092 = vmatprep.subr.bf16.mxu0 0
  %1093 = vmatpush1.bf16.msra.mxu0 0
  %1094 = vmatprep.mubr.bf16.mxu0 0
  %1095 = vmatmul.mubr.bf16.gmra.mrb[0].mxu0 %v1060
  %v1096 = vpop.f32.mrb[0].mxu0
  %v1097 = vadd.f32 %v438, %v1096
  %v1098 = vpop.f32.mrb[0].mxu0
  %v1099 = vadd.f32 %v442, %v1098
  %v1100 = vpop.f32.mrb[0].mxu0
  %v1101 = vpop.f32.mrb[0].mxu0
  %1102 = vdwg.mxu0
  %v1103 = vadd.f32 %v1054, %v1097
  %v1104 = vxor.u32 %v1103, 2147483648
  %v1105 = vmul.f32 %v1104, 1.442695
  %v1106 = vpow.pop %v1105
  %v1107 = vadd.f32 %v1106, 1.0
  %v1108 = vrcp.pop %v1107
  %v1109 = vmul.f32 1.0, %v1108
  %1111 = vrot.lane.b32.xlu0 %v1097, 64
  %v1112 = vpop.permute.xlu0 %1111
  %v1114 = vmul.f32 %v1109, %v1112
  %1116 = vrot.lane.b32.xlu0 %v1114, 64
  %v1117 = vpop.permute.xlu0 %1116
  %v1119 = vadd.f32 %v1054, %v1117
  %v1120 = vtanh.pop %v1119
  %v1121 = vsub.f32 1.0, %v1109
  %1123 = vrot.lane.b32.xlu0 %v1120, 96
  %v1124 = vpop.permute.xlu0 %1123
  %v1126 = vmul.f32 %v1121, %v1124
  %v1127 = vmul.f32 %v1109, %v1007
  %v1128 = vadd.f32 %v1126, %v1127
  %1129 = vrot.lane.b32.xlu0 %v1097, 32
  %v1130 = vpop.permute.xlu0 %1129
  %v1132 = vadd.f32 %v1056, %v1130
  %v1133 = vxor.u32 %v1132, 2147483648
  %v1134 = vmul.f32 %v1133, 1.442695
  %v1135 = vpow.pop %v1134
  %v1136 = vadd.f32 %v1135, 1.0
  %v1137 = vrcp.pop %v1136
  %v1138 = vmul.f32 1.0, %v1137
  %1140 = vrot.lane.b32.xlu0 %v1099, 32
  %v1141 = vpop.permute.xlu0 %1140
  %v1143 = vadd.f32 %v1056, %v1141
  %v1144 = vxor.u32 %v1143, 2147483648
  %v1145 = vmul.f32 %v1144, 1.442695
  %v1146 = vpow.pop %v1145
  %v1147 = vadd.f32 %v1146, 1.0
  %v1148 = vrcp.pop %v1147
  %v1149 = vmul.f32 1.0, %v1148
  %1150 = vrot.lane.b32.xlu0 %v1099, 96
  %v1151 = vpop.permute.xlu0 %1150
  %v1153 = vmul.f32 %v1138, %v1151
  %1155 = vrot.lane.b32.xlu0 %v1153, 64
  %v1156 = vpop.permute.xlu0 %1155
  %v1158 = vadd.f32 %v1056, %v1156
  %v1159 = vtanh.pop %v1158
  %v1160 = vsub.f32 1.0, %v1149
  %1162 = vrot.lane.b32.xlu0 %v1159, 96
  %v1163 = vpop.permute.xlu0 %1162
  %v1165 = vmul.f32 %v1160, %v1163
  %v1166 = vmul.f32 %v1149, %v1046
  %v1167 = vadd.f32 %v1165, %v1166
  %1169 = vrot.lane.b32.xlu0 %v1128, 96
  %v1170 = vpop.permute.xlu0 %1169
  %1172 = vst.msk [vmem:[%s807] sm:$0xff] %vm37, %v1170
  %1173 = vst.msk [vmem:[%s805] sm:$0xff] %vm561, %v1167
  %s1174 = scalar_lea.vmem [#allocation2], 48
  %v1175 = vld [vmem:[%s1174] sm:$0xff]
  %s1176 = scalar_lea.vmem [#allocation3], 8
  %v1177 = vld [vmem:[%s1176] sm:$0xff]
  %v1178 = vsel %vm37, %v1170, %v1167
  %v1179 = vpack.c.bf16 %v1178, %v1178
  %v1181 = vsel %vm445, %v1179, 0
  %1183 = vmatprep.subr.bf16.mxu0 %v422
  %1184 = vmatpush1.bf16.msra.mxu0 %v421
  %1185 = vmatprep.subr.bf16.mxu0 %v424
  %1186 = vmatpush1.bf16.msra.mxu0 %v423
  %1187 = vmatprep.subr.bf16.mxu0 %v426
  %1188 = vmatpush1.bf16.msra.mxu0 %v425
  %1189 = vmatprep.subr.bf16.mxu0 %v428
  %1190 = vmatpush1.bf16.msra.mxu0 %v427
  %1191 = vmatprep.subr.bf16.mxu0 0
  %1192 = vmatpush1.bf16.msra.mxu0 0
  %1193 = vmatprep.subr.bf16.mxu0 0
  %1194 = vmatpush1.bf16.msra.mxu0 0
  %1195 = vmatprep.subr.bf16.mxu0 0
  %1196 = vmatpush1.bf16.msra.mxu0 0
  %1197 = vmatprep.subr.bf16.mxu0 0
  %1198 = vmatpush1.bf16.msra.mxu0 0
  %1199 = vmatprep.subr.bf16.mxu0 0
  %1200 = vmatpush1.bf16.msra.mxu0 0
  %1201 = vmatprep.subr.bf16.mxu0 0
  %1202 = vmatpush1.bf16.msra.mxu0 0
  %1203 = vmatprep.subr.bf16.mxu0 0
  %1204 = vmatpush1.bf16.msra.mxu0 0
  %1205 = vmatprep.subr.bf16.mxu0 0
  %1206 = vmatpush1.bf16.msra.mxu0 0
  %1207 = vmatprep.subr.bf16.mxu0 0
  %1208 = vmatpush1.bf16.msra.mxu0 0
  %1209 = vmatprep.subr.bf16.mxu0 0
  %1210 = vmatpush1.bf16.msra.mxu0 0
  %1211 = vmatprep.subr.bf16.mxu0 0
  %1212 = vmatpush1.bf16.msra.mxu0 0
  %1213 = vmatprep.subr.bf16.mxu0 0
  %1214 = vmatpush1.bf16.msra.mxu0 0
  %1215 = vmatprep.mubr.bf16.mxu0 0
  %1216 = vmatmul.mubr.bf16.gmra.mrb[0].mxu0 %v1181
  %v1217 = vpop.f32.mrb[0].mxu0
  %v1218 = vadd.f32 %v438, %v1217
  %v1219 = vpop.f32.mrb[0].mxu0
  %v1220 = vadd.f32 %v442, %v1219
  %v1221 = vpop.f32.mrb[0].mxu0
  %v1222 = vpop.f32.mrb[0].mxu0
  %1223 = vdwg.mxu0
  %v1224 = vadd.f32 %v1175, %v1218
  %v1225 = vxor.u32 %v1224, 2147483648
  %v1226 = vmul.f32 %v1225, 1.442695
  %v1227 = vpow.pop %v1226
  %v1228 = vadd.f32 %v1227, 1.0
  %v1229 = vrcp.pop %v1228
  %v1230 = vmul.f32 1.0, %v1229
  %1232 = vrot.lane.b32.xlu0 %v1218, 64
  %v1233 = vpop.permute.xlu0 %1232
  %v1235 = vmul.f32 %v1230, %v1233
  %1237 = vrot.lane.b32.xlu0 %v1235, 64
  %v1238 = vpop.permute.xlu0 %1237
  %v1240 = vadd.f32 %v1175, %v1238
  %v1241 = vtanh.pop %v1240
  %v1242 = vsub.f32 1.0, %v1230
  %1244 = vrot.lane.b32.xlu0 %v1241, 96
  %v1245 = vpop.permute.xlu0 %1244
  %v1247 = vmul.f32 %v1242, %v1245
  %v1248 = vmul.f32 %v1230, %v1128
  %v1249 = vadd.f32 %v1247, %v1248
  %1250 = vrot.lane.b32.xlu0 %v1218, 32
  %v1251 = vpop.permute.xlu0 %1250
  %v1253 = vadd.f32 %v1177, %v1251
  %v1254 = vxor.u32 %v1253, 2147483648
  %v1255 = vmul.f32 %v1254, 1.442695
  %v1256 = vpow.pop %v1255
  %v1257 = vadd.f32 %v1256, 1.0
  %v1258 = vrcp.pop %v1257
  %v1259 = vmul.f32 1.0, %v1258
  %1261 = vrot.lane.b32.xlu0 %v1220, 32
  %v1262 = vpop.permute.xlu0 %1261
  %v1264 = vadd.f32 %v1177, %v1262
  %v1265 = vxor.u32 %v1264, 2147483648
  %v1266 = vmul.f32 %v1265, 1.442695
  %v1267 = vpow.pop %v1266
  %v1268 = vadd.f32 %v1267, 1.0
  %v1269 = vrcp.pop %v1268
  %v1270 = vmul.f32 1.0, %v1269
  %1271 = vrot.lane.b32.xlu0 %v1220, 96
  %v1272 = vpop.permute.xlu0 %1271
  %v1274 = vmul.f32 %v1259, %v1272
  %1276 = vrot.lane.b32.xlu0 %v1274, 64
  %v1277 = vpop.permute.xlu0 %1276
  %v1279 = vadd.f32 %v1177, %v1277
  %v1280 = vtanh.pop %v1279
  %v1281 = vsub.f32 1.0, %v1270
  %1283 = vrot.lane.b32.xlu0 %v1280, 96
  %v1284 = vpop.permute.xlu0 %1283
  %v1286 = vmul.f32 %v1281, %v1284
  %v1287 = vmul.f32 %v1270, %v1167
  %v1288 = vadd.f32 %v1286, %v1287
  %1290 = vrot.lane.b32.xlu0 %v1249, 96
  %v1291 = vpop.permute.xlu0 %1290
  %1293 = vst.msk [vmem:[%s684] sm:$0xff] %vm37, %v1291
  %1294 = vst.msk [vmem:[%s682] sm:$0xff] %vm561, %v1288
  %s1295 = scalar_lea.vmem [#allocation2], 56
  %v1296 = vld [vmem:[%s1295] sm:$0xff]
  %v1297 = vld [vmem:[#allocation3] sm:$0xff]
  %v1298 = vsel %vm37, %v1291, %v1288
  %v1299 = vpack.c.bf16 %v1298, %v1298
  %v1301 = vsel %vm445, %v1299, 0
  %1303 = vmatprep.subr.bf16.mxu0 %v422
  %1304 = vmatpush1.bf16.msra.mxu0 %v421
  %1305 = vmatprep.subr.bf16.mxu0 %v424
  %1306 = vmatpush1.bf16.msra.mxu0 %v423
  %1307 = vmatprep.subr.bf16.mxu0 %v426
  %1308 = vmatpush1.bf16.msra.mxu0 %v425
  %1309 = vmatprep.subr.bf16.mxu0 %v428
  %1310 = vmatpush1.bf16.msra.mxu0 %v427
  %1311 = vmatprep.subr.bf16.mxu0 0
  %1312 = vmatpush1.bf16.msra.mxu0 0
  %1313 = vmatprep.subr.bf16.mxu0 0
  %1314 = vmatpush1.bf16.msra.mxu0 0
  %1315 = vmatprep.subr.bf16.mxu0 0
  %1316 = vmatpush1.bf16.msra.mxu0 0
  %1317 = vmatprep.subr.bf16.mxu0 0
  %1318 = vmatpush1.bf16.msra.mxu0 0
  %1319 = vmatprep.subr.bf16.mxu0 0
  %1320 = vmatpush1.bf16.msra.mxu0 0
  %1321 = vmatprep.subr.bf16.mxu0 0
  %1322 = vmatpush1.bf16.msra.mxu0 0
  %1323 = vmatprep.subr.bf16.mxu0 0
  %1324 = vmatpush1.bf16.msra.mxu0 0
  %1325 = vmatprep.subr.bf16.mxu0 0
  %1326 = vmatpush1.bf16.msra.mxu0 0
  %1327 = vmatprep.subr.bf16.mxu0 0
  %1328 = vmatpush1.bf16.msra.mxu0 0
  %1329 = vmatprep.subr.bf16.mxu0 0
  %1330 = vmatpush1.bf16.msra.mxu0 0
  %1331 = vmatprep.subr.bf16.mxu0 0
  %1332 = vmatpush1.bf16.msra.mxu0 0
  %1333 = vmatprep.subr.bf16.mxu0 0
  %1334 = vmatpush1.bf16.msra.mxu0 0
  %1335 = vmatprep.mubr.bf16.mxu0 0
  %1336 = vmatmul.mubr.bf16.gmra.mrb[0].mxu0 %v1301
  %v1337 = vpop.f32.mrb[0].mxu0
  %v1338 = vadd.f32 %v438, %v1337
  %v1339 = vpop.f32.mrb[0].mxu0
  %v1340 = vadd.f32 %v442, %v1339
  %v1341 = vpop.f32.mrb[0].mxu0
  %v1342 = vpop.f32.mrb[0].mxu0
  %1343 = vdwg.mxu0
  %v1344 = vadd.f32 %v1296, %v1338
  %v1345 = vxor.u32 %v1344, 2147483648
  %v1346 = vmul.f32 %v1345, 1.442695
  %v1347 = vpow.pop %v1346
  %v1348 = vadd.f32 %v1347, 1.0
  %v1349 = vrcp.pop %v1348
  %v1350 = vmul.f32 1.0, %v1349
  %1352 = vrot.lane.b32.xlu0 %v1338, 64
  %v1353 = vpop.permute.xlu0 %1352
  %v1355 = vmul.f32 %v1350, %v1353
  %1357 = vrot.lane.b32.xlu0 %v1355, 64
  %v1358 = vpop.permute.xlu0 %1357
  %v1360 = vadd.f32 %v1296, %v1358
  %v1361 = vtanh.pop %v1360
  %v1362 = vsub.f32 1.0, %v1350
  %1364 = vrot.lane.b32.xlu0 %v1361, 96
  %v1365 = vpop.permute.xlu0 %1364
  %v1367 = vmul.f32 %v1362, %v1365
  %v1368 = vmul.f32 %v1350, %v1249
  %v1369 = vadd.f32 %v1367, %v1368
  %1370 = vrot.lane.b32.xlu0 %v1338, 32
  %v1371 = vpop.permute.xlu0 %1370
  %v1373 = vadd.f32 %v1297, %v1371
  %v1374 = vxor.u32 %v1373, 2147483648
  %v1375 = vmul.f32 %v1374, 1.442695
  %v1376 = vpow.pop %v1375
  %v1377 = vadd.f32 %v1376, 1.0
  %v1378 = vrcp.pop %v1377
  %v1379 = vmul.f32 1.0, %v1378
  %1381 = vrot.lane.b32.xlu0 %v1340, 32
  %v1382 = vpop.permute.xlu0 %1381
  %v1384 = vadd.f32 %v1297, %v1382
  %v1385 = vxor.u32 %v1384, 2147483648
  %v1386 = vmul.f32 %v1385, 1.442695
  %v1387 = vpow.pop %v1386
  %v1388 = vadd.f32 %v1387, 1.0
  %v1389 = vrcp.pop %v1388
  %v1390 = vmul.f32 1.0, %v1389
  %1391 = vrot.lane.b32.xlu0 %v1340, 96
  %v1392 = vpop.permute.xlu0 %1391
  %v1394 = vmul.f32 %v1379, %v1392
  %1396 = vrot.lane.b32.xlu0 %v1394, 64
  %v1397 = vpop.permute.xlu0 %1396
  %v1399 = vadd.f32 %v1297, %v1397
  %v1400 = vtanh.pop %v1399
  %v1401 = vsub.f32 1.0, %v1390
  %1403 = vrot.lane.b32.xlu0 %v1400, 96
  %v1404 = vpop.permute.xlu0 %1403
  %v1406 = vmul.f32 %v1401, %v1404
  %v1407 = vmul.f32 %v1390, %v1288
  %v1408 = vadd.f32 %v1406, %v1407
  %1410 = vrot.lane.b32.xlu0 %v1369, 96
  %v1411 = vpop.permute.xlu0 %1410
  %1413 = vst.msk [vmem:[%s560] sm:$0xff] %vm37, %v1411
  %1414 = vst.msk [vmem:[%s7] sm:$0xff] %vm561, %v1408
  // Predicated region
  $region30: #{conv_listener_forward.8} parent=0 // pred_check
    _
  $region31: #{conv_listener_forward.8} parent=0 // pred_check_branch
    %1416 = sbr.rel (0) target = $region33
  $region32: #{conv_listener_forward.8} parent=0 // pred_region
    _
  $region33: #{conv_listener_forward.8} parent=0 // pred_fallthru
    _
  // Predicated region
  $region34: #{conv_listener_forward.8} parent=0 // pred_check
    _
  $region35: #{conv_listener_forward.8} parent=0 // pred_check_branch
    %1418 = sbr.rel (0) target = $region37
  $region36: #{conv_listener_forward.8} parent=0 // pred_region
    _
  $region37: #{conv_listener_forward.8} parent=0 // pred_fallthru
    _

</llo_original>
